<compile_context>
chip_gen: v7x
topology: tpu7x:2x2x1
jax: 0.10.0
libtpu: 0.0.40
codegen_flags: <defaults>
</compile_context>

<pallas_src>
import jax
import jax.numpy as jnp
from jax import lax
from jax.experimental import pallas as pl
from jax.experimental.pallas import tpu as pltpu


def _elu(x):
    return jnp.where(x > 0, x, jnp.exp(x) - 1.0)


def _vmem_limit_bytes():
    # Leave headroom below physical VMEM (v7x has only 64 MiB per TensorCore).
    try:
        cap = int(pltpu.get_tpu_info().vmem_capacity_bytes)
    except Exception:  # pragma: no cover - conservative fallback
        cap = 64 * 1024 * 1024
    return min(cap * 3 // 4, 100 * 1024 * 1024)


def _pick_node_tile(n):
    # Prefer >= 2 row panels (v7x megacore) with a per-panel working set of a
    # few MiB (256x512 f32 = 0.5 MiB), comfortably inside v7x's 64 MiB VMEM.
    for t in (256, 128):
        if n % t == 0 and n > t:
            return t
    # TODO(synk): mask-pad ragged N up to a 256 multiple inside the kernels
    # instead of falling back to a single monolithic row panel.
    return n


def _const_spec(shape, grid_rank):
    # Constant-index (resident) weight: single-buffer it -- its index map never
    # changes, so there is no DMA to hide and double-buffering only costs VMEM.
    if grid_rank == 1:
        imap = lambda i: (0,) * len(shape)
    else:
        imap = lambda i, j: (0,) * len(shape)
    return pl.BlockSpec(shape, imap, pipeline_mode=pl.Buffered(1))


# ----------------------------------------------------------------------------
# Graph branch, kernel 1: per node-row-panel prep
#   node = ELU(kmer@Wk+bk) @ Ws_k + ELU(pssm@Wp+bp) @ Ws_p + bs
#   res0 = node ; h1 = ELU(node)
#   tn   = row-normalised tanh(h1@Wa+ba)      (bf16, for the Gram matmul)
#   xw1  = h1 @ Wg1                            (bf16, for adj @ xw1)
# ----------------------------------------------------------------------------
def _graph_prep_kernel(kmer_ref, pssm_ref,
                       wk_ref, bk_ref, wp_ref, bp_ref,
                       ws_k_ref, ws_p_ref, bs_ref,
                       wa_ref, ba_ref, wg1_ref,
                       res0_ref, tn_ref, xw1_ref):
    f32 = jnp.float32
    bf16 = jnp.bfloat16

    nk = jnp.dot(kmer_ref[...].astype(bf16), wk_ref[...],
                 preferred_element_type=f32) + bk_ref[...]
    np_ = jnp.dot(pssm_ref[...].astype(bf16), wp_ref[...],
                  preferred_element_type=f32) + bp_ref[...]

    # ELU(cat([nk, np])) @ Ws == ELU(nk) @ Ws[:h] + ELU(np) @ Ws[h:]
    node = (jnp.dot(_elu(nk).astype(bf16), ws_k_ref[...], preferred_element_type=f32)
            + jnp.dot(_elu(np_).astype(bf16), ws_p_ref[...], preferred_element_type=f32)
            + bs_ref[...])
    res0_ref[...] = node                     # res_mat = zeros + node_ft

    h1 = _elu(node).astype(bf16)             # dropout = identity (inference)
    trans = jnp.tanh(jnp.dot(h1, wa_ref[...], preferred_element_type=f32)
                     + ba_ref[...])
    # Row-normalise (rsqrt on EUP); no epsilon, matching the reference.
    nrm = jnp.sum(trans * trans, axis=1, keepdims=True)
    tn_ref[...] = (trans * lax.rsqrt(nrm)).astype(bf16)
    xw1_ref[...] = jnp.dot(h1, wg1_ref[...], preferred_element_type=f32).astype(bf16)


# ----------------------------------------------------------------------------
# Graph branch, kernel 2: adjacency Gram + GCN1 (+ finalize emits res1, xw2)
#   grid (row panel i  [parallel], col panel j  [arbitrary, reduction])
#   adj[i,j] = tn_i @ tn_j^T     (written every step)
#   acc     += adj[i,j] @ xw1_j  (f32 scratch accumulator, bf16 operands)
#   at j==last: res1_i = res0_i + acc + bg1 ; xw2_i = ELU(res1_i) @ Wg2
# ----------------------------------------------------------------------------
def _adj_gcn1_kernel(tn_i_ref, tn_j_ref, xw1_j_ref, res0_i_ref,
                     bg1_ref, wg2_ref,
                     adj_ref, res1_ref, xw2_ref, acc_ref):
    f32 = jnp.float32
    bf16 = jnp.bfloat16
    j = pl.program_id(1)

    @pl.when(j == 0)
    def _():
        acc_ref[...] = jnp.zeros_like(acc_ref)

    adj_blk = lax.dot_general(tn_i_ref[...], tn_j_ref[...],
                              (((1,), (1,)), ((), ())),
                              preferred_element_type=f32)
    adj_ref[...] = adj_blk
    acc_ref[...] += jnp.dot(adj_blk.astype(bf16), xw1_j_ref[...],
                            preferred_element_type=f32)

    @pl.when(j == pl.num_programs(1) - 1)
    def _():
        res1 = res0_i_ref[...] + acc_ref[...] + bg1_ref[...]
        res1_ref[...] = res1
        h2 = _elu(res1).astype(bf16)
        xw2_ref[...] = jnp.dot(h2, wg2_ref[...],
                               preferred_element_type=f32).astype(bf16)


# ----------------------------------------------------------------------------
# Graph branch, kernel 3: GCN2 + final ELU
#   acc += adj[i,j] @ xw2_j ; at j==last: out_i = ELU(res1_i + acc + bg2)
# ----------------------------------------------------------------------------
def _gcn2_kernel(adj_ref, xw2_j_ref, res1_i_ref, bg2_ref, out_ref, acc_ref):
    f32 = jnp.float32
    bf16 = jnp.bfloat16
    j = pl.program_id(1)

    @pl.when(j == 0)
    def _():
        acc_ref[...] = jnp.zeros_like(acc_ref)

    acc_ref[...] += jnp.dot(adj_ref[...].astype(bf16), xw2_j_ref[...],
                            preferred_element_type=f32)

    @pl.when(j == pl.num_programs(1) - 1)
    def _():
        out_ref[...] = _elu(res1_i_ref[...] + acc_ref[...] + bg2_ref[...])


def graph_forward(kmer_ft, pssm_ft, p):
    n, kdim = kmer_ft.shape
    pdim = pssm_ft.shape[1]
    h = p["Wk"].shape[1]
    tile = _pick_node_tile(n)
    nb = n // tile
    vmem = _vmem_limit_bytes()

    # --- kernel 1: node prep, grid over row panels (parallel) ---------------
    res0, tn, xw1 = pl.pallas_call(
        _graph_prep_kernel,
        grid=(nb,),
        in_specs=[
            pl.BlockSpec((tile, kdim), lambda i: (i, 0)),
            pl.BlockSpec((tile, pdim), lambda i: (i, 0)),
            _const_spec((kdim, h), 1), _const_spec((1, h), 1),
            _const_spec((pdim, h), 1), _const_spec((1, h), 1),
            _const_spec((h, h), 1), _const_spec((h, h), 1), _const_spec((1, h), 1),
            _const_spec((h, h), 1), _const_spec((1, h), 1),
            _const_spec((h, h), 1),
        ],
        out_specs=[pl.BlockSpec((tile, h), lambda i: (i, 0)),
                   pl.BlockSpec((tile, h), lambda i: (i, 0)),
                   pl.BlockSpec((tile, h), lambda i: (i, 0))],
        out_shape=(jax.ShapeDtypeStruct((n, h), jnp.float32),
                   jax.ShapeDtypeStruct((n, h), jnp.bfloat16),
                   jax.ShapeDtypeStruct((n, h), jnp.bfloat16)),
        compiler_params=pltpu.CompilerParams(
            dimension_semantics=("parallel",), vmem_limit_bytes=vmem),
    )(kmer_ft, pssm_ft, p["Wk"], p["bk"], p["Wp"], p["bp"],
      p["Ws_k"], p["Ws_p"], p["bs"], p["Wa"], p["ba"], p["Wg1"])

    # --- kernel 2: adjacency + GCN1 (rows parallel, cols = reduction) -------
    adj, res1, xw2 = pl.pallas_call(
        _adj_gcn1_kernel,
        grid=(nb, nb),
        in_specs=[
            pl.BlockSpec((tile, h), lambda i, j: (i, 0)),
            pl.BlockSpec((tile, h), lambda i, j: (j, 0)),
            pl.BlockSpec((tile, h), lambda i, j: (j, 0)),
            pl.BlockSpec((tile, h), lambda i, j: (i, 0)),
            _const_spec((1, h), 2),
            _const_spec((h, h), 2),
        ],
        out_specs=[pl.BlockSpec((tile, tile), lambda i, j: (i, j)),
                   pl.BlockSpec((tile, h), lambda i, j: (i, 0)),
                   pl.BlockSpec((tile, h), lambda i, j: (i, 0))],
        out_shape=(jax.ShapeDtypeStruct((n, n), jnp.float32),
                   jax.ShapeDtypeStruct((n, h), jnp.float32),
                   jax.ShapeDtypeStruct((n, h), jnp.bfloat16)),
        scratch_shapes=[pltpu.VMEM((tile, h), jnp.float32)],
        compiler_params=pltpu.CompilerParams(
            dimension_semantics=("parallel", "arbitrary"),
            vmem_limit_bytes=vmem),
    )(tn, tn, xw1, res0, p["bg1"], p["Wg2"])

    # --- kernel 3: GCN2 + final ELU ------------------------------------------
    res_mat = pl.pallas_call(
        _gcn2_kernel,
        grid=(nb, nb),
        in_specs=[
            pl.BlockSpec((tile, tile), lambda i, j: (i, j)),
            pl.BlockSpec((tile, h), lambda i, j: (j, 0)),
            pl.BlockSpec((tile, h), lambda i, j: (i, 0)),
            _const_spec((1, h), 2),
        ],
        out_specs=pl.BlockSpec((tile, h), lambda i, j: (i, 0)),
        out_shape=jax.ShapeDtypeStruct((n, h), jnp.float32),
        scratch_shapes=[pltpu.VMEM((tile, h), jnp.float32)],
        compiler_params=pltpu.CompilerParams(
            dimension_semantics=("parallel", "arbitrary"),
            vmem_limit_bytes=vmem),
    )(adj, xw2, res1, p["bg2"])

    return res_mat, adj


# ----------------------------------------------------------------------------
# CNNmodule + cross-scale fusion epilogue
#   Conv1d(22->64, k=2, pad=1) -> MaxPool1d(2,1) -> Linear(L*64, 512)
#   then ELU(global + local + global*local*merge)
# Conv taps are one lane-dense (Bb*L, 22)@(22, 128) matmul; zero-pad shifts are
# pltpu.roll + iota masks; flatten linear is one big MXU matmul.
# ----------------------------------------------------------------------------
def _cnn_fuse_kernel(x_ref, g_ref, w01_ref, bc_ref, wr_ref, bo_ref,
                     merge_ref, out_ref):
    f32 = jnp.float32
    bf16 = jnp.bfloat16
    Bb, L, C = x_ref.shape

    x2 = x_ref[...].reshape(Bb * L, C).astype(bf16)
    # Single fused-tap matmul: [P | Q] = x @ [W0 | W1]   (lane-dense 128 out).
    taps = jnp.dot(x2, w01_ref[...], preferred_element_type=f32).reshape(Bb, L, 128)
    p_tap = taps[:, :, :64]                   # P[t] = x[t] @ W0
    q_tap = taps[:, :, 64:]                   # Q[t] = x[t] @ W1

    # In-kernel zero padding (pad=1) realised as XLU rolls + VPU masks:
    #   y[o]    = P[o-1] + Q[o] + b   (P[-1] = Q[L] = 0)
    #   pool[t] = max(y[t], y[t+1]) = max(P[t-1]+Q[t], P[t]+Q[t+1]) + b
    tidx = lax.broadcasted_iota(jnp.int32, (Bb, L, 64), 1)
    p_sh = jnp.where(tidx == 0, 0.0, pltpu.roll(p_tap, 1, axis=1))       # P[t-1]
    q_sh = jnp.where(tidx == L - 1, 0.0, pltpu.roll(q_tap, L - 1, axis=1))  # Q[t+1]
    pool = jnp.maximum(p_sh + q_tap, p_tap + q_sh) + bc_ref[...]         # (Bb, L, 64)

    # Flattened (time-major) linear: single (Bb, L*64) @ (L*64, 512) matmul.
    # The reshape is done in bf16 to halve any relayout traffic.
    local = (jnp.dot(pool.astype(bf16).reshape(Bb, L * 64), wr_ref[...],
                     preferred_element_type=f32) + bo_ref[...])

    # Fused cross-scale merge epilogue: ELU(g + l + g*l*merge).
    g = g_ref[...]
    merge = merge_ref[0, 0]
    out_ref[...] = _elu(g + local + g * local * merge)


def cnn_fuse_forward(amino_ft, global_ft, p):
    B, L, C = amino_ft.shape
    out_dim = p["Wr"].shape[-1]
    # >= 2 grid programs when possible (v7x 2-TC sharding + DMA/compute
    # overlap); keep batch tiles 8-row aligned.
    if B > 8:
        Bb = min(256, -(-pl.cdiv(B, 2) // 8) * 8)
    else:
        Bb = B
    grid = (pl.cdiv(B, Bb),)
    return pl.pallas_call(
        _cnn_fuse_kernel,
        grid=grid,
        in_specs=[
            pl.BlockSpec((Bb, L, C), lambda b: (b, 0, 0)),
            pl.BlockSpec((Bb, out_dim), lambda b: (b, 0)),
            _const_spec((C, 128), 1),
            _const_spec((1, 64), 1),
            _const_spec((L * 64, out_dim), 1),
            _const_spec((1, out_dim), 1),
            pl.BlockSpec(memory_space=pltpu.MemorySpace.SMEM),   # merge scalar
        ],
        out_specs=pl.BlockSpec((Bb, out_dim), lambda b: (b, 0)),
        out_shape=jax.ShapeDtypeStruct((B, out_dim), jnp.float32),
        compiler_params=pltpu.CompilerParams(
            dimension_semantics=("parallel",),
            vmem_limit_bytes=_vmem_limit_bytes()),
    )(amino_ft, global_ft, p["W01"], p["bc"], p["Wr"], p["bo"], p["merge"])


# ----------------------------------------------------------------------------
# Deterministic parameter construction (synthetic; mirrors module __init__ shapes)
# ----------------------------------------------------------------------------
def _xavier(key, fan_in, fan_out):
    bound = (6.0 / (fan_in + fan_out)) ** 0.5
    return jax.random.uniform(key, (fan_in, fan_out), jnp.float32, -bound, bound)


def init_params(key, kmer_dim, pssm_dim, h_dim, max_len, amino_dim=22):
    keys = jax.random.split(key, 10)
    bf16 = jnp.bfloat16
    p = {}
    p["Wk"] = _xavier(keys[0], kmer_dim, h_dim).astype(bf16)
    p["bk"] = jnp.zeros((1, h_dim), jnp.float32)
    p["Wp"] = _xavier(keys[1], pssm_dim, h_dim).astype(bf16)
    p["bp"] = jnp.zeros((1, h_dim), jnp.float32)
    Ws = _xavier(keys[2], 2 * h_dim, h_dim)
    p["Ws_k"] = Ws[:h_dim].astype(bf16)        # split of share_linear weight
    p["Ws_p"] = Ws[h_dim:].astype(bf16)
    p["bs"] = jnp.zeros((1, h_dim), jnp.float32)
    p["Wa"] = _xavier(keys[3], h_dim, h_dim).astype(bf16)
    p["ba"] = jnp.zeros((1, h_dim), jnp.float32)
    p["Wg1"] = _xavier(keys[4], h_dim, h_dim).astype(bf16)
    p["bg1"] = jnp.zeros((1, h_dim), jnp.float32)
    p["Wg2"] = _xavier(keys[5], h_dim, h_dim).astype(bf16)
    p["bg2"] = jnp.zeros((1, h_dim), jnp.float32)
    p["merge"] = jnp.ones((1, 1), jnp.float32)          # cross_scale_merge

    # CNNmodule params (conv keeps PyTorch-style uniform init; only nn.Linear got xavier)
    cb = 1.0 / (amino_dim * 2) ** 0.5
    wconv = jax.random.uniform(keys[6], (64, amino_dim, 2), jnp.float32, -cb, cb)
    w0 = jnp.transpose(wconv[:, :, 0])                  # (C_in, 64), conv tap 0
    w1 = jnp.transpose(wconv[:, :, 1])                  # (C_in, 64), conv tap 1
    p["W01"] = jnp.concatenate([w0, w1], axis=1).astype(bf16)   # fused (C_in, 128)
    p["bc"] = jax.random.uniform(keys[7], (1, 64), jnp.float32, -cb, cb)
    lin_in = max_len * 64
    lb = 1.0 / lin_in ** 0.5
    w_lin = jax.random.uniform(keys[8], (lin_in, 512), jnp.float32, -lb, lb)
    # PyTorch flattens pooled (B, 64, L) channel-major (in-index = c*L + t);
    # the kernel flattens (B, L, 64) time-major (in-index = t*64 + c) -> permute.
    p["Wr"] = (jnp.transpose(w_lin.reshape(64, max_len, 512), (1, 0, 2))
               .reshape(lin_in, 512).astype(bf16))
    p["_Wr_torch"] = w_lin                               # f32, reference check only
    p["bo"] = jax.random.uniform(keys[9], (1, 512), jnp.float32, -lb, lb)
    return p


def antis_embed_forward(ft_dict, params):
    res_mat, adj = graph_forward(ft_dict["graph_node_kmer_ft"],
                                 ft_dict["graph_node_pssm_ft"], params)
    # TODO(synk): the idx row gather stays as host-side glue between kernels;
    # fusing it into the graph finalize would avoid the full res_mat writeback.
    global_ft = jnp.take(res_mat, ft_dict["idx"], axis=0)
    total_ft = cnn_fuse_forward(ft_dict["amino_ft"], global_ft, params)
    return total_ft, adj


# ----------------------------------------------------------------------------
# Pure-JAX f32 reference (PyTorch semantics) for a tolerance check.
# ----------------------------------------------------------------------------
def reference_forward(ft_dict, p):
    f32 = jnp.float32
    kmer = ft_dict["graph_node_kmer_ft"]
    pssm = ft_dict["graph_node_pssm_ft"]
    nk = kmer @ p["Wk"].astype(f32) + p["bk"]
    np_ = pssm @ p["Wp"].astype(f32) + p["bp"]
    node = (jnp.concatenate([_elu(nk), _elu(np_)], axis=-1)
            @ jnp.concatenate([p["Ws_k"].astype(f32), p["Ws_p"].astype(f32)], axis=0)
            + p["bs"])
    res = node
    h1 = _elu(node)
    trans = jnp.tanh(h1 @ p["Wa"].astype(f32) + p["ba"])
    w = jnp.sqrt(jnp.sum(trans * trans, axis=-1, keepdims=True))
    adj = (trans @ trans.T) / (w * w.T)
    res = res + adj @ (h1 @ p["Wg1"].astype(f32)) + p["bg1"]
    h2 = _elu(res)
    res = res + adj @ (h2 @ p["Wg2"].astype(f32)) + p["bg2"]
    res = _elu(res)
    global_ft = jnp.take(res, ft_dict["idx"], axis=0)

    x = ft_dict["amino_ft"]
    B, L, _ = x.shape
    w01 = p["W01"].astype(f32)
    P = jnp.einsum("blc,co->blo", x, w01[:, :64])
    Q = jnp.einsum("blc,co->blo", x, w01[:, 64:])
    Pm = jnp.concatenate([jnp.zeros_like(P[:, :1]), P], axis=1)   # P[o-1]
    Qp = jnp.concatenate([Q, jnp.zeros_like(Q[:, :1])], axis=1)   # Q[o]
    y = Pm + Qp + p["bc"][None]
    pool = jnp.maximum(y[:, :-1], y[:, 1:])                       # (B, L, 64)
    # PyTorch flatten is channel-major: (B, 64, L).view(B, -1) against w_lin.
    local = (jnp.transpose(pool, (0, 2, 1)).reshape(B, -1)
             @ p["_Wr_torch"] + p["bo"])
    merge = p["merge"][0, 0]
    total = _elu(global_ft + local + global_ft * local * merge)
    return total, adj


if __name__ == "__main__":
    key = jax.random.PRNGKey(0)
    N, kmer_dim, pssm_dim = 16, 32, 16
    h_dim = 512                       # must be 512 (CNN out_linear is hard-coded to 512)
    B, max_len, amino_dim = 2, 8, 22

    k0, k1, k2, kp = jax.random.split(key, 4)
    ft_dict = {
        "graph_node_kmer_ft": jax.random.normal(k0, (N, kmer_dim), jnp.float32),
        "graph_node_pssm_ft": jax.random.normal(k1, (N, pssm_dim), jnp.float32),
        "amino_ft": jax.random.normal(k2, (B, max_len, amino_dim), jnp.float32),
        "idx": jnp.array([3, 11], dtype=jnp.int32),
    }
    params = init_params(kp, kmer_dim, pssm_dim, h_dim, max_len, amino_dim)

    total_ft, adj = antis_embed_forward(ft_dict, params)
    jax.block_until_ready((total_ft, adj))

    assert total_ft.shape == (B, 512) and adj.shape == (N, N)
    assert bool(jnp.all(jnp.isfinite(total_ft))) and bool(jnp.all(jnp.isfinite(adj)))

    # Pure-JAX f32 reference check (tolerances sized for bf16 matmul operands).
    ref_total, ref_adj = reference_forward(ft_dict, params)
    err_adj = float(jnp.max(jnp.abs(adj - ref_adj)))
    err_tot = float(jnp.max(jnp.abs(total_ft - ref_total)))
    assert err_adj < 0.05, f"adj mismatch: {err_adj}"
    assert err_tot < 0.30, f"total_ft mismatch: {err_tot}"

    print("KERNEL_OK")
</pallas_src>

<mosaic_0001>
module attributes {stable_mosaic.version = 11 : i64} {
  func.func @_graph_prep_kernel(%arg0: i32, %arg1: memref<16x32xf32, #tpu.memory_space<vmem>>, %arg2: memref<16x16xf32, #tpu.memory_space<vmem>>, %arg3: memref<32x512xbf16, #tpu.memory_space<vmem>>, %arg4: memref<1x512xf32, #tpu.memory_space<vmem>>, %arg5: memref<16x512xbf16, #tpu.memory_space<vmem>>, %arg6: memref<1x512xf32, #tpu.memory_space<vmem>>, %arg7: memref<512x512xbf16, #tpu.memory_space<vmem>>, %arg8: memref<512x512xbf16, #tpu.memory_space<vmem>>, %arg9: memref<1x512xf32, #tpu.memory_space<vmem>>, %arg10: memref<512x512xbf16, #tpu.memory_space<vmem>>, %arg11: memref<1x512xf32, #tpu.memory_space<vmem>>, %arg12: memref<512x512xbf16, #tpu.memory_space<vmem>>, %arg13: memref<16x512xf32, #tpu.memory_space<vmem>>, %arg14: memref<16x512xbf16, #tpu.memory_space<vmem>>, %arg15: memref<16x512xbf16, #tpu.memory_space<vmem>>) attributes {dimension_semantics = [#tpu.dimension_semantics<parallel>], iteration_bounds = array<i64: 1>, scalar_prefetch = 0 : i64, scratch_operands = 0 : i64, tpu.core_type = #tpu.core_type<tc>, window_params = [{transform_indices = @transform_0, window_bounds = array<i64: 16, 32>}, {transform_indices = @transform_1, window_bounds = array<i64: 16, 16>}, {pipeline_mode = #tpu.pipeline_mode<synchronous>, transform_indices = @transform_2, window_bounds = array<i64: 32, 512>}, {pipeline_mode = #tpu.pipeline_mode<synchronous>, transform_indices = @transform_3, window_bounds = array<i64: 1, 512>}, {pipeline_mode = #tpu.pipeline_mode<synchronous>, transform_indices = @transform_4, window_bounds = array<i64: 16, 512>}, {pipeline_mode = #tpu.pipeline_mode<synchronous>, transform_indices = @transform_5, window_bounds = array<i64: 1, 512>}, {pipeline_mode = #tpu.pipeline_mode<synchronous>, transform_indices = @transform_6, window_bounds = array<i64: 512, 512>}, {pipeline_mode = #tpu.pipeline_mode<synchronous>, transform_indices = @transform_7, window_bounds = array<i64: 512, 512>}, {pipeline_mode = #tpu.pipeline_mode<synchronous>, transform_indices = @transform_8, window_bounds = array<i64: 1, 512>}, {pipeline_mode = #tpu.pipeline_mode<synchronous>, transform_indices = @transform_9, window_bounds = array<i64: 512, 512>}, {pipeline_mode = #tpu.pipeline_mode<synchronous>, transform_indices = @transform_10, window_bounds = array<i64: 1, 512>}, {pipeline_mode = #tpu.pipeline_mode<synchronous>, transform_indices = @transform_11, window_bounds = array<i64: 512, 512>}, {transform_indices = @transform_12, window_bounds = array<i64: 16, 512>}, {transform_indices = @transform_13, window_bounds = array<i64: 16, 512>}, {transform_indices = @transform_14, window_bounds = array<i64: 16, 512>}]} {
    %c0 = arith.constant 0 : index
    %c0_0 = arith.constant 0 : index
    %0 = vector.load %arg1[%c0, %c0_0] : memref<16x32xf32, #tpu.memory_space<vmem>>, vector<16x32xf32>
    %1 = arith.truncf %0 : vector<16x32xf32> to vector<16x32xbf16>
    %c0_1 = arith.constant 0 : index
    %c0_2 = arith.constant 0 : index
    %2 = vector.load %arg3[%c0_1, %c0_2] : memref<32x512xbf16, #tpu.memory_space<vmem>>, vector<32x512xbf16>
    %cst = arith.constant dense<0.000000e+00> : vector<16x512xf32>
    %3 = tpu.matmul %1, %2, %cst {dimension_numbers = #tpu.dot_dimension_numbers<[1], [0], [0], [1], [0, 0, 1, 1], [], []>} : vector<16x32xbf16>, vector<32x512xbf16>, vector<16x512xf32> -> vector<16x512xf32>
    %c0_3 = arith.constant 0 : index
    %c0_4 = arith.constant 0 : index
    %4 = vector.load %arg4[%c0_3, %c0_4] : memref<1x512xf32, #tpu.memory_space<vmem>>, vector<1x512xf32>
    %5 = vector.broadcast %4 : vector<1x512xf32> to vector<16x512xf32>
    %6 = arith.addf %3, %5 : vector<16x512xf32>
    %c0_5 = arith.constant 0 : index
    %c0_6 = arith.constant 0 : index
    %7 = vector.load %arg2[%c0_5, %c0_6] : memref<16x16xf32, #tpu.memory_space<vmem>>, vector<16x16xf32>
    %8 = arith.truncf %7 : vector<16x16xf32> to vector<16x16xbf16>
    %c0_7 = arith.constant 0 : index
    %c0_8 = arith.constant 0 : index
    %9 = vector.load %arg5[%c0_7, %c0_8] : memref<16x512xbf16, #tpu.memory_space<vmem>>, vector<16x512xbf16>
    %cst_9 = arith.constant dense<0.000000e+00> : vector<16x512xf32>
    %10 = tpu.matmul %8, %9, %cst_9 {dimension_numbers = #tpu.dot_dimension_numbers<[1], [0], [0], [1], [0, 0, 1, 1], [], []>} : vector<16x16xbf16>, vector<16x512xbf16>, vector<16x512xf32> -> vector<16x512xf32>
    %c0_10 = arith.constant 0 : index
    %c0_11 = arith.constant 0 : index
    %11 = vector.load %arg6[%c0_10, %c0_11] : memref<1x512xf32, #tpu.memory_space<vmem>>, vector<1x512xf32>
    %12 = vector.broadcast %11 : vector<1x512xf32> to vector<16x512xf32>
    %13 = arith.addf %10, %12 : vector<16x512xf32>
    %cst_12 = arith.constant 0.000000e+00 : f32
    %14 = vector.broadcast %cst_12 : f32 to vector<16x512xf32>
    %15 = arith.cmpf ogt, %6, %14 : vector<16x512xf32>
    %16 = math.exp %6 : vector<16x512xf32>
    %cst_13 = arith.constant 1.000000e+00 : f32
    %17 = vector.broadcast %cst_13 : f32 to vector<16x512xf32>
    %18 = arith.subf %16, %17 : vector<16x512xf32>
    %19 = arith.select %15, %6, %18 : vector<16x512xi1>, vector<16x512xf32>
    %20 = arith.truncf %19 : vector<16x512xf32> to vector<16x512xbf16>
    %c0_14 = arith.constant 0 : index
    %c0_15 = arith.constant 0 : index
    %21 = vector.load %arg7[%c0_14, %c0_15] : memref<512x512xbf16, #tpu.memory_space<vmem>>, vector<512x512xbf16>
    %cst_16 = arith.constant dense<0.000000e+00> : vector<16x512xf32>
    %22 = tpu.matmul %20, %21, %cst_16 {dimension_numbers = #tpu.dot_dimension_numbers<[1], [0], [0], [1], [0, 0, 1, 1], [], []>} : vector<16x512xbf16>, vector<512x512xbf16>, vector<16x512xf32> -> vector<16x512xf32>
    %cst_17 = arith.constant 0.000000e+00 : f32
    %23 = vector.broadcast %cst_17 : f32 to vector<16x512xf32>
    %24 = arith.cmpf ogt, %13, %23 : vector<16x512xf32>
    %25 = math.exp %13 : vector<16x512xf32>
    %cst_18 = arith.constant 1.000000e+00 : f32
    %26 = vector.broadcast %cst_18 : f32 to vector<16x512xf32>
    %27 = arith.subf %25, %26 : vector<16x512xf32>
    %28 = arith.select %24, %13, %27 : vector<16x512xi1>, vector<16x512xf32>
    %29 = arith.truncf %28 : vector<16x512xf32> to vector<16x512xbf16>
    %c0_19 = arith.constant 0 : index
    %c0_20 = arith.constant 0 : index
    %30 = vector.load %arg8[%c0_19, %c0_20] : memref<512x512xbf16, #tpu.memory_space<vmem>>, vector<512x512xbf16>
    %cst_21 = arith.constant dense<0.000000e+00> : vector<16x512xf32>
    %31 = tpu.matmul %29, %30, %cst_21 {dimension_numbers = #tpu.dot_dimension_numbers<[1], [0], [0], [1], [0, 0, 1, 1], [], []>} : vector<16x512xbf16>, vector<512x512xbf16>, vector<16x512xf32> -> vector<16x512xf32>
    %32 = arith.addf %22, %31 : vector<16x512xf32>
    %c0_22 = arith.constant 0 : index
    %c0_23 = arith.constant 0 : index
    %33 = vector.load %arg9[%c0_22, %c0_23] : memref<1x512xf32, #tpu.memory_space<vmem>>, vector<1x512xf32>
    %34 = vector.broadcast %33 : vector<1x512xf32> to vector<16x512xf32>
    %35 = arith.addf %32, %34 : vector<16x512xf32>
    %c0_24 = arith.constant 0 : index
    %c0_25 = arith.constant 0 : index
    %36 = vector.load %arg13[%c0_24, %c0_25] : memref<16x512xf32, #tpu.memory_space<vmem>>, vector<16x512xf32>
    tpu.vector_store %arg13[%c0_24, %c0_25], %35 {strides = array<i32>} : memref<16x512xf32, #tpu.memory_space<vmem>>, vector<16x512xf32>,
    %cst_26 = arith.constant 0.000000e+00 : f32
    %37 = vector.broadcast %cst_26 : f32 to vector<16x512xf32>
    %38 = arith.cmpf ogt, %35, %37 : vector<16x512xf32>
    %39 = math.exp %35 : vector<16x512xf32>
    %cst_27 = arith.constant 1.000000e+00 : f32
    %40 = vector.broadcast %cst_27 : f32 to vector<16x512xf32>
    %41 = arith.subf %39, %40 : vector<16x512xf32>
    %42 = arith.select %38, %35, %41 : vector<16x512xi1>, vector<16x512xf32>
    %43 = arith.truncf %42 : vector<16x512xf32> to vector<16x512xbf16>
    %c0_28 = arith.constant 0 : index
    %c0_29 = arith.constant 0 : index
    %44 = vector.load %arg10[%c0_28, %c0_29] : memref<512x512xbf16, #tpu.memory_space<vmem>>, vector<512x512xbf16>
    %cst_30 = arith.constant dense<0.000000e+00> : vector<16x512xf32>
    %45 = tpu.matmul %43, %44, %cst_30 {dimension_numbers = #tpu.dot_dimension_numbers<[1], [0], [0], [1], [0, 0, 1, 1], [], []>} : vector<16x512xbf16>, vector<512x512xbf16>, vector<16x512xf32> -> vector<16x512xf32>
    %c0_31 = arith.constant 0 : index
    %c0_32 = arith.constant 0 : index
    %46 = vector.load %arg11[%c0_31, %c0_32] : memref<1x512xf32, #tpu.memory_space<vmem>>, vector<1x512xf32>
    %47 = vector.broadcast %46 : vector<1x512xf32> to vector<16x512xf32>
    %48 = arith.addf %45, %47 : vector<16x512xf32>
    %49 = math.tanh %48 : vector<16x512xf32>
    %50 = arith.mulf %49, %49 : vector<16x512xf32>
    %cst_33 = arith.constant dense<0.000000e+00> : vector<16xf32>
    %51 = vector.multi_reduction <add>, %50, %cst_33 [1] : vector<16x512xf32> to vector<16xf32>
    %52 = vector.shape_cast %51 : vector<16xf32> to vector<16x1xf32>
    %53 = math.rsqrt %52 : vector<16x1xf32>
    %54 = vector.broadcast %53 : vector<16x1xf32> to vector<16x512xf32>
    %55 = arith.mulf %49, %54 : vector<16x512xf32>
    %56 = arith.truncf %55 : vector<16x512xf32> to vector<16x512xbf16>
    %c0_34 = arith.constant 0 : index
    %c0_35 = arith.constant 0 : index
    %57 = vector.load %arg14[%c0_34, %c0_35] : memref<16x512xbf16, #tpu.memory_space<vmem>>, vector<16x512xbf16>
    tpu.vector_store %arg14[%c0_34, %c0_35], %56 {strides = array<i32>} : memref<16x512xbf16, #tpu.memory_space<vmem>>, vector<16x512xbf16>,
    %c0_36 = arith.constant 0 : index
    %c0_37 = arith.constant 0 : index
    %58 = vector.load %arg12[%c0_36, %c0_37] : memref<512x512xbf16, #tpu.memory_space<vmem>>, vector<512x512xbf16>
    %cst_38 = arith.constant dense<0.000000e+00> : vector<16x512xf32>
    %59 = tpu.matmul %43, %58, %cst_38 {dimension_numbers = #tpu.dot_dimension_numbers<[1], [0], [0], [1], [0, 0, 1, 1], [], []>} : vector<16x512xbf16>, vector<512x512xbf16>, vector<16x512xf32> -> vector<16x512xf32>
    %60 = arith.truncf %59 : vector<16x512xf32> to vector<16x512xbf16>
    %c0_39 = arith.constant 0 : index
    %c0_40 = arith.constant 0 : index
    %61 = vector.load %arg15[%c0_39, %c0_40] : memref<16x512xbf16, #tpu.memory_space<vmem>>, vector<16x512xbf16>
    tpu.vector_store %arg15[%c0_39, %c0_40], %60 {strides = array<i32>} : memref<16x512xbf16, #tpu.memory_space<vmem>>, vector<16x512xbf16>,
    return
  }
  func.func @transform_0(%arg0: i32) -> (i32, i32) {
    %c0_i32 = arith.constant 0 : i32
    %c0_i32_0 = arith.constant 0 : i32
    return %arg0, %c0_i32 : i32, i32
  }
  func.func @transform_1(%arg0: i32) -> (i32, i32) {
    %c0_i32 = arith.constant 0 : i32
    %c0_i32_0 = arith.constant 0 : i32
    return %arg0, %c0_i32 : i32, i32
  }
  func.func @transform_2(%arg0: i32) -> (i32, i32) {
    %c0_i32 = arith.constant 0 : i32
    %c0_i32_0 = arith.constant 0 : i32
    %c0_i32_1 = arith.constant 0 : i32
    return %c0_i32, %c0_i32_0 : i32, i32
  }
  func.func @transform_3(%arg0: i32) -> (i32, i32) {
    %c0_i32 = arith.constant 0 : i32
    %c0_i32_0 = arith.constant 0 : i32
    %c0_i32_1 = arith.constant 0 : i32
    return %c0_i32, %c0_i32_0 : i32, i32
  }
  func.func @transform_4(%arg0: i32) -> (i32, i32) {
    %c0_i32 = arith.constant 0 : i32
    %c0_i32_0 = arith.constant 0 : i32
    %c0_i32_1 = arith.constant 0 : i32
    return %c0_i32, %c0_i32_0 : i32, i32
  }
  func.func @transform_5(%arg0: i32) -> (i32, i32) {
    %c0_i32 = arith.constant 0 : i32
    %c0_i32_0 = arith.constant 0 : i32
    %c0_i32_1 = arith.constant 0 : i32
    return %c0_i32, %c0_i32_0 : i32, i32
  }
  func.func @transform_6(%arg0: i32) -> (i32, i32) {
    %c0_i32 = arith.constant 0 : i32
    %c0_i32_0 = arith.constant 0 : i32
    %c0_i32_1 = arith.constant 0 : i32
    return %c0_i32, %c0_i32_0 : i32, i32
  }
  func.func @transform_7(%arg0: i32) -> (i32, i32) {
    %c0_i32 = arith.constant 0 : i32
    %c0_i32_0 = arith.constant 0 : i32
    %c0_i32_1 = arith.constant 0 : i32
    return %c0_i32, %c0_i32_0 : i32, i32
  }
  func.func @transform_8(%arg0: i32) -> (i32, i32) {
    %c0_i32 = arith.constant 0 : i32
    %c0_i32_0 = arith.constant 0 : i32
    %c0_i32_1 = arith.constant 0 : i32
    return %c0_i32, %c0_i32_0 : i32, i32
  }
  func.func @transform_9(%arg0: i32) -> (i32, i32) {
    %c0_i32 = arith.constant 0 : i32
    %c0_i32_0 = arith.constant 0 : i32
    %c0_i32_1 = arith.constant 0 : i32
    return %c0_i32, %c0_i32_0 : i32, i32
  }
  func.func @transform_10(%arg0: i32) -> (i32, i32) {
    %c0_i32 = arith.constant 0 : i32
    %c0_i32_0 = arith.constant 0 : i32
    %c0_i32_1 = arith.constant 0 : i32
    return %c0_i32, %c0_i32_0 : i32, i32
  }
  func.func @transform_11(%arg0: i32) -> (i32, i32) {
    %c0_i32 = arith.constant 0 : i32
    %c0_i32_0 = arith.constant 0 : i32
    %c0_i32_1 = arith.constant 0 : i32
    return %c0_i32, %c0_i32_0 : i32, i32
  }
  func.func @transform_12(%arg0: i32) -> (i32, i32) {
    %c0_i32 = arith.constant 0 : i32
    %c0_i32_0 = arith.constant 0 : i32
    return %arg0, %c0_i32 : i32, i32
  }
  func.func @transform_13(%arg0: i32) -> (i32, i32) {
    %c0_i32 = arith.constant 0 : i32
    %c0_i32_0 = arith.constant 0 : i32
    return %arg0, %c0_i32 : i32, i32
  }
  func.func @transform_14(%arg0: i32) -> (i32, i32) {
    %c0_i32 = arith.constant 0 : i32
    %c0_i32_0 = arith.constant 0 : i32
    return %arg0, %c0_i32 : i32, i32
  }
}

</mosaic_0001>

<llo_original>
// kernel: tpu_custom_call.1
$region0: #{tpu_custom_call.1}
  #allocation0 [shape = 'u32[]', space=smem, size = 0x4, offset = 0x4, fixed_abs, tag = 'smem constant byte address 0x4 - core index']
  #allocation1 [shape = 'u32[144,128]{1,0:T(1,128)}', space=vmem, size = 0x12000, scoped, tag = 'internal scratch']
  %s0 = inlined_call_operand.hbm [shape: f32[16,32], index: 0, kind: input, shape index: {}]
  %s1 = inlined_call_operand.hbm [shape: f32[16,16], index: 1, kind: input, shape index: {}]
  %s2 = inlined_call_operand.hbm [shape: bf16[32,512], index: 2, kind: input, shape index: {}]
  %s3 = inlined_call_operand.vmem [shape: f32[1,512], index: 3, kind: input, shape index: {}]
  %s4 = inlined_call_operand.hbm [shape: bf16[16,512], index: 4, kind: input, shape index: {}]
  %s5 = inlined_call_operand.vmem [shape: f32[1,512], index: 5, kind: input, shape index: {}]
  %s6 = inlined_call_operand.hbm [shape: bf16[512,512], index: 6, kind: input, shape index: {}]
  %s7 = inlined_call_operand.hbm [shape: bf16[512,512], index: 7, kind: input, shape index: {}]
  %s8 = inlined_call_operand.vmem [shape: f32[1,512], index: 8, kind: input, shape index: {}]
  %s9 = inlined_call_operand.hbm [shape: bf16[512,512], index: 9, kind: input, shape index: {}]
  %s10 = inlined_call_operand.vmem [shape: f32[1,512], index: 10, kind: input, shape index: {}]
  %s11 = inlined_call_operand.hbm [shape: bf16[512,512], index: 11, kind: input, shape index: {}]
  %s12 = inlined_call_operand.hbm [shape: f32[16,512], index: 12, kind: output, shape index: {0}]
  %s13 = inlined_call_operand.hbm [shape: bf16[16,512], index: 13, kind: output, shape index: {1}]
  %s14 = inlined_call_operand.hbm [shape: bf16[16,512], index: 14, kind: output, shape index: {2}]
  %15 = xla_tuple %s12, %s13, %s14
  %s16 = sld [smem:[#allocation0]]
  $region106: #{tpu_custom_call.1} parent=0
    _
  %s18 = ssub.s32 1, %s16
  %s19 = scalar_select 0, %s18, %s16
  $region1: #{tpu_custom_call.1} parent=0
    #allocation2 [shape = 'u8[8192]{0}', space=vmem, size = 0x2000, scoped, tag = 'input window, operand 0, single buffered']
    #allocation3 [shape = 's32[1]{0}', space=sflag, size = 0x4, scoped, tag = 'scoped memory for tpu_custom_call.1']
    #allocation4 [shape = 's32[1]{0}', space=sflag, size = 0x4, scoped, tag = 'scoped memory for tpu_custom_call.1']
    #allocation5 [shape = 'u8[8192]{0}', space=vmem, size = 0x2000, scoped, tag = 'input window, operand 1, single buffered']
    #allocation6 [shape = 's32[1]{0}', space=sflag, size = 0x4, scoped, tag = 'scoped memory for tpu_custom_call.1']
    #allocation7 [shape = 'u8[32768]{0}', space=vmem, size = 0x8000, scoped, tag = 'input window, operand 2, single buffered']
    #allocation8 [shape = 'u8[16384]{0}', space=vmem, size = 0x4000, scoped, tag = 'input window, operand 4, single buffered']
    #allocation9 [shape = 's32[1]{0}', space=sflag, size = 0x4, scoped, tag = 'scoped memory for tpu_custom_call.1']
    #allocation10 [shape = 'u8[524288]{0}', space=vmem, size = 0x80000, scoped, tag = 'input window, operand 6, single buffered']
    #allocation11 [shape = 'u8[524288]{0}', space=vmem, size = 0x80000, scoped, tag = 'input window, operand 7, single buffered']
    #allocation12 [shape = 's32[1]{0}', space=sflag, size = 0x4, scoped, tag = 'scoped memory for tpu_custom_call.1']
    #allocation13 [shape = 'u8[524288]{0}', space=vmem, size = 0x80000, scoped, tag = 'input window, operand 9, single buffered']
    #allocation14 [shape = 'u8[524288]{0}', space=vmem, size = 0x80000, scoped, tag = 'input window, operand 11, single buffered']
    #allocation15 [shape = 's32[1]{0}', space=sflag, size = 0x4, scoped, tag = 'scoped memory for tpu_custom_call.1']
    #allocation16 [shape = 'u8[32768]{0}', space=vmem, size = 0x8000, scoped, tag = 'output window, operand 0, single buffered']
    #allocation17 [shape = 'u8[16384]{0}', space=vmem, size = 0x4000, scoped, tag = 'output window, operand 1, single buffered']
    #allocation18 [shape = 's32[1]{0}', space=sflag, size = 0x4, scoped, tag = 'scoped memory for tpu_custom_call.1']
    #allocation19 [shape = 'u8[16384]{0}', space=vmem, size = 0x4000, scoped, tag = 'output window, operand 2, single buffered']
    %20 = vsyncpa [#allocation3], 0
    %21 = vsyncpa [#allocation6], 0
    %22 = vsyncpa [#allocation9], 0
    %23 = vsyncpa [#allocation12], 0
    %24 = vsyncpa [#allocation15], 0
    %25 = vsyncpa [#allocation4], 0
    %26 = vsyncpa [#allocation18], 0
    // Predicated region
    $region2: #{tpu_custom_call.1} parent=1 // pred_check
      _
    $region3: #{tpu_custom_call.1} parent=1 // pred_check_branch
      %28 = sbr.rel (0) target = $region5
    $region4: #{tpu_custom_call.1} parent=1 // pred_region
      %s30 = ssub.s32 256, 256
      %31 = vsyncadd [#allocation3], %s30
      %s32 = sshll.u32 [#allocation2], 4
      %s33 = int_to_ptr.vmem [resolvable:$true] %s32
      %38 = dma.hbm_to_vmem [thread:$0]  %s0, 256, %s33, [#allocation3], 128, 128, 8
    $region5: #{tpu_custom_call.1} parent=1 // pred_fallthru
      _
    // Predicated region
    $region6: #{tpu_custom_call.1} parent=1 // pred_check
      _
    $region7: #{tpu_custom_call.1} parent=1 // pred_check_branch
      %40 = sbr.rel (0) target = $region9
    $region8: #{tpu_custom_call.1} parent=1 // pred_region
      %s42 = ssub.s32 256, 256
      %43 = vsyncadd [#allocation6], %s42
      %s44 = sshll.u32 [#allocation5], 4
      %s45 = int_to_ptr.vmem [resolvable:$true] %s44
      %50 = dma.hbm_to_vmem [thread:$0]  %s1, 256, %s45, [#allocation6], 128, 128, 8
    $region9: #{tpu_custom_call.1} parent=1 // pred_fallthru
      _
    // Predicated region
    $region10: #{tpu_custom_call.1} parent=1 // pred_check
      _
    $region11: #{tpu_custom_call.1} parent=1 // pred_check_branch
      %52 = sbr.rel (0) target = $region13
    $region12: #{tpu_custom_call.1} parent=1 // pred_region
      %s54 = ssub.s32 1024, 1024
      %55 = vsyncadd [#allocation6], %s54
      %s56 = sshll.u32 [#allocation7], 4
      %s57 = int_to_ptr.vmem [resolvable:$true] %s56
      %62 = dma.hbm_to_vmem [thread:$0]  %s2, 1024, %s57, [#allocation6], 256, 256, 16
    $region13: #{tpu_custom_call.1} parent=1 // pred_fallthru
      _
    // Predicated region
    $region14: #{tpu_custom_call.1} parent=1 // pred_check
      _
    $region15: #{tpu_custom_call.1} parent=1 // pred_check_branch
      %64 = sbr.rel (0) target = $region17
    $region16: #{tpu_custom_call.1} parent=1 // pred_region
      _
    $region17: #{tpu_custom_call.1} parent=1 // pred_fallthru
      _
    // Predicated region
    $region18: #{tpu_custom_call.1} parent=1 // pred_check
      _
    $region19: #{tpu_custom_call.1} parent=1 // pred_check_branch
      %66 = sbr.rel (0) target = $region21
    $region20: #{tpu_custom_call.1} parent=1 // pred_region
      %s68 = ssub.s32 512, 512
      %69 = vsyncadd [#allocation9], %s68
      %s70 = sshll.u32 [#allocation8], 4
      %s71 = int_to_ptr.vmem [resolvable:$true] %s70
      %76 = dma.hbm_to_vmem [thread:$0]  %s4, 512, %s71, [#allocation9], 256, 256, 16
    $region21: #{tpu_custom_call.1} parent=1 // pred_fallthru
      _
    // Predicated region
    $region22: #{tpu_custom_call.1} parent=1 // pred_check
      _
    $region23: #{tpu_custom_call.1} parent=1 // pred_check_branch
      %78 = sbr.rel (0) target = $region25
    $region24: #{tpu_custom_call.1} parent=1 // pred_region
      _
    $region25: #{tpu_custom_call.1} parent=1 // pred_fallthru
      _
    // Predicated region
    $region26: #{tpu_custom_call.1} parent=1 // pred_check
      _
    $region27: #{tpu_custom_call.1} parent=1 // pred_check_branch
      %80 = sbr.rel (0) target = $region29
    $region28: #{tpu_custom_call.1} parent=1 // pred_region
      %s82 = ssub.s32 16384, 16384
      %83 = vsyncadd [#allocation9], %s82
      %s84 = sshll.u32 [#allocation10], 4
      %s85 = int_to_ptr.vmem [resolvable:$true] %s84
      %90 = dma.hbm_to_vmem [thread:$0]  %s6, 16384, %s85, [#allocation9], 256, 256, 16
    $region29: #{tpu_custom_call.1} parent=1 // pred_fallthru
      _
    // Predicated region
    $region30: #{tpu_custom_call.1} parent=1 // pred_check
      _
    $region31: #{tpu_custom_call.1} parent=1 // pred_check_branch
      %92 = sbr.rel (0) target = $region33
    $region32: #{tpu_custom_call.1} parent=1 // pred_region
      %s94 = ssub.s32 16384, 16384
      %95 = vsyncadd [#allocation12], %s94
      %s96 = sshll.u32 [#allocation11], 4
      %s97 = int_to_ptr.vmem [resolvable:$true] %s96
      %102 = dma.hbm_to_vmem [thread:$0]  %s7, 16384, %s97, [#allocation12], 256, 256, 16
    $region33: #{tpu_custom_call.1} parent=1 // pred_fallthru
      _
    // Predicated region
    $region34: #{tpu_custom_call.1} parent=1 // pred_check
      _
    $region35: #{tpu_custom_call.1} parent=1 // pred_check_branch
      %104 = sbr.rel (0) target = $region37
    $region36: #{tpu_custom_call.1} parent=1 // pred_region
      _
    $region37: #{tpu_custom_call.1} parent=1 // pred_fallthru
      _
    // Predicated region
    $region38: #{tpu_custom_call.1} parent=1 // pred_check
      _
    $region39: #{tpu_custom_call.1} parent=1 // pred_check_branch
      %106 = sbr.rel (0) target = $region41
    $region40: #{tpu_custom_call.1} parent=1 // pred_region
      %s108 = ssub.s32 16384, 16384
      %109 = vsyncadd [#allocation12], %s108
      %s110 = sshll.u32 [#allocation13], 4
      %s111 = int_to_ptr.vmem [resolvable:$true] %s110
      %116 = dma.hbm_to_vmem [thread:$0]  %s9, 16384, %s111, [#allocation12], 256, 256, 16
    $region41: #{tpu_custom_call.1} parent=1 // pred_fallthru
      _
    // Predicated region
    $region42: #{tpu_custom_call.1} parent=1 // pred_check
      _
    $region43: #{tpu_custom_call.1} parent=1 // pred_check_branch
      %118 = sbr.rel (0) target = $region45
    $region44: #{tpu_custom_call.1} parent=1 // pred_region
      _
    $region45: #{tpu_custom_call.1} parent=1 // pred_fallthru
      _
    // Predicated region
    $region46: #{tpu_custom_call.1} parent=1 // pred_check
      _
    $region47: #{tpu_custom_call.1} parent=1 // pred_check_branch
      %120 = sbr.rel (0) target = $region49
    $region48: #{tpu_custom_call.1} parent=1 // pred_region
      %s122 = ssub.s32 16384, 16384
      %123 = vsyncadd [#allocation15], %s122
      %s124 = sshll.u32 [#allocation14], 4
      %s125 = int_to_ptr.vmem [resolvable:$true] %s124
      %130 = dma.hbm_to_vmem [thread:$0]  %s11, 16384, %s125, [#allocation15], 256, 256, 16
    $region49: #{tpu_custom_call.1} parent=1 // pred_fallthru
      _
    // Predicated region
    $region50: #{tpu_custom_call.1} parent=1 // pred_check
      _
    $region51: #{tpu_custom_call.1} parent=1 // pred_check_branch
      %132 = sbr.rel (0) target = $region53
    $region52: #{tpu_custom_call.1} parent=1 // pred_region
      %133 = dma.done [#allocation3], 256
    $region53: #{tpu_custom_call.1} parent=1 // pred_fallthru
      _
    // Predicated region
    $region54: #{tpu_custom_call.1} parent=1 // pred_check
      _
    $region55: #{tpu_custom_call.1} parent=1 // pred_check_branch
      %135 = sbr.rel (0) target = $region57
    $region56: #{tpu_custom_call.1} parent=1 // pred_region
      %136 = dma.done [#allocation6], 256
    $region57: #{tpu_custom_call.1} parent=1 // pred_fallthru
      _
    // Predicated region
    $region58: #{tpu_custom_call.1} parent=1 // pred_check
      _
    $region59: #{tpu_custom_call.1} parent=1 // pred_check_branch
      %138 = sbr.rel (0) target = $region61
    $region60: #{tpu_custom_call.1} parent=1 // pred_region
      %139 = dma.done [#allocation6], 1024
    $region61: #{tpu_custom_call.1} parent=1 // pred_fallthru
      _
    // Predicated region
    $region62: #{tpu_custom_call.1} parent=1 // pred_check
      _
    $region63: #{tpu_custom_call.1} parent=1 // pred_check_branch
      %141 = sbr.rel (0) target = $region65
    $region64: #{tpu_custom_call.1} parent=1 // pred_region
      %142 = dma.done [#allocation9], 512
    $region65: #{tpu_custom_call.1} parent=1 // pred_fallthru
      _
    // Predicated region
    $region66: #{tpu_custom_call.1} parent=1 // pred_check
      _
    $region67: #{tpu_custom_call.1} parent=1 // pred_check_branch
      %144 = sbr.rel (0) target = $region69
    $region68: #{tpu_custom_call.1} parent=1 // pred_region
      %145 = dma.done [#allocation9], 16384
    $region69: #{tpu_custom_call.1} parent=1 // pred_fallthru
      _
    // Predicated region
    $region70: #{tpu_custom_call.1} parent=1 // pred_check
      _
    $region71: #{tpu_custom_call.1} parent=1 // pred_check_branch
      %147 = sbr.rel (0) target = $region73
    $region72: #{tpu_custom_call.1} parent=1 // pred_region
      %148 = dma.done [#allocation12], 16384
    $region73: #{tpu_custom_call.1} parent=1 // pred_fallthru
      _
    // Predicated region
    $region74: #{tpu_custom_call.1} parent=1 // pred_check
      _
    $region75: #{tpu_custom_call.1} parent=1 // pred_check_branch
      %150 = sbr.rel (0) target = $region77
    $region76: #{tpu_custom_call.1} parent=1 // pred_region
      %151 = dma.done [#allocation12], 16384
    $region77: #{tpu_custom_call.1} parent=1 // pred_fallthru
      _
    // Predicated region
    $region78: #{tpu_custom_call.1} parent=1 // pred_check
      _
    $region79: #{tpu_custom_call.1} parent=1 // pred_check_branch
      %153 = sbr.rel (0) target = $region81
    $region80: #{tpu_custom_call.1} parent=1 // pred_region
      %154 = dma.done [#allocation15], 16384
    $region81: #{tpu_custom_call.1} parent=1 // pred_fallthru
      _
    %v156 = vld [vmem:[#allocation2] sm:$0xff]
    %v157 = vld [vmem:[#allocation2 + $0x8] sm:$0xff]
    %v158 = vpack.c.bf16 %v157, %v156
    %v159 = vld [vmem:[#allocation7] sm:$0xff]
    %v160 = vld [vmem:[#allocation7 + $0x8] sm:$0xff]
    %v161 = vld [vmem:[#allocation7 + $0x10] sm:$0xff]
    %v162 = vld [vmem:[#allocation7 + $0x18] sm:$0xff]
    %v163 = vld [vmem:[#allocation7 + $0x20] sm:$0xff]
    %v164 = vld [vmem:[#allocation7 + $0x28] sm:$0xff]
    %v165 = vld [vmem:[#allocation7 + $0x30] sm:$0xff]
    %v166 = vld [vmem:[#allocation7 + $0x38] sm:$0xff]
    %v167 = vld [vmem:[%s3] sm:$0xf]
    %v169 = vlaneseq
    %v170 = vshrl.u32 %v169, 7
    %v171 = vsub.s32 0, %v170
    %v172 = vrot.slane %v167, %v171
    %v173 = vlaneseq
    %v174 = vshrl.u32 %v173, 7
    %v175 = vsub.s32 1, %v174
    %v176 = vrot.slane %v167, %v175
    %v177 = vlaneseq
    %v178 = vshrl.u32 %v177, 7
    %v179 = vsub.s32 2, %v178
    %v180 = vrot.slane %v167, %v179
    %v181 = vlaneseq
    %v182 = vshrl.u32 %v181, 7
    %v183 = vsub.s32 3, %v182
    %v184 = vrot.slane %v167, %v183
    %v197 = vunpack.c.l.b16 %v159
    %v198 = vunpack.c.h.b16 %v159
    %v199 = vunpack.c.l.b16 %v160
    %v200 = vunpack.c.h.b16 %v160
    %v201 = vunpack.c.l.b16 %v161
    %v202 = vunpack.c.h.b16 %v161
    %v203 = vunpack.c.l.b16 %v162
    %v204 = vunpack.c.h.b16 %v162
    %v205 = vunpack.c.l.b16 %v163
    %v206 = vunpack.c.h.b16 %v163
    %v207 = vunpack.c.l.b16 %v164
    %v208 = vunpack.c.h.b16 %v164
    %v209 = vunpack.c.l.b16 %v165
    %v210 = vunpack.c.h.b16 %v165
    %v211 = vunpack.c.l.b16 %v166
    %v212 = vunpack.c.h.b16 %v166
    %v213 = vpack.c.b16 %v201, %v197
    %v214 = vpack.c.b16 %v202, %v198
    %v215 = vpack.c.b16 %v203, %v199
    %v216 = vpack.c.b16 %v204, %v200
    %v217 = vpack.c.b16 %v209, %v205
    %v218 = vpack.c.b16 %v210, %v206
    %v219 = vpack.c.b16 %v211, %v207
    %v220 = vpack.c.b16 %v212, %v208
    %vm229 = vcmask 261120
    %v231 = vsel %vm229, %v158, 0
    %233 = vmatprep.subr.bf16.mxu0 %v214
    %234 = vmatpush1.bf16.msra.mxu0 %v213
    %235 = vmatprep.subr.bf16.mxu0 %v218
    %236 = vmatpush1.bf16.msra.mxu0 %v217
    %237 = vmatprep.subr.bf16.mxu0 0
    %238 = vmatpush1.bf16.msra.mxu0 0
    %239 = vmatprep.subr.bf16.mxu0 0
    %240 = vmatpush1.bf16.msra.mxu0 0
    %241 = vmatprep.subr.bf16.mxu0 0
    %242 = vmatpush1.bf16.msra.mxu0 0
    %243 = vmatprep.subr.bf16.mxu0 0
    %244 = vmatpush1.bf16.msra.mxu0 0
    %245 = vmatprep.subr.bf16.mxu0 0
    %246 = vmatpush1.bf16.msra.mxu0 0
    %247 = vmatprep.subr.bf16.mxu0 0
    %248 = vmatpush1.bf16.msra.mxu0 0
    %249 = vmatprep.subr.bf16.mxu0 0
    %250 = vmatpush1.bf16.msra.mxu0 0
    %251 = vmatprep.subr.bf16.mxu0 0
    %252 = vmatpush1.bf16.msra.mxu0 0
    %253 = vmatprep.subr.bf16.mxu0 0
    %254 = vmatpush1.bf16.msra.mxu0 0
    %255 = vmatprep.subr.bf16.mxu0 0
    %256 = vmatpush1.bf16.msra.mxu0 0
    %257 = vmatprep.subr.bf16.mxu0 0
    %258 = vmatpush1.bf16.msra.mxu0 0
    %259 = vmatprep.subr.bf16.mxu0 0
    %260 = vmatpush1.bf16.msra.mxu0 0
    %261 = vmatprep.subr.bf16.mxu0 0
    %262 = vmatpush1.bf16.msra.mxu0 0
    %263 = vmatprep.subr.bf16.mxu0 0
    %264 = vmatpush1.bf16.msra.mxu0 0
    %265 = vmatprep.mubr.bf16.mxu0 0
    %266 = vmatmul.mubr.bf16.gmra.mrb[0].mxu0 %v231
    %v267 = vpop.f32.mrb[0].mxu0
    %v268 = vadd.f32 %v172, %v267
    %v269 = vpop.f32.mrb[0].mxu0
    %v270 = vadd.f32 %v176, %v269
    %v271 = vpop.f32.mrb[0].mxu0
    %v272 = vadd.f32 %v172, %v271
    %v273 = vpop.f32.mrb[0].mxu0
    %v274 = vadd.f32 %v176, %v273
    %275 = vdwg.mxu0
    %276 = vmatprep.subr.bf16.mxu0 %v216
    %277 = vmatpush1.bf16.msra.mxu0 %v215
    %278 = vmatprep.subr.bf16.mxu0 %v220
    %279 = vmatpush1.bf16.msra.mxu0 %v219
    %280 = vmatprep.subr.bf16.mxu0 0
    %281 = vmatpush1.bf16.msra.mxu0 0
    %282 = vmatprep.subr.bf16.mxu0 0
    %283 = vmatpush1.bf16.msra.mxu0 0
    %284 = vmatprep.subr.bf16.mxu0 0
    %285 = vmatpush1.bf16.msra.mxu0 0
    %286 = vmatprep.subr.bf16.mxu0 0
    %287 = vmatpush1.bf16.msra.mxu0 0
    %288 = vmatprep.subr.bf16.mxu0 0
    %289 = vmatpush1.bf16.msra.mxu0 0
    %290 = vmatprep.subr.bf16.mxu0 0
    %291 = vmatpush1.bf16.msra.mxu0 0
    %292 = vmatprep.subr.bf16.mxu0 0
    %293 = vmatpush1.bf16.msra.mxu0 0
    %294 = vmatprep.subr.bf16.mxu0 0
    %295 = vmatpush1.bf16.msra.mxu0 0
    %296 = vmatprep.subr.bf16.mxu0 0
    %297 = vmatpush1.bf16.msra.mxu0 0
    %298 = vmatprep.subr.bf16.mxu0 0
    %299 = vmatpush1.bf16.msra.mxu0 0
    %300 = vmatprep.subr.bf16.mxu0 0
    %301 = vmatpush1.bf16.msra.mxu0 0
    %302 = vmatprep.subr.bf16.mxu0 0
    %303 = vmatpush1.bf16.msra.mxu0 0
    %304 = vmatprep.subr.bf16.mxu0 0
    %305 = vmatpush1.bf16.msra.mxu0 0
    %306 = vmatprep.subr.bf16.mxu0 0
    %307 = vmatpush1.bf16.msra.mxu0 0
    %308 = vmatprep.mubr.bf16.mxu0 0
    %309 = vmatmul.mubr.bf16.gmra.mrb[0].mxu0 %v231
    %v310 = vpop.f32.mrb[0].mxu0
    %v311 = vadd.f32 %v180, %v310
    %v312 = vpop.f32.mrb[0].mxu0
    %v313 = vadd.f32 %v184, %v312
    %v314 = vpop.f32.mrb[0].mxu0
    %v315 = vadd.f32 %v180, %v314
    %v316 = vpop.f32.mrb[0].mxu0
    %v317 = vadd.f32 %v184, %v316
    %318 = vdwg.mxu0
    %v319 = vld [vmem:[#allocation5] sm:$0xff]
    %v320 = vld [vmem:[#allocation5 + $0x8] sm:$0xff]
    %v321 = vpack.c.bf16 %v320, %v319
    %v322 = vld [vmem:[#allocation8] sm:$0xff]
    %v323 = vld [vmem:[#allocation8 + $0x8] sm:$0xff]
    %v324 = vld [vmem:[#allocation8 + $0x10] sm:$0xff]
    %v325 = vld [vmem:[#allocation8 + $0x18] sm:$0xff]
    %v326 = vld [vmem:[%s5] sm:$0xf]
    %v328 = vlaneseq
    %v329 = vshrl.u32 %v328, 7
    %v330 = vsub.s32 0, %v329
    %v331 = vrot.slane %v326, %v330
    %v332 = vlaneseq
    %v333 = vshrl.u32 %v332, 7
    %v334 = vsub.s32 1, %v333
    %v335 = vrot.slane %v326, %v334
    %v336 = vlaneseq
    %v337 = vshrl.u32 %v336, 7
    %v338 = vsub.s32 2, %v337
    %v339 = vrot.slane %v326, %v338
    %v340 = vlaneseq
    %v341 = vshrl.u32 %v340, 7
    %v342 = vsub.s32 3, %v341
    %v343 = vrot.slane %v326, %v342
    %v352 = vunpack.c.l.b16 %v322
    %v353 = vunpack.c.h.b16 %v322
    %v354 = vunpack.c.l.b16 %v323
    %v355 = vunpack.c.h.b16 %v323
    %v356 = vunpack.c.l.b16 %v324
    %v357 = vunpack.c.h.b16 %v324
    %v358 = vunpack.c.l.b16 %v325
    %v359 = vunpack.c.h.b16 %v325
    %v360 = vpack.c.b16 %v356, %v352
    %v361 = vpack.c.b16 %v357, %v353
    %v362 = vpack.c.b16 %v358, %v354
    %v363 = vpack.c.b16 %v359, %v355
    %vm368 = vcmask 130048
    %v370 = vsel %vm368, %v321, 0
    %372 = vmatprep.subr.bf16.mxu0 %v361
    %373 = vmatpush1.bf16.msra.mxu0 %v360
    %374 = vmatprep.subr.bf16.mxu0 0
    %375 = vmatpush1.bf16.msra.mxu0 0
    %376 = vmatprep.subr.bf16.mxu0 0
    %377 = vmatpush1.bf16.msra.mxu0 0
    %378 = vmatprep.subr.bf16.mxu0 0
    %379 = vmatpush1.bf16.msra.mxu0 0
    %380 = vmatprep.subr.bf16.mxu0 0
    %381 = vmatpush1.bf16.msra.mxu0 0
    %382 = vmatprep.subr.bf16.mxu0 0
    %383 = vmatpush1.bf16.msra.mxu0 0
    %384 = vmatprep.subr.bf16.mxu0 0
    %385 = vmatpush1.bf16.msra.mxu0 0
    %386 = vmatprep.subr.bf16.mxu0 0
    %387 = vmatpush1.bf16.msra.mxu0 0
    %388 = vmatprep.subr.bf16.mxu0 0
    %389 = vmatpush1.bf16.msra.mxu0 0
    %390 = vmatprep.subr.bf16.mxu0 0
    %391 = vmatpush1.bf16.msra.mxu0 0
    %392 = vmatprep.subr.bf16.mxu0 0
    %393 = vmatpush1.bf16.msra.mxu0 0
    %394 = vmatprep.subr.bf16.mxu0 0
    %395 = vmatpush1.bf16.msra.mxu0 0
    %396 = vmatprep.subr.bf16.mxu0 0
    %397 = vmatpush1.bf16.msra.mxu0 0
    %398 = vmatprep.subr.bf16.mxu0 0
    %399 = vmatpush1.bf16.msra.mxu0 0
    %400 = vmatprep.subr.bf16.mxu0 0
    %401 = vmatpush1.bf16.msra.mxu0 0
    %402 = vmatprep.subr.bf16.mxu0 0
    %403 = vmatpush1.bf16.msra.mxu0 0
    %404 = vmatprep.mubr.bf16.mxu0 0
    %405 = vmatmul.mubr.bf16.gmra.mrb[0].mxu0 %v370
    %v406 = vpop.f32.mrb[0].mxu0
    %v407 = vadd.f32 %v331, %v406
    %v408 = vpop.f32.mrb[0].mxu0
    %v409 = vadd.f32 %v335, %v408
    %v410 = vpop.f32.mrb[0].mxu0
    %v411 = vadd.f32 %v331, %v410
    %v412 = vpop.f32.mrb[0].mxu0
    %v413 = vadd.f32 %v335, %v412
    %414 = vdwg.mxu0
    %415 = vmatprep.subr.bf16.mxu0 %v363
    %416 = vmatpush1.bf16.msra.mxu0 %v362
    %417 = vmatprep.subr.bf16.mxu0 0
    %418 = vmatpush1.bf16.msra.mxu0 0
    %419 = vmatprep.subr.bf16.mxu0 0
    %420 = vmatpush1.bf16.msra.mxu0 0
    %421 = vmatprep.subr.bf16.mxu0 0
    %422 = vmatpush1.bf16.msra.mxu0 0
    %423 = vmatprep.subr.bf16.mxu0 0
    %424 = vmatpush1.bf16.msra.mxu0 0
    %425 = vmatprep.subr.bf16.mxu0 0
    %426 = vmatpush1.bf16.msra.mxu0 0
    %427 = vmatprep.subr.bf16.mxu0 0
    %428 = vmatpush1.bf16.msra.mxu0 0
    %429 = vmatprep.subr.bf16.mxu0 0
    %430 = vmatpush1.bf16.msra.mxu0 0
    %431 = vmatprep.subr.bf16.mxu0 0
    %432 = vmatpush1.bf16.msra.mxu0 0
    %433 = vmatprep.subr.bf16.mxu0 0
    %434 = vmatpush1.bf16.msra.mxu0 0
    %435 = vmatprep.subr.bf16.mxu0 0
    %436 = vmatpush1.bf16.msra.mxu0 0
    %437 = vmatprep.subr.bf16.mxu0 0
    %438 = vmatpush1.bf16.msra.mxu0 0
    %439 = vmatprep.subr.bf16.mxu0 0
    %440 = vmatpush1.bf16.msra.mxu0 0
    %441 = vmatprep.subr.bf16.mxu0 0
    %442 = vmatpush1.bf16.msra.mxu0 0
    %443 = vmatprep.subr.bf16.mxu0 0
    %444 = vmatpush1.bf16.msra.mxu0 0
    %445 = vmatprep.subr.bf16.mxu0 0
    %446 = vmatpush1.bf16.msra.mxu0 0
    %447 = vmatprep.mubr.bf16.mxu0 0
    %448 = vmatmul.mubr.bf16.gmra.mrb[0].mxu0 %v370
    %v449 = vpop.f32.mrb[0].mxu0
    %v450 = vadd.f32 %v339, %v449
    %v451 = vpop.f32.mrb[0].mxu0
    %v452 = vadd.f32 %v343, %v451
    %v453 = vpop.f32.mrb[0].mxu0
    %v454 = vadd.f32 %v339, %v453
    %v455 = vpop.f32.mrb[0].mxu0
    %v456 = vadd.f32 %v343, %v455
    %457 = vdwg.mxu0
    %vm458 = vcmp.gt.f32.partialorder %v268, 0.0
    %vm459 = vcmp.gt.f32.partialorder %v270, 0.0
    %vm460 = vcmp.gt.f32.partialorder %v311, 0.0
    %vm461 = vcmp.gt.f32.partialorder %v313, 0.0
    %vm462 = vcmp.gt.f32.partialorder %v272, 0.0
    %vm463 = vcmp.gt.f32.partialorder %v274, 0.0
    %vm464 = vcmp.gt.f32.partialorder %v315, 0.0
    %vm465 = vcmp.gt.f32.partialorder %v317, 0.0
    %v466 = vmul.f32 %v268, 1.442695
    %v467 = vpow.pop %v466
    %v468 = vmul.f32 %v270, 1.442695
    %v469 = vpow.pop %v468
    %v470 = vmul.f32 %v311, 1.442695
    %v471 = vpow.pop %v470
    %v472 = vmul.f32 %v313, 1.442695
    %v473 = vpow.pop %v472
    %v474 = vmul.f32 %v272, 1.442695
    %v475 = vpow.pop %v474
    %v476 = vmul.f32 %v274, 1.442695
    %v477 = vpow.pop %v476
    %v478 = vmul.f32 %v315, 1.442695
    %v479 = vpow.pop %v478
    %v480 = vmul.f32 %v317, 1.442695
    %v481 = vpow.pop %v480
    %v482 = vsub.f32 %v467, 1.0
    %v483 = vsub.f32 %v469, 1.0
    %v484 = vsub.f32 %v471, 1.0
    %v485 = vsub.f32 %v473, 1.0
    %v486 = vsub.f32 %v475, 1.0
    %v487 = vsub.f32 %v477, 1.0
    %v488 = vsub.f32 %v479, 1.0
    %v489 = vsub.f32 %v481, 1.0
    %v490 = vsel %vm458, %v268, %v482
    %v491 = vsel %vm459, %v270, %v483
    %v492 = vsel %vm460, %v311, %v484
    %v493 = vsel %vm461, %v313, %v485
    %v494 = vsel %vm462, %v272, %v486
    %v495 = vsel %vm463, %v274, %v487
    %v496 = vsel %vm464, %v315, %v488
    %v497 = vsel %vm465, %v317, %v489
    %v498 = vpack.c.bf16 %v494, %v490
    %v499 = vpack.c.bf16 %v495, %v491
    %v500 = vpack.c.bf16 %v496, %v492
    %v501 = vpack.c.bf16 %v497, %v493
    %v502 = vld [vmem:[#allocation10] sm:$0xff]
    %v503 = vld [vmem:[#allocation10 + $0x8] sm:$0xff]
    %v504 = vld [vmem:[#allocation10 + $0x10] sm:$0xff]
    %v505 = vld [vmem:[#allocation10 + $0x18] sm:$0xff]
    %v506 = vld [vmem:[#allocation10 + $0x20] sm:$0xff]
    %v507 = vld [vmem:[#allocation10 + $0x28] sm:$0xff]
    %v508 = vld [vmem:[#allocation10 + $0x30] sm:$0xff]
    %v509 = vld [vmem:[#allocation10 + $0x38] sm:$0xff]
    %v510 = vld [vmem:[#allocation10 + $0x40] sm:$0xff]
    %v511 = vld [vmem:[#allocation10 + $0x48] sm:$0xff]
    %v512 = vld [vmem:[#allocation10 + $0x50] sm:$0xff]
    %v513 = vld [vmem:[#allocation10 + $0x58] sm:$0xff]
    %v514 = vld [vmem:[#allocation10 + $0x60] sm:$0xff]
    %v515 = vld [vmem:[#allocation10 + $0x68] sm:$0xff]
    %v516 = vld [vmem:[#allocation10 + $0x70] sm:$0xff]
    %v517 = vld [vmem:[#allocation10 + $0x78] sm:$0xff]
    %v518 = vld [vmem:[#allocation10 + $0x80] sm:$0xff]
    %v519 = vld [vmem:[#allocation10 + $0x88] sm:$0xff]
    %v520 = vld [vmem:[#allocation10 + $0x90] sm:$0xff]
    %v521 = vld [vmem:[#allocation10 + $0x98] sm:$0xff]
    %v522 = vld [vmem:[#allocation10 + $0xa0] sm:$0xff]
    %v523 = vld [vmem:[#allocation10 + $0xa8] sm:$0xff]
    %v524 = vld [vmem:[#allocation10 + $0xb0] sm:$0xff]
    %v525 = vld [vmem:[#allocation10 + $0xb8] sm:$0xff]
    %v526 = vld [vmem:[#allocation10 + $0xc0] sm:$0xff]
    %v527 = vld [vmem:[#allocation10 + $0xc8] sm:$0xff]
    %v528 = vld [vmem:[#allocation10 + $0xd0] sm:$0xff]
    %v529 = vld [vmem:[#allocation10 + $0xd8] sm:$0xff]
    %v530 = vld [vmem:[#allocation10 + $0xe0] sm:$0xff]
    %v531 = vld [vmem:[#allocation10 + $0xe8] sm:$0xff]
    %v532 = vld [vmem:[#allocation10 + $0xf0] sm:$0xff]
    %v533 = vld [vmem:[#allocation10 + $0xf8] sm:$0xff]
    %v534 = vld [vmem:[#allocation10 + $0x100] sm:$0xff]
    %v535 = vld [vmem:[#allocation10 + $0x108] sm:$0xff]
    %v536 = vld [vmem:[#allocation10 + $0x110] sm:$0xff]
    %v537 = vld [vmem:[#allocation10 + $0x118] sm:$0xff]
    %v538 = vld [vmem:[#allocation10 + $0x120] sm:$0xff]
    %v539 = vld [vmem:[#allocation10 + $0x128] sm:$0xff]
    %v540 = vld [vmem:[#allocation10 + $0x130] sm:$0xff]
    %v541 = vld [vmem:[#allocation10 + $0x138] sm:$0xff]
    %v542 = vld [vmem:[#allocation10 + $0x140] sm:$0xff]
    %v543 = vld [vmem:[#allocation10 + $0x148] sm:$0xff]
    %v544 = vld [vmem:[#allocation10 + $0x150] sm:$0xff]
    %v545 = vld [vmem:[#allocation10 + $0x158] sm:$0xff]
    %v546 = vld [vmem:[#allocation10 + $0x160] sm:$0xff]
    %v547 = vld [vmem:[#allocation10 + $0x168] sm:$0xff]
    %v548 = vld [vmem:[#allocation10 + $0x170] sm:$0xff]
    %v549 = vld [vmem:[#allocation10 + $0x178] sm:$0xff]
    %v550 = vld [vmem:[#allocation10 + $0x180] sm:$0xff]
    %v551 = vld [vmem:[#allocation10 + $0x188] sm:$0xff]
    %v552 = vld [vmem:[#allocation10 + $0x190] sm:$0xff]
    %v553 = vld [vmem:[#allocation10 + $0x198] sm:$0xff]
    %v554 = vld [vmem:[#allocation10 + $0x1a0] sm:$0xff]
    %v555 = vld [vmem:[#allocation10 + $0x1a8] sm:$0xff]
    %v556 = vld [vmem:[#allocation10 + $0x1b0] sm:$0xff]
    %v557 = vld [vmem:[#allocation10 + $0x1b8] sm:$0xff]
    %v558 = vld [vmem:[#allocation10 + $0x1c0] sm:$0xff]
    %v559 = vld [vmem:[#allocation10 + $0x1c8] sm:$0xff]
    %v560 = vld [vmem:[#allocation10 + $0x1d0] sm:$0xff]
    %v561 = vld [vmem:[#allocation10 + $0x1d8] sm:$0xff]
    %v562 = vld [vmem:[#allocation10 + $0x1e0] sm:$0xff]
    %v563 = vld [vmem:[#allocation10 + $0x1e8] sm:$0xff]
    %v564 = vld [vmem:[#allocation10 + $0x1f0] sm:$0xff]
    %v565 = vld [vmem:[#allocation10 + $0x1f8] sm:$0xff]
    %v566 = vld [vmem:[#allocation10 + $0x200] sm:$0xff]
    %v567 = vld [vmem:[#allocation10 + $0x208] sm:$0xff]
    %v568 = vld [vmem:[#allocation10 + $0x210] sm:$0xff]
    %v569 = vld [vmem:[#allocation10 + $0x218] sm:$0xff]
    %v570 = vld [vmem:[#allocation10 + $0x220] sm:$0xff]
    %v571 = vld [vmem:[#allocation10 + $0x228] sm:$0xff]
    %v572 = vld [vmem:[#allocation10 + $0x230] sm:$0xff]
    %v573 = vld [vmem:[#allocation10 + $0x238] sm:$0xff]
    %v574 = vld [vmem:[#allocation10 + $0x240] sm:$0xff]
    %v575 = vld [vmem:[#allocation10 + $0x248] sm:$0xff]
    %v576 = vld [vmem:[#allocation10 + $0x250] sm:$0xff]
    %v577 = vld [vmem:[#allocation10 + $0x258] sm:$0xff]
    %v578 = vld [vmem:[#allocation10 + $0x260] sm:$0xff]
    %v579 = vld [vmem:[#allocation10 + $0x268] sm:$0xff]
    %v580 = vld [vmem:[#allocation10 + $0x270] sm:$0xff]
    %v581 = vld [vmem:[#allocation10 + $0x278] sm:$0xff]
    %v582 = vld [vmem:[#allocation10 + $0x280] sm:$0xff]
    %v583 = vld [vmem:[#allocation10 + $0x288] sm:$0xff]
    %v584 = vld [vmem:[#allocation10 + $0x290] sm:$0xff]
    %v585 = vld [vmem:[#allocation10 + $0x298] sm:$0xff]
    %v586 = vld [vmem:[#allocation10 + $0x2a0] sm:$0xff]
    %v587 = vld [vmem:[#allocation10 + $0x2a8] sm:$0xff]
    %v588 = vld [vmem:[#allocation10 + $0x2b0] sm:$0xff]
    %v589 = vld [vmem:[#allocation10 + $0x2b8] sm:$0xff]
    %v590 = vld [vmem:[#allocation10 + $0x2c0] sm:$0xff]
    %v591 = vld [vmem:[#allocation10 + $0x2c8] sm:$0xff]
    %v592 = vld [vmem:[#allocation10 + $0x2d0] sm:$0xff]
    %v593 = vld [vmem:[#allocation10 + $0x2d8] sm:$0xff]
    %v594 = vld [vmem:[#allocation10 + $0x2e0] sm:$0xff]
    %v595 = vld [vmem:[#allocation10 + $0x2e8] sm:$0xff]
    %v596 = vld [vmem:[#allocation10 + $0x2f0] sm:$0xff]
    %v597 = vld [vmem:[#allocation10 + $0x2f8] sm:$0xff]
    %v598 = vld [vmem:[#allocation10 + $0x300] sm:$0xff]
    %v599 = vld [vmem:[#allocation10 + $0x308] sm:$0xff]
    %v600 = vld [vmem:[#allocation10 + $0x310] sm:$0xff]
    %v601 = vld [vmem:[#allocation10 + $0x318] sm:$0xff]
    %v602 = vld [vmem:[#allocation10 + $0x320] sm:$0xff]
    %v603 = vld [vmem:[#allocation10 + $0x328] sm:$0xff]
    %v604 = vld [vmem:[#allocation10 + $0x330] sm:$0xff]
    %v605 = vld [vmem:[#allocation10 + $0x338] sm:$0xff]
    %v606 = vld [vmem:[#allocation10 + $0x340] sm:$0xff]
    %v607 = vld [vmem:[#allocation10 + $0x348] sm:$0xff]
    %v608 = vld [vmem:[#allocation10 + $0x350] sm:$0xff]
    %v609 = vld [vmem:[#allocation10 + $0x358] sm:$0xff]
    %v610 = vld [vmem:[#allocation10 + $0x360] sm:$0xff]
    %v611 = vld [vmem:[#allocation10 + $0x368] sm:$0xff]
    %v612 = vld [vmem:[#allocation10 + $0x370] sm:$0xff]
    %v613 = vld [vmem:[#allocation10 + $0x378] sm:$0xff]
    %v614 = vld [vmem:[#allocation10 + $0x380] sm:$0xff]
    %v615 = vld [vmem:[#allocation10 + $0x388] sm:$0xff]
    %v616 = vld [vmem:[#allocation10 + $0x390] sm:$0xff]
    %v617 = vld [vmem:[#allocation10 + $0x398] sm:$0xff]
    %v618 = vld [vmem:[#allocation10 + $0x3a0] sm:$0xff]
    %v619 = vld [vmem:[#allocation10 + $0x3a8] sm:$0xff]
    %v620 = vld [vmem:[#allocation10 + $0x3b0] sm:$0xff]
    %v621 = vld [vmem:[#allocation10 + $0x3b8] sm:$0xff]
    %v622 = vld [vmem:[#allocation10 + $0x3c0] sm:$0xff]
    %v623 = vld [vmem:[#allocation10 + $0x3c8] sm:$0xff]
    %v624 = vld [vmem:[#allocation10 + $0x3d0] sm:$0xff]
    %v625 = vld [vmem:[#allocation10 + $0x3d8] sm:$0xff]
    %v626 = vld [vmem:[#allocation10 + $0x3e0] sm:$0xff]
    %v627 = vld [vmem:[#allocation10 + $0x3e8] sm:$0xff]
    %v628 = vld [vmem:[#allocation10 + $0x3f0] sm:$0xff]
    %v629 = vld [vmem:[#allocation10 + $0x3f8] sm:$0xff]
    %vm630 = vcmp.gt.f32.partialorder %v407, 0.0
    %vm631 = vcmp.gt.f32.partialorder %v409, 0.0
    %vm632 = vcmp.gt.f32.partialorder %v450, 0.0
    %vm633 = vcmp.gt.f32.partialorder %v452, 0.0
    %vm634 = vcmp.gt.f32.partialorder %v411, 0.0
    %vm635 = vcmp.gt.f32.partialorder %v413, 0.0
    %vm636 = vcmp.gt.f32.partialorder %v454, 0.0
    %vm637 = vcmp.gt.f32.partialorder %v456, 0.0
    %v638 = vmul.f32 %v407, 1.442695
    %v639 = vpow.pop %v638
    %v640 = vmul.f32 %v409, 1.442695
    %v641 = vpow.pop %v640
    %v642 = vmul.f32 %v450, 1.442695
    %v643 = vpow.pop %v642
    %v644 = vmul.f32 %v452, 1.442695
    %v645 = vpow.pop %v644
    %v646 = vmul.f32 %v411, 1.442695
    %v647 = vpow.pop %v646
    %v648 = vmul.f32 %v413, 1.442695
    %v649 = vpow.pop %v648
    %v650 = vmul.f32 %v454, 1.442695
    %v651 = vpow.pop %v650
    %v652 = vmul.f32 %v456, 1.442695
    %v653 = vpow.pop %v652
    %v654 = vsub.f32 %v639, 1.0
    %v655 = vsub.f32 %v641, 1.0
    %v656 = vsub.f32 %v643, 1.0
    %v657 = vsub.f32 %v645, 1.0
    %v658 = vsub.f32 %v647, 1.0
    %v659 = vsub.f32 %v649, 1.0
    %v660 = vsub.f32 %v651, 1.0
    %v661 = vsub.f32 %v653, 1.0
    %v662 = vsel %vm630, %v407, %v654
    %v663 = vsel %vm631, %v409, %v655
    %v664 = vsel %vm632, %v450, %v656
    %v665 = vsel %vm633, %v452, %v657
    %v666 = vsel %vm634, %v411, %v658
    %v667 = vsel %vm635, %v413, %v659
    %v668 = vsel %vm636, %v454, %v660
    %v669 = vsel %vm637, %v456, %v661
    %v670 = vpack.c.bf16 %v666, %v662
    %v671 = vpack.c.bf16 %v667, %v663
    %v672 = vpack.c.bf16 %v668, %v664
    %v673 = vpack.c.bf16 %v669, %v665
    %v674 = vld [vmem:[#allocation11] sm:$0xff]
    %v675 = vld [vmem:[#allocation11 + $0x8] sm:$0xff]
    %v676 = vld [vmem:[#allocation11 + $0x10] sm:$0xff]
    %v677 = vld [vmem:[#allocation11 + $0x18] sm:$0xff]
    %v678 = vld [vmem:[#allocation11 + $0x20] sm:$0xff]
    %v679 = vld [vmem:[#allocation11 + $0x28] sm:$0xff]
    %v680 = vld [vmem:[#allocation11 + $0x30] sm:$0xff]
    %v681 = vld [vmem:[#allocation11 + $0x38] sm:$0xff]
    %v682 = vld [vmem:[#allocation11 + $0x40] sm:$0xff]
    %v683 = vld [vmem:[#allocation11 + $0x48] sm:$0xff]
    %v684 = vld [vmem:[#allocation11 + $0x50] sm:$0xff]
    %v685 = vld [vmem:[#allocation11 + $0x58] sm:$0xff]
    %v686 = vld [vmem:[#allocation11 + $0x60] sm:$0xff]
    %v687 = vld [vmem:[#allocation11 + $0x68] sm:$0xff]
    %v688 = vld [vmem:[#allocation11 + $0x70] sm:$0xff]
    %v689 = vld [vmem:[#allocation11 + $0x78] sm:$0xff]
    %v690 = vld [vmem:[#allocation11 + $0x80] sm:$0xff]
    %v691 = vld [vmem:[#allocation11 + $0x88] sm:$0xff]
    %v692 = vld [vmem:[#allocation11 + $0x90] sm:$0xff]
    %v693 = vld [vmem:[#allocation11 + $0x98] sm:$0xff]
    %v694 = vld [vmem:[#allocation11 + $0xa0] sm:$0xff]
    %v695 = vld [vmem:[#allocation11 + $0xa8] sm:$0xff]
    %v696 = vld [vmem:[#allocation11 + $0xb0] sm:$0xff]
    %v697 = vld [vmem:[#allocation11 + $0xb8] sm:$0xff]
    %v698 = vld [vmem:[#allocation11 + $0xc0] sm:$0xff]
    %v699 = vld [vmem:[#allocation11 + $0xc8] sm:$0xff]
    %v700 = vld [vmem:[#allocation11 + $0xd0] sm:$0xff]
    %v701 = vld [vmem:[#allocation11 + $0xd8] sm:$0xff]
    %v702 = vld [vmem:[#allocation11 + $0xe0] sm:$0xff]
    %v703 = vld [vmem:[#allocation11 + $0xe8] sm:$0xff]
    %v704 = vld [vmem:[#allocation11 + $0xf0] sm:$0xff]
    %v705 = vld [vmem:[#allocation11 + $0xf8] sm:$0xff]
    %v706 = vld [vmem:[#allocation11 + $0x100] sm:$0xff]
    %v707 = vld [vmem:[#allocation11 + $0x108] sm:$0xff]
    %v708 = vld [vmem:[#allocation11 + $0x110] sm:$0xff]
    %v709 = vld [vmem:[#allocation11 + $0x118] sm:$0xff]
    %v710 = vld [vmem:[#allocation11 + $0x120] sm:$0xff]
    %v711 = vld [vmem:[#allocation11 + $0x128] sm:$0xff]
    %v712 = vld [vmem:[#allocation11 + $0x130] sm:$0xff]
    %v713 = vld [vmem:[#allocation11 + $0x138] sm:$0xff]
    %v714 = vld [vmem:[#allocation11 + $0x140] sm:$0xff]
    %v715 = vld [vmem:[#allocation11 + $0x148] sm:$0xff]
    %v716 = vld [vmem:[#allocation11 + $0x150] sm:$0xff]
    %v717 = vld [vmem:[#allocation11 + $0x158] sm:$0xff]
    %v718 = vld [vmem:[#allocation11 + $0x160] sm:$0xff]
    %v719 = vld [vmem:[#allocation11 + $0x168] sm:$0xff]
    %v720 = vld [vmem:[#allocation11 + $0x170] sm:$0xff]
    %v721 = vld [vmem:[#allocation11 + $0x178] sm:$0xff]
    %v722 = vld [vmem:[#allocation11 + $0x180] sm:$0xff]
    %v723 = vld [vmem:[#allocation11 + $0x188] sm:$0xff]
    %v724 = vld [vmem:[#allocation11 + $0x190] sm:$0xff]
    %v725 = vld [vmem:[#allocation11 + $0x198] sm:$0xff]
    %v726 = vld [vmem:[#allocation11 + $0x1a0] sm:$0xff]
    %v727 = vld [vmem:[#allocation11 + $0x1a8] sm:$0xff]
    %v728 = vld [vmem:[#allocation11 + $0x1b0] sm:$0xff]
    %v729 = vld [vmem:[#allocation11 + $0x1b8] sm:$0xff]
    %v730 = vld [vmem:[#allocation11 + $0x1c0] sm:$0xff]
    %v731 = vld [vmem:[#allocation11 + $0x1c8] sm:$0xff]
    %v732 = vld [vmem:[#allocation11 + $0x1d0] sm:$0xff]
    %v733 = vld [vmem:[#allocation11 + $0x1d8] sm:$0xff]
    %v734 = vld [vmem:[#allocation11 + $0x1e0] sm:$0xff]
    %v735 = vld [vmem:[#allocation11 + $0x1e8] sm:$0xff]
    %v736 = vld [vmem:[#allocation11 + $0x1f0] sm:$0xff]
    %v737 = vld [vmem:[#allocation11 + $0x1f8] sm:$0xff]
    %v738 = vld [vmem:[#allocation11 + $0x200] sm:$0xff]
    %v739 = vld [vmem:[#allocation11 + $0x208] sm:$0xff]
    %v740 = vld [vmem:[#allocation11 + $0x210] sm:$0xff]
    %v741 = vld [vmem:[#allocation11 + $0x218] sm:$0xff]
    %v742 = vld [vmem:[#allocation11 + $0x220] sm:$0xff]
    %v743 = vld [vmem:[#allocation11 + $0x228] sm:$0xff]
    %v744 = vld [vmem:[#allocation11 + $0x230] sm:$0xff]
    %v745 = vld [vmem:[#allocation11 + $0x238] sm:$0xff]
    %v746 = vld [vmem:[#allocation11 + $0x240] sm:$0xff]
    %v747 = vld [vmem:[#allocation11 + $0x248] sm:$0xff]
    %v748 = vld [vmem:[#allocation11 + $0x250] sm:$0xff]
    %v749 = vld [vmem:[#allocation11 + $0x258] sm:$0xff]
    %v750 = vld [vmem:[#allocation11 + $0x260] sm:$0xff]
    %v751 = vld [vmem:[#allocation11 + $0x268] sm:$0xff]
    %v752 = vld [vmem:[#allocation11 + $0x270] sm:$0xff]
    %v753 = vld [vmem:[#allocation11 + $0x278] sm:$0xff]
    %v754 = vld [vmem:[#allocation11 + $0x280] sm:$0xff]
    %v755 = vld [vmem:[#allocation11 + $0x288] sm:$0xff]
    %v756 = vld [vmem:[#allocation11 + $0x290] sm:$0xff]
    %v757 = vld [vmem:[#allocation11 + $0x298] sm:$0xff]
    %v758 = vld [vmem:[#allocation11 + $0x2a0] sm:$0xff]
    %v759 = vld [vmem:[#allocation11 + $0x2a8] sm:$0xff]
    %v760 = vld [vmem:[#allocation11 + $0x2b0] sm:$0xff]
    %v761 = vld [vmem:[#allocation11 + $0x2b8] sm:$0xff]
    %v762 = vld [vmem:[#allocation11 + $0x2c0] sm:$0xff]
    %v763 = vld [vmem:[#allocation11 + $0x2c8] sm:$0xff]
    %v764 = vld [vmem:[#allocation11 + $0x2d0] sm:$0xff]
    %v765 = vld [vmem:[#allocation11 + $0x2d8] sm:$0xff]
    %v766 = vld [vmem:[#allocation11 + $0x2e0] sm:$0xff]
    %v767 = vld [vmem:[#allocation11 + $0x2e8] sm:$0xff]
    %v768 = vld [vmem:[#allocation11 + $0x2f0] sm:$0xff]
    %v769 = vld [vmem:[#allocation11 + $0x2f8] sm:$0xff]
    %v770 = vld [vmem:[#allocation11 + $0x300] sm:$0xff]
    %v771 = vld [vmem:[#allocation11 + $0x308] sm:$0xff]
    %v772 = vld [vmem:[#allocation11 + $0x310] sm:$0xff]
    %v773 = vld [vmem:[#allocation11 + $0x318] sm:$0xff]
    %v774 = vld [vmem:[#allocation11 + $0x320] sm:$0xff]
    %v775 = vld [vmem:[#allocation11 + $0x328] sm:$0xff]
    %v776 = vld [vmem:[#allocation11 + $0x330] sm:$0xff]
    %v777 = vld [vmem:[#allocation11 + $0x338] sm:$0xff]
    %v778 = vld [vmem:[#allocation11 + $0x340] sm:$0xff]
    %v779 = vld [vmem:[#allocation11 + $0x348] sm:$0xff]
    %v780 = vld [vmem:[#allocation11 + $0x350] sm:$0xff]
    %v781 = vld [vmem:[#allocation11 + $0x358] sm:$0xff]
    %v782 = vld [vmem:[#allocation11 + $0x360] sm:$0xff]
    %v783 = vld [vmem:[#allocation11 + $0x368] sm:$0xff]
    %v784 = vld [vmem:[#allocation11 + $0x370] sm:$0xff]
    %v785 = vld [vmem:[#allocation11 + $0x378] sm:$0xff]
    %v786 = vld [vmem:[#allocation11 + $0x380] sm:$0xff]
    %v787 = vld [vmem:[#allocation11 + $0x388] sm:$0xff]
    %v788 = vld [vmem:[#allocation11 + $0x390] sm:$0xff]
    %v789 = vld [vmem:[#allocation11 + $0x398] sm:$0xff]
    %v790 = vld [vmem:[#allocation11 + $0x3a0] sm:$0xff]
    %v791 = vld [vmem:[#allocation11 + $0x3a8] sm:$0xff]
    %v792 = vld [vmem:[#allocation11 + $0x3b0] sm:$0xff]
    %v793 = vld [vmem:[#allocation11 + $0x3b8] sm:$0xff]
    %v794 = vld [vmem:[#allocation11 + $0x3c0] sm:$0xff]
    %v795 = vld [vmem:[#allocation11 + $0x3c8] sm:$0xff]
    %v796 = vld [vmem:[#allocation11 + $0x3d0] sm:$0xff]
    %v797 = vld [vmem:[#allocation11 + $0x3d8] sm:$0xff]
    %v798 = vld [vmem:[#allocation11 + $0x3e0] sm:$0xff]
    %v799 = vld [vmem:[#allocation11 + $0x3e8] sm:$0xff]
    %v800 = vld [vmem:[#allocation11 + $0x3f0] sm:$0xff]
    %v801 = vld [vmem:[#allocation11 + $0x3f8] sm:$0xff]
    %v930 = vunpack.c.l.b16 %v674
    %v931 = vunpack.c.h.b16 %v674
    %v932 = vunpack.c.l.b16 %v675
    %v933 = vunpack.c.h.b16 %v675
    %v934 = vunpack.c.l.b16 %v676
    %v935 = vunpack.c.h.b16 %v676
    %v936 = vunpack.c.l.b16 %v677
    %v937 = vunpack.c.h.b16 %v677
    %v938 = vunpack.c.l.b16 %v678
    %v939 = vunpack.c.h.b16 %v678
    %v940 = vunpack.c.l.b16 %v679
    %v941 = vunpack.c.h.b16 %v679
    %v942 = vunpack.c.l.b16 %v680
    %v943 = vunpack.c.h.b16 %v680
    %v944 = vunpack.c.l.b16 %v681
    %v945 = vunpack.c.h.b16 %v681
    %v946 = vunpack.c.l.b16 %v682
    %v947 = vunpack.c.h.b16 %v682
    %v948 = vunpack.c.l.b16 %v683
    %v949 = vunpack.c.h.b16 %v683
    %v950 = vunpack.c.l.b16 %v684
    %v951 = vunpack.c.h.b16 %v684
    %v952 = vunpack.c.l.b16 %v685
    %v953 = vunpack.c.h.b16 %v685
    %v954 = vunpack.c.l.b16 %v686
    %v955 = vunpack.c.h.b16 %v686
    %v956 = vunpack.c.l.b16 %v687
    %v957 = vunpack.c.h.b16 %v687
    %v958 = vunpack.c.l.b16 %v688
    %v959 = vunpack.c.h.b16 %v688
    %v960 = vunpack.c.l.b16 %v689
    %v961 = vunpack.c.h.b16 %v689
    %v962 = vunpack.c.l.b16 %v690
    %v963 = vunpack.c.h.b16 %v690
    %v964 = vunpack.c.l.b16 %v691
    %v965 = vunpack.c.h.b16 %v691
    %v966 = vunpack.c.l.b16 %v692
    %v967 = vunpack.c.h.b16 %v692
    %v968 = vunpack.c.l.b16 %v693
    %v969 = vunpack.c.h.b16 %v693
    %v970 = vunpack.c.l.b16 %v694
    %v971 = vunpack.c.h.b16 %v694
    %v972 = vunpack.c.l.b16 %v695
    %v973 = vunpack.c.h.b16 %v695
    %v974 = vunpack.c.l.b16 %v696
    %v975 = vunpack.c.h.b16 %v696
    %v976 = vunpack.c.l.b16 %v697
    %v977 = vunpack.c.h.b16 %v697
    %v978 = vunpack.c.l.b16 %v698
    %v979 = vunpack.c.h.b16 %v698
    %v980 = vunpack.c.l.b16 %v699
    %v981 = vunpack.c.h.b16 %v699
    %v982 = vunpack.c.l.b16 %v700
    %v983 = vunpack.c.h.b16 %v700
    %v984 = vunpack.c.l.b16 %v701
    %v985 = vunpack.c.h.b16 %v701
    %v986 = vunpack.c.l.b16 %v702
    %v987 = vunpack.c.h.b16 %v702
    %v988 = vunpack.c.l.b16 %v703
    %v989 = vunpack.c.h.b16 %v703
    %v990 = vunpack.c.l.b16 %v704
    %v991 = vunpack.c.h.b16 %v704
    %v992 = vunpack.c.l.b16 %v705
    %v993 = vunpack.c.h.b16 %v705
    %v994 = vunpack.c.l.b16 %v706
    %v995 = vunpack.c.h.b16 %v706
    %v996 = vunpack.c.l.b16 %v707
    %v997 = vunpack.c.h.b16 %v707
    %v998 = vunpack.c.l.b16 %v708
    %v999 = vunpack.c.h.b16 %v708
    %v1000 = vunpack.c.l.b16 %v709
    %v1001 = vunpack.c.h.b16 %v709
    %v1002 = vunpack.c.l.b16 %v710
    %v1003 = vunpack.c.h.b16 %v710
    %v1004 = vunpack.c.l.b16 %v711
    %v1005 = vunpack.c.h.b16 %v711
    %v1006 = vunpack.c.l.b16 %v712
    %v1007 = vunpack.c.h.b16 %v712
    %v1008 = vunpack.c.l.b16 %v713
    %v1009 = vunpack.c.h.b16 %v713
    %v1010 = vunpack.c.l.b16 %v714
    %v1011 = vunpack.c.h.b16 %v714
    %v1012 = vunpack.c.l.b16 %v715
    %v1013 = vunpack.c.h.b16 %v715
    %v1014 = vunpack.c.l.b16 %v716
    %v1015 = vunpack.c.h.b16 %v716
    %v1016 = vunpack.c.l.b16 %v717
    %v1017 = vunpack.c.h.b16 %v717
    %v1018 = vunpack.c.l.b16 %v718
    %v1019 = vunpack.c.h.b16 %v718
    %v1020 = vunpack.c.l.b16 %v719
    %v1021 = vunpack.c.h.b16 %v719
    %v1022 = vunpack.c.l.b16 %v720
    %v1023 = vunpack.c.h.b16 %v720
    %v1024 = vunpack.c.l.b16 %v721
    %v1025 = vunpack.c.h.b16 %v721
    %v1026 = vunpack.c.l.b16 %v722
    %v1027 = vunpack.c.h.b16 %v722
    %v1028 = vunpack.c.l.b16 %v723
    %v1029 = vunpack.c.h.b16 %v723
    %v1030 = vunpack.c.l.b16 %v724
    %v1031 = vunpack.c.h.b16 %v724
    %v1032 = vunpack.c.l.b16 %v725
    %v1033 = vunpack.c.h.b16 %v725
    %v1034 = vunpack.c.l.b16 %v726
    %v1035 = vunpack.c.h.b16 %v726
    %v1036 = vunpack.c.l.b16 %v727
    %v1037 = vunpack.c.h.b16 %v727
    %v1038 = vunpack.c.l.b16 %v728
    %v1039 = vunpack.c.h.b16 %v728
    %v1040 = vunpack.c.l.b16 %v729
    %v1041 = vunpack.c.h.b16 %v729
    %v1042 = vunpack.c.l.b16 %v730
    %v1043 = vunpack.c.h.b16 %v730
    %v1044 = vunpack.c.l.b16 %v731
    %v1045 = vunpack.c.h.b16 %v731
    %v1046 = vunpack.c.l.b16 %v732
    %v1047 = vunpack.c.h.b16 %v732
    %v1048 = vunpack.c.l.b16 %v733
    %v1049 = vunpack.c.h.b16 %v733
    %v1050 = vunpack.c.l.b16 %v734
    %v1051 = vunpack.c.h.b16 %v734
    %v1052 = vunpack.c.l.b16 %v735
    %v1053 = vunpack.c.h.b16 %v735
    %v1054 = vunpack.c.l.b16 %v736
    %v1055 = vunpack.c.h.b16 %v736
    %v1056 = vunpack.c.l.b16 %v737
    %v1057 = vunpack.c.h.b16 %v737
    %v1058 = vunpack.c.l.b16 %v738
    %v1059 = vunpack.c.h.b16 %v738
    %v1060 = vunpack.c.l.b16 %v739
    %v1061 = vunpack.c.h.b16 %v739
    %v1062 = vunpack.c.l.b16 %v740
    %v1063 = vunpack.c.h.b16 %v740
    %v1064 = vunpack.c.l.b16 %v741
    %v1065 = vunpack.c.h.b16 %v741
    %v1066 = vunpack.c.l.b16 %v742
    %v1067 = vunpack.c.h.b16 %v742
    %v1068 = vunpack.c.l.b16 %v743
    %v1069 = vunpack.c.h.b16 %v743
    %v1070 = vunpack.c.l.b16 %v744
    %v1071 = vunpack.c.h.b16 %v744
    %v1072 = vunpack.c.l.b16 %v745
    %v1073 = vunpack.c.h.b16 %v745
    %v1074 = vunpack.c.l.b16 %v746
    %v1075 = vunpack.c.h.b16 %v746
    %v1076 = vunpack.c.l.b16 %v747
    %v1077 = vunpack.c.h.b16 %v747
    %v1078 = vunpack.c.l.b16 %v748
    %v1079 = vunpack.c.h.b16 %v748
    %v1080 = vunpack.c.l.b16 %v749
    %v1081 = vunpack.c.h.b16 %v749
    %v1082 = vunpack.c.l.b16 %v750
    %v1083 = vunpack.c.h.b16 %v750
    %v1084 = vunpack.c.l.b16 %v751
    %v1085 = vunpack.c.h.b16 %v751
    %v1086 = vunpack.c.l.b16 %v752
    %v1087 = vunpack.c.h.b16 %v752
    %v1088 = vunpack.c.l.b16 %v753
    %v1089 = vunpack.c.h.b16 %v753
    %v1090 = vunpack.c.l.b16 %v754
    %v1091 = vunpack.c.h.b16 %v754
    %v1092 = vunpack.c.l.b16 %v755
    %v1093 = vunpack.c.h.b16 %v755
    %v1094 = vunpack.c.l.b16 %v756
    %v1095 = vunpack.c.h.b16 %v756
    %v1096 = vunpack.c.l.b16 %v757
    %v1097 = vunpack.c.h.b16 %v757
    %v1098 = vunpack.c.l.b16 %v758
    %v1099 = vunpack.c.h.b16 %v758
    %v1100 = vunpack.c.l.b16 %v759
    %v1101 = vunpack.c.h.b16 %v759
    %v1102 = vunpack.c.l.b16 %v760
    %v1103 = vunpack.c.h.b16 %v760
    %v1104 = vunpack.c.l.b16 %v761
    %v1105 = vunpack.c.h.b16 %v761
    %v1106 = vunpack.c.l.b16 %v762
    %v1107 = vunpack.c.h.b16 %v762
    %v1108 = vunpack.c.l.b16 %v763
    %v1109 = vunpack.c.h.b16 %v763
    %v1110 = vunpack.c.l.b16 %v764
    %v1111 = vunpack.c.h.b16 %v764
    %v1112 = vunpack.c.l.b16 %v765
    %v1113 = vunpack.c.h.b16 %v765
    %v1114 = vunpack.c.l.b16 %v766
    %v1115 = vunpack.c.h.b16 %v766
    %v1116 = vunpack.c.l.b16 %v767
    %v1117 = vunpack.c.h.b16 %v767
    %v1118 = vunpack.c.l.b16 %v768
    %v1119 = vunpack.c.h.b16 %v768
    %v1120 = vunpack.c.l.b16 %v769
    %v1121 = vunpack.c.h.b16 %v769
    %v1122 = vunpack.c.l.b16 %v770
    %v1123 = vunpack.c.h.b16 %v770
    %v1124 = vunpack.c.l.b16 %v771
    %v1125 = vunpack.c.h.b16 %v771
    %v1126 = vunpack.c.l.b16 %v772
    %v1127 = vunpack.c.h.b16 %v772
    %v1128 = vunpack.c.l.b16 %v773
    %v1129 = vunpack.c.h.b16 %v773
    %v1130 = vunpack.c.l.b16 %v774
    %v1131 = vunpack.c.h.b16 %v774
    %v1132 = vunpack.c.l.b16 %v775
    %v1133 = vunpack.c.h.b16 %v775
    %v1134 = vunpack.c.l.b16 %v776
    %v1135 = vunpack.c.h.b16 %v776
    %v1136 = vunpack.c.l.b16 %v777
    %v1137 = vunpack.c.h.b16 %v777
    %v1138 = vunpack.c.l.b16 %v778
    %v1139 = vunpack.c.h.b16 %v778
    %v1140 = vunpack.c.l.b16 %v779
    %v1141 = vunpack.c.h.b16 %v779
    %v1142 = vunpack.c.l.b16 %v780
    %v1143 = vunpack.c.h.b16 %v780
    %v1144 = vunpack.c.l.b16 %v781
    %v1145 = vunpack.c.h.b16 %v781
    %v1146 = vunpack.c.l.b16 %v782
    %v1147 = vunpack.c.h.b16 %v782
    %v1148 = vunpack.c.l.b16 %v783
    %v1149 = vunpack.c.h.b16 %v783
    %v1150 = vunpack.c.l.b16 %v784
    %v1151 = vunpack.c.h.b16 %v784
    %v1152 = vunpack.c.l.b16 %v785
    %v1153 = vunpack.c.h.b16 %v785
    %v1154 = vunpack.c.l.b16 %v786
    %v1155 = vunpack.c.h.b16 %v786
    %v1156 = vunpack.c.l.b16 %v787
    %v1157 = vunpack.c.h.b16 %v787
    %v1158 = vunpack.c.l.b16 %v788
    %v1159 = vunpack.c.h.b16 %v788
    %v1160 = vunpack.c.l.b16 %v789
    %v1161 = vunpack.c.h.b16 %v789
    %v1162 = vunpack.c.l.b16 %v790
    %v1163 = vunpack.c.h.b16 %v790
    %v1164 = vunpack.c.l.b16 %v791
    %v1165 = vunpack.c.h.b16 %v791
    %v1166 = vunpack.c.l.b16 %v792
    %v1167 = vunpack.c.h.b16 %v792
    %v1168 = vunpack.c.l.b16 %v793
    %v1169 = vunpack.c.h.b16 %v793
    %v1170 = vunpack.c.l.b16 %v794
    %v1171 = vunpack.c.h.b16 %v794
    %v1172 = vunpack.c.l.b16 %v795
    %v1173 = vunpack.c.h.b16 %v795
    %v1174 = vunpack.c.l.b16 %v796
    %v1175 = vunpack.c.h.b16 %v796
    %v1176 = vunpack.c.l.b16 %v797
    %v1177 = vunpack.c.h.b16 %v797
    %v1178 = vunpack.c.l.b16 %v798
    %v1179 = vunpack.c.h.b16 %v798
    %v1180 = vunpack.c.l.b16 %v799
    %v1181 = vunpack.c.h.b16 %v799
    %v1182 = vunpack.c.l.b16 %v800
    %v1183 = vunpack.c.h.b16 %v800
    %v1184 = vunpack.c.l.b16 %v801
    %v1185 = vunpack.c.h.b16 %v801
    %v1186 = vpack.c.b16 %v934, %v930
    %v1187 = vpack.c.b16 %v935, %v931
    %v1188 = vpack.c.b16 %v936, %v932
    %v1189 = vpack.c.b16 %v937, %v933
    %v1190 = vpack.c.b16 %v942, %v938
    %v1191 = vpack.c.b16 %v943, %v939
    %v1192 = vpack.c.b16 %v944, %v940
    %v1193 = vpack.c.b16 %v945, %v941
    %v1194 = vpack.c.b16 %v950, %v946
    %v1195 = vpack.c.b16 %v951, %v947
    %v1196 = vpack.c.b16 %v952, %v948
    %v1197 = vpack.c.b16 %v953, %v949
    %v1198 = vpack.c.b16 %v958, %v954
    %v1199 = vpack.c.b16 %v959, %v955
    %v1200 = vpack.c.b16 %v960, %v956
    %v1201 = vpack.c.b16 %v961, %v957
    %v1202 = vpack.c.b16 %v966, %v962
    %v1203 = vpack.c.b16 %v967, %v963
    %v1204 = vpack.c.b16 %v968, %v964
    %v1205 = vpack.c.b16 %v969, %v965
    %v1206 = vpack.c.b16 %v974, %v970
    %v1207 = vpack.c.b16 %v975, %v971
    %v1208 = vpack.c.b16 %v976, %v972
    %v1209 = vpack.c.b16 %v977, %v973
    %v1210 = vpack.c.b16 %v982, %v978
    %v1211 = vpack.c.b16 %v983, %v979
    %v1212 = vpack.c.b16 %v984, %v980
    %v1213 = vpack.c.b16 %v985, %v981
    %v1214 = vpack.c.b16 %v990, %v986
    %v1215 = vpack.c.b16 %v991, %v987
    %v1216 = vpack.c.b16 %v992, %v988
    %v1217 = vpack.c.b16 %v993, %v989
    %v1218 = vpack.c.b16 %v998, %v994
    %v1219 = vpack.c.b16 %v999, %v995
    %v1220 = vpack.c.b16 %v1000, %v996
    %v1221 = vpack.c.b16 %v1001, %v997
    %v1222 = vpack.c.b16 %v1006, %v1002
    %v1223 = vpack.c.b16 %v1007, %v1003
    %v1224 = vpack.c.b16 %v1008, %v1004
    %v1225 = vpack.c.b16 %v1009, %v1005
    %v1226 = vpack.c.b16 %v1014, %v1010
    %v1227 = vpack.c.b16 %v1015, %v1011
    %v1228 = vpack.c.b16 %v1016, %v1012
    %v1229 = vpack.c.b16 %v1017, %v1013
    %v1230 = vpack.c.b16 %v1022, %v1018
    %v1231 = vpack.c.b16 %v1023, %v1019
    %v1232 = vpack.c.b16 %v1024, %v1020
    %v1233 = vpack.c.b16 %v1025, %v1021
    %v1234 = vpack.c.b16 %v1030, %v1026
    %v1235 = vpack.c.b16 %v1031, %v1027
    %v1236 = vpack.c.b16 %v1032, %v1028
    %v1237 = vpack.c.b16 %v1033, %v1029
    %v1238 = vpack.c.b16 %v1038, %v1034
    %v1239 = vpack.c.b16 %v1039, %v1035
    %v1240 = vpack.c.b16 %v1040, %v1036
    %v1241 = vpack.c.b16 %v1041, %v1037
    %v1242 = vpack.c.b16 %v1046, %v1042
    %v1243 = vpack.c.b16 %v1047, %v1043
    %v1244 = vpack.c.b16 %v1048, %v1044
    %v1245 = vpack.c.b16 %v1049, %v1045
    %v1246 = vpack.c.b16 %v1054, %v1050
    %v1247 = vpack.c.b16 %v1055, %v1051
    %v1248 = vpack.c.b16 %v1056, %v1052
    %v1249 = vpack.c.b16 %v1057, %v1053
    %v1250 = vpack.c.b16 %v1062, %v1058
    %v1251 = vpack.c.b16 %v1063, %v1059
    %v1252 = vpack.c.b16 %v1064, %v1060
    %v1253 = vpack.c.b16 %v1065, %v1061
    %v1254 = vpack.c.b16 %v1070, %v1066
    %v1255 = vpack.c.b16 %v1071, %v1067
    %v1256 = vpack.c.b16 %v1072, %v1068
    %v1257 = vpack.c.b16 %v1073, %v1069
    %v1258 = vpack.c.b16 %v1078, %v1074
    %v1259 = vpack.c.b16 %v1079, %v1075
    %v1260 = vpack.c.b16 %v1080, %v1076
    %v1261 = vpack.c.b16 %v1081, %v1077
    %v1262 = vpack.c.b16 %v1086, %v1082
    %v1263 = vpack.c.b16 %v1087, %v1083
    %v1264 = vpack.c.b16 %v1088, %v1084
    %v1265 = vpack.c.b16 %v1089, %v1085
    %v1266 = vpack.c.b16 %v1094, %v1090
    %v1267 = vpack.c.b16 %v1095, %v1091
    %v1268 = vpack.c.b16 %v1096, %v1092
    %v1269 = vpack.c.b16 %v1097, %v1093
    %v1270 = vpack.c.b16 %v1102, %v1098
    %v1271 = vpack.c.b16 %v1103, %v1099
    %v1272 = vpack.c.b16 %v1104, %v1100
    %v1273 = vpack.c.b16 %v1105, %v1101
    %v1274 = vpack.c.b16 %v1110, %v1106
    %v1275 = vpack.c.b16 %v1111, %v1107
    %v1276 = vpack.c.b16 %v1112, %v1108
    %v1277 = vpack.c.b16 %v1113, %v1109
    %v1278 = vpack.c.b16 %v1118, %v1114
    %v1279 = vpack.c.b16 %v1119, %v1115
    %v1280 = vpack.c.b16 %v1120, %v1116
    %v1281 = vpack.c.b16 %v1121, %v1117
    %v1282 = vpack.c.b16 %v1126, %v1122
    %v1283 = vpack.c.b16 %v1127, %v1123
    %v1284 = vpack.c.b16 %v1128, %v1124
    %v1285 = vpack.c.b16 %v1129, %v1125
    %v1286 = vpack.c.b16 %v1134, %v1130
    %v1287 = vpack.c.b16 %v1135, %v1131
    %v1288 = vpack.c.b16 %v1136, %v1132
    %v1289 = vpack.c.b16 %v1137, %v1133
    %v1290 = vpack.c.b16 %v1142, %v1138
    %v1291 = vpack.c.b16 %v1143, %v1139
    %v1292 = vpack.c.b16 %v1144, %v1140
    %v1293 = vpack.c.b16 %v1145, %v1141
    %v1294 = vpack.c.b16 %v1150, %v1146
    %v1295 = vpack.c.b16 %v1151, %v1147
    %v1296 = vpack.c.b16 %v1152, %v1148
    %v1297 = vpack.c.b16 %v1153, %v1149
    %v1298 = vpack.c.b16 %v1158, %v1154
    %v1299 = vpack.c.b16 %v1159, %v1155
    %v1300 = vpack.c.b16 %v1160, %v1156
    %v1301 = vpack.c.b16 %v1161, %v1157
    %v1302 = vpack.c.b16 %v1166, %v1162
    %v1303 = vpack.c.b16 %v1167, %v1163
    %v1304 = vpack.c.b16 %v1168, %v1164
    %v1305 = vpack.c.b16 %v1169, %v1165
    %v1306 = vpack.c.b16 %v1174, %v1170
    %v1307 = vpack.c.b16 %v1175, %v1171
    %v1308 = vpack.c.b16 %v1176, %v1172
    %v1309 = vpack.c.b16 %v1177, %v1173
    %v1310 = vpack.c.b16 %v1182, %v1178
    %v1311 = vpack.c.b16 %v1183, %v1179
    %v1312 = vpack.c.b16 %v1184, %v1180
    %v1313 = vpack.c.b16 %v1185, %v1181
    %1442 = vmatprep.subr.bf16.mxu0 %v1187
    %1443 = vmatpush1.bf16.msra.mxu0 %v1186
    %1444 = vmatprep.subr.bf16.mxu0 %v1191
    %1445 = vmatpush1.bf16.msra.mxu0 %v1190
    %1446 = vmatprep.subr.bf16.mxu0 %v1195
    %1447 = vmatpush1.bf16.msra.mxu0 %v1194
    %1448 = vmatprep.subr.bf16.mxu0 %v1199
    %1449 = vmatpush1.bf16.msra.mxu0 %v1198
    %1450 = vmatprep.subr.bf16.mxu0 %v1203
    %1451 = vmatpush1.bf16.msra.mxu0 %v1202
    %1452 = vmatprep.subr.bf16.mxu0 %v1207
    %1453 = vmatpush1.bf16.msra.mxu0 %v1206
    %1454 = vmatprep.subr.bf16.mxu0 %v1211
    %1455 = vmatpush1.bf16.msra.mxu0 %v1210
    %1456 = vmatprep.subr.bf16.mxu0 %v1215
    %1457 = vmatpush1.bf16.msra.mxu0 %v1214
    %1458 = vmatprep.subr.bf16.mxu0 %v1219
    %1459 = vmatpush1.bf16.msra.mxu0 %v1218
    %1460 = vmatprep.subr.bf16.mxu0 %v1223
    %1461 = vmatpush1.bf16.msra.mxu0 %v1222
    %1462 = vmatprep.subr.bf16.mxu0 %v1227
    %1463 = vmatpush1.bf16.msra.mxu0 %v1226
    %1464 = vmatprep.subr.bf16.mxu0 %v1231
    %1465 = vmatpush1.bf16.msra.mxu0 %v1230
    %1466 = vmatprep.subr.bf16.mxu0 %v1235
    %1467 = vmatpush1.bf16.msra.mxu0 %v1234
    %1468 = vmatprep.subr.bf16.mxu0 %v1239
    %1469 = vmatpush1.bf16.msra.mxu0 %v1238
    %1470 = vmatprep.subr.bf16.mxu0 %v1243
    %1471 = vmatpush1.bf16.msra.mxu0 %v1242
    %1472 = vmatprep.subr.bf16.mxu0 %v1247
    %1473 = vmatpush1.bf16.msra.mxu0 %v1246
    %1474 = vmatprep.mubr.bf16.mxu0 %v671
    %1475 = vmatmul.mubr.bf16.gmra.mrb[0].mxu0 %v670
    %v1476 = vpop.f32.mrb[0].mxu0
    %v1477 = vadd.f32 0.0, %v1476
    %v1478 = vpop.f32.mrb[0].mxu0
    %v1479 = vadd.f32 0.0, %v1478
    %v1480 = vpop.f32.mrb[0].mxu0
    %v1481 = vadd.f32 0.0, %v1480
    %v1482 = vpop.f32.mrb[0].mxu0
    %v1483 = vadd.f32 0.0, %v1482
    %1484 = vdwg.mxu0
    %1485 = vmatprep.subr.bf16.mxu0 %v1251
    %1486 = vmatpush1.bf16.msra.mxu0 %v1250
    %1487 = vmatprep.subr.bf16.mxu0 %v1255
    %1488 = vmatpush1.bf16.msra.mxu0 %v1254
    %1489 = vmatprep.subr.bf16.mxu0 %v1259
    %1490 = vmatpush1.bf16.msra.mxu0 %v1258
    %1491 = vmatprep.subr.bf16.mxu0 %v1263
    %1492 = vmatpush1.bf16.msra.mxu0 %v1262
    %1493 = vmatprep.subr.bf16.mxu0 %v1267
    %1494 = vmatpush1.bf16.msra.mxu0 %v1266
    %1495 = vmatprep.subr.bf16.mxu0 %v1271
    %1496 = vmatpush1.bf16.msra.mxu0 %v1270
    %1497 = vmatprep.subr.bf16.mxu0 %v1275
    %1498 = vmatpush1.bf16.msra.mxu0 %v1274
    %1499 = vmatprep.subr.bf16.mxu0 %v1279
    %1500 = vmatpush1.bf16.msra.mxu0 %v1278
    %1501 = vmatprep.subr.bf16.mxu0 %v1283
    %1502 = vmatpush1.bf16.msra.mxu0 %v1282
    %1503 = vmatprep.subr.bf16.mxu0 %v1287
    %1504 = vmatpush1.bf16.msra.mxu0 %v1286
    %1505 = vmatprep.subr.bf16.mxu0 %v1291
    %1506 = vmatpush1.bf16.msra.mxu0 %v1290
    %1507 = vmatprep.subr.bf16.mxu0 %v1295
    %1508 = vmatpush1.bf16.msra.mxu0 %v1294
    %1509 = vmatprep.subr.bf16.mxu0 %v1299
    %1510 = vmatpush1.bf16.msra.mxu0 %v1298
    %1511 = vmatprep.subr.bf16.mxu0 %v1303
    %1512 = vmatpush1.bf16.msra.mxu0 %v1302
    %1513 = vmatprep.subr.bf16.mxu0 %v1307
    %1514 = vmatpush1.bf16.msra.mxu0 %v1306
    %1515 = vmatprep.subr.bf16.mxu0 %v1311
    %1516 = vmatpush1.bf16.msra.mxu0 %v1310
    %1517 = vmatprep.mubr.bf16.mxu0 %v673
    %1518 = vmatmul.mubr.bf16.gmra.mrb[0].mxu0 %v672
    %v1519 = vpop.f32.mrb[0].mxu0
    %v1520 = vadd.f32 %v1477, %v1519
    %v1521 = vpop.f32.mrb[0].mxu0
    %v1522 = vadd.f32 %v1479, %v1521
    %v1523 = vpop.f32.mrb[0].mxu0
    %v1524 = vadd.f32 %v1481, %v1523
    %v1525 = vpop.f32.mrb[0].mxu0
    %v1526 = vadd.f32 %v1483, %v1525
    %1527 = vdwg.mxu0
    %1528 = vmatprep.subr.bf16.mxu0 %v1189
    %1529 = vmatpush1.bf16.msra.mxu0 %v1188
    %1530 = vmatprep.subr.bf16.mxu0 %v1193
    %1531 = vmatpush1.bf16.msra.mxu0 %v1192
    %1532 = vmatprep.subr.bf16.mxu0 %v1197
    %1533 = vmatpush1.bf16.msra.mxu0 %v1196
    %1534 = vmatprep.subr.bf16.mxu0 %v1201
    %1535 = vmatpush1.bf16.msra.mxu0 %v1200
    %1536 = vmatprep.subr.bf16.mxu0 %v1205
    %1537 = vmatpush1.bf16.msra.mxu0 %v1204
    %1538 = vmatprep.subr.bf16.mxu0 %v1209
    %1539 = vmatpush1.bf16.msra.mxu0 %v1208
    %1540 = vmatprep.subr.bf16.mxu0 %v1213
    %1541 = vmatpush1.bf16.msra.mxu0 %v1212
    %1542 = vmatprep.subr.bf16.mxu0 %v1217
    %1543 = vmatpush1.bf16.msra.mxu0 %v1216
    %1544 = vmatprep.subr.bf16.mxu0 %v1221
    %1545 = vmatpush1.bf16.msra.mxu0 %v1220
    %1546 = vmatprep.subr.bf16.mxu0 %v1225
    %1547 = vmatpush1.bf16.msra.mxu0 %v1224
    %1548 = vmatprep.subr.bf16.mxu0 %v1229
    %1549 = vmatpush1.bf16.msra.mxu0 %v1228
    %1550 = vmatprep.subr.bf16.mxu0 %v1233
    %1551 = vmatpush1.bf16.msra.mxu0 %v1232
    %1552 = vmatprep.subr.bf16.mxu0 %v1237
    %1553 = vmatpush1.bf16.msra.mxu0 %v1236
    %1554 = vmatprep.subr.bf16.mxu0 %v1241
    %1555 = vmatpush1.bf16.msra.mxu0 %v1240
    %1556 = vmatprep.subr.bf16.mxu0 %v1245
    %1557 = vmatpush1.bf16.msra.mxu0 %v1244
    %1558 = vmatprep.subr.bf16.mxu0 %v1249
    %1559 = vmatpush1.bf16.msra.mxu0 %v1248
    %1560 = vmatprep.mubr.bf16.mxu0 %v671
    %1561 = vmatmul.mubr.bf16.gmra.mrb[0].mxu0 %v670
    %v1562 = vpop.f32.mrb[0].mxu0
    %v1563 = vadd.f32 0.0, %v1562
    %v1564 = vpop.f32.mrb[0].mxu0
    %v1565 = vadd.f32 0.0, %v1564
    %v1566 = vpop.f32.mrb[0].mxu0
    %v1567 = vadd.f32 0.0, %v1566
    %v1568 = vpop.f32.mrb[0].mxu0
    %v1569 = vadd.f32 0.0, %v1568
    %1570 = vdwg.mxu0
    %1571 = vmatprep.subr.bf16.mxu0 %v1253
    %1572 = vmatpush1.bf16.msra.mxu0 %v1252
    %1573 = vmatprep.subr.bf16.mxu0 %v1257
    %1574 = vmatpush1.bf16.msra.mxu0 %v1256
    %1575 = vmatprep.subr.bf16.mxu0 %v1261
    %1576 = vmatpush1.bf16.msra.mxu0 %v1260
    %1577 = vmatprep.subr.bf16.mxu0 %v1265
    %1578 = vmatpush1.bf16.msra.mxu0 %v1264
    %1579 = vmatprep.subr.bf16.mxu0 %v1269
    %1580 = vmatpush1.bf16.msra.mxu0 %v1268
    %1581 = vmatprep.subr.bf16.mxu0 %v1273
    %1582 = vmatpush1.bf16.msra.mxu0 %v1272
    %1583 = vmatprep.subr.bf16.mxu0 %v1277
    %1584 = vmatpush1.bf16.msra.mxu0 %v1276
    %1585 = vmatprep.subr.bf16.mxu0 %v1281
    %1586 = vmatpush1.bf16.msra.mxu0 %v1280
    %1587 = vmatprep.subr.bf16.mxu0 %v1285
    %1588 = vmatpush1.bf16.msra.mxu0 %v1284
    %1589 = vmatprep.subr.bf16.mxu0 %v1289
    %1590 = vmatpush1.bf16.msra.mxu0 %v1288
    %1591 = vmatprep.subr.bf16.mxu0 %v1293
    %1592 = vmatpush1.bf16.msra.mxu0 %v1292
    %1593 = vmatprep.subr.bf16.mxu0 %v1297
    %1594 = vmatpush1.bf16.msra.mxu0 %v1296
    %1595 = vmatprep.subr.bf16.mxu0 %v1301
    %1596 = vmatpush1.bf16.msra.mxu0 %v1300
    %1597 = vmatprep.subr.bf16.mxu0 %v1305
    %1598 = vmatpush1.bf16.msra.mxu0 %v1304
    %1599 = vmatprep.subr.bf16.mxu0 %v1309
    %1600 = vmatpush1.bf16.msra.mxu0 %v1308
    %1601 = vmatprep.subr.bf16.mxu0 %v1313
    %1602 = vmatpush1.bf16.msra.mxu0 %v1312
    %1603 = vmatprep.mubr.bf16.mxu0 %v673
    %1604 = vmatmul.mubr.bf16.gmra.mrb[0].mxu0 %v672
    %v1605 = vpop.f32.mrb[0].mxu0
    %v1606 = vadd.f32 %v1563, %v1605
    %v1607 = vpop.f32.mrb[0].mxu0
    %v1608 = vadd.f32 %v1565, %v1607
    %v1609 = vpop.f32.mrb[0].mxu0
    %v1610 = vadd.f32 %v1567, %v1609
    %v1611 = vpop.f32.mrb[0].mxu0
    %v1612 = vadd.f32 %v1569, %v1611
    %1613 = vdwg.mxu0
    %v1742 = vunpack.c.l.b16 %v502
    %v1743 = vunpack.c.h.b16 %v502
    %v1744 = vunpack.c.l.b16 %v503
    %v1745 = vunpack.c.h.b16 %v503
    %v1746 = vunpack.c.l.b16 %v504
    %v1747 = vunpack.c.h.b16 %v504
    %v1748 = vunpack.c.l.b16 %v505
    %v1749 = vunpack.c.h.b16 %v505
    %v1750 = vunpack.c.l.b16 %v506
    %v1751 = vunpack.c.h.b16 %v506
    %v1752 = vunpack.c.l.b16 %v507
    %v1753 = vunpack.c.h.b16 %v507
    %v1754 = vunpack.c.l.b16 %v508
    %v1755 = vunpack.c.h.b16 %v508
    %v1756 = vunpack.c.l.b16 %v509
    %v1757 = vunpack.c.h.b16 %v509
    %v1758 = vunpack.c.l.b16 %v510
    %v1759 = vunpack.c.h.b16 %v510
    %v1760 = vunpack.c.l.b16 %v511
    %v1761 = vunpack.c.h.b16 %v511
    %v1762 = vunpack.c.l.b16 %v512
    %v1763 = vunpack.c.h.b16 %v512
    %v1764 = vunpack.c.l.b16 %v513
    %v1765 = vunpack.c.h.b16 %v513
    %v1766 = vunpack.c.l.b16 %v514
    %v1767 = vunpack.c.h.b16 %v514
    %v1768 = vunpack.c.l.b16 %v515
    %v1769 = vunpack.c.h.b16 %v515
    %v1770 = vunpack.c.l.b16 %v516
    %v1771 = vunpack.c.h.b16 %v516
    %v1772 = vunpack.c.l.b16 %v517
    %v1773 = vunpack.c.h.b16 %v517
    %v1774 = vunpack.c.l.b16 %v518
    %v1775 = vunpack.c.h.b16 %v518
    %v1776 = vunpack.c.l.b16 %v519
    %v1777 = vunpack.c.h.b16 %v519
    %v1778 = vunpack.c.l.b16 %v520
    %v1779 = vunpack.c.h.b16 %v520
    %v1780 = vunpack.c.l.b16 %v521
    %v1781 = vunpack.c.h.b16 %v521
    %v1782 = vunpack.c.l.b16 %v522
    %v1783 = vunpack.c.h.b16 %v522
    %v1784 = vunpack.c.l.b16 %v523
    %v1785 = vunpack.c.h.b16 %v523
    %v1786 = vunpack.c.l.b16 %v524
    %v1787 = vunpack.c.h.b16 %v524
    %v1788 = vunpack.c.l.b16 %v525
    %v1789 = vunpack.c.h.b16 %v525
    %v1790 = vunpack.c.l.b16 %v526
    %v1791 = vunpack.c.h.b16 %v526
    %v1792 = vunpack.c.l.b16 %v527
    %v1793 = vunpack.c.h.b16 %v527
    %v1794 = vunpack.c.l.b16 %v528
    %v1795 = vunpack.c.h.b16 %v528
    %v1796 = vunpack.c.l.b16 %v529
    %v1797 = vunpack.c.h.b16 %v529
    %v1798 = vunpack.c.l.b16 %v530
    %v1799 = vunpack.c.h.b16 %v530
    %v1800 = vunpack.c.l.b16 %v531
    %v1801 = vunpack.c.h.b16 %v531
    %v1802 = vunpack.c.l.b16 %v532
    %v1803 = vunpack.c.h.b16 %v532
    %v1804 = vunpack.c.l.b16 %v533
    %v1805 = vunpack.c.h.b16 %v533
    %v1806 = vunpack.c.l.b16 %v534
    %v1807 = vunpack.c.h.b16 %v534
    %v1808 = vunpack.c.l.b16 %v535
    %v1809 = vunpack.c.h.b16 %v535
    %v1810 = vunpack.c.l.b16 %v536
    %v1811 = vunpack.c.h.b16 %v536
    %v1812 = vunpack.c.l.b16 %v537
    %v1813 = vunpack.c.h.b16 %v537
    %v1814 = vunpack.c.l.b16 %v538
    %v1815 = vunpack.c.h.b16 %v538
    %v1816 = vunpack.c.l.b16 %v539
    %v1817 = vunpack.c.h.b16 %v539
    %v1818 = vunpack.c.l.b16 %v540
    %v1819 = vunpack.c.h.b16 %v540
    %v1820 = vunpack.c.l.b16 %v541
    %v1821 = vunpack.c.h.b16 %v541
    %v1822 = vunpack.c.l.b16 %v542
    %v1823 = vunpack.c.h.b16 %v542
    %v1824 = vunpack.c.l.b16 %v543
    %v1825 = vunpack.c.h.b16 %v543
    %v1826 = vunpack.c.l.b16 %v544
    %v1827 = vunpack.c.h.b16 %v544
    %v1828 = vunpack.c.l.b16 %v545
    %v1829 = vunpack.c.h.b16 %v545
    %v1830 = vunpack.c.l.b16 %v546
    %v1831 = vunpack.c.h.b16 %v546
    %v1832 = vunpack.c.l.b16 %v547
    %v1833 = vunpack.c.h.b16 %v547
    %v1834 = vunpack.c.l.b16 %v548
    %v1835 = vunpack.c.h.b16 %v548
    %v1836 = vunpack.c.l.b16 %v549
    %v1837 = vunpack.c.h.b16 %v549
    %v1838 = vunpack.c.l.b16 %v550
    %v1839 = vunpack.c.h.b16 %v550
    %v1840 = vunpack.c.l.b16 %v551
    %v1841 = vunpack.c.h.b16 %v551
    %v1842 = vunpack.c.l.b16 %v552
    %v1843 = vunpack.c.h.b16 %v552
    %v1844 = vunpack.c.l.b16 %v553
    %v1845 = vunpack.c.h.b16 %v553
    %v1846 = vunpack.c.l.b16 %v554
    %v1847 = vunpack.c.h.b16 %v554
    %v1848 = vunpack.c.l.b16 %v555
    %v1849 = vunpack.c.h.b16 %v555
    %v1850 = vunpack.c.l.b16 %v556
    %v1851 = vunpack.c.h.b16 %v556
    %v1852 = vunpack.c.l.b16 %v557
    %v1853 = vunpack.c.h.b16 %v557
    %v1854 = vunpack.c.l.b16 %v558
    %v1855 = vunpack.c.h.b16 %v558
    %v1856 = vunpack.c.l.b16 %v559
    %v1857 = vunpack.c.h.b16 %v559
    %v1858 = vunpack.c.l.b16 %v560
    %v1859 = vunpack.c.h.b16 %v560
    %v1860 = vunpack.c.l.b16 %v561
    %v1861 = vunpack.c.h.b16 %v561
    %v1862 = vunpack.c.l.b16 %v562
    %v1863 = vunpack.c.h.b16 %v562
    %v1864 = vunpack.c.l.b16 %v563
    %v1865 = vunpack.c.h.b16 %v563
    %v1866 = vunpack.c.l.b16 %v564
    %v1867 = vunpack.c.h.b16 %v564
    %v1868 = vunpack.c.l.b16 %v565
    %v1869 = vunpack.c.h.b16 %v565
    %v1870 = vunpack.c.l.b16 %v566
    %v1871 = vunpack.c.h.b16 %v566
    %v1872 = vunpack.c.l.b16 %v567
    %v1873 = vunpack.c.h.b16 %v567
    %v1874 = vunpack.c.l.b16 %v568
    %v1875 = vunpack.c.h.b16 %v568
    %v1876 = vunpack.c.l.b16 %v569
    %v1877 = vunpack.c.h.b16 %v569
    %v1878 = vunpack.c.l.b16 %v570
    %v1879 = vunpack.c.h.b16 %v570
    %v1880 = vunpack.c.l.b16 %v571
    %v1881 = vunpack.c.h.b16 %v571
    %v1882 = vunpack.c.l.b16 %v572
    %v1883 = vunpack.c.h.b16 %v572
    %v1884 = vunpack.c.l.b16 %v573
    %v1885 = vunpack.c.h.b16 %v573
    %v1886 = vunpack.c.l.b16 %v574
    %v1887 = vunpack.c.h.b16 %v574
    %v1888 = vunpack.c.l.b16 %v575
    %v1889 = vunpack.c.h.b16 %v575
    %v1890 = vunpack.c.l.b16 %v576
    %v1891 = vunpack.c.h.b16 %v576
    %v1892 = vunpack.c.l.b16 %v577
    %v1893 = vunpack.c.h.b16 %v577
    %v1894 = vunpack.c.l.b16 %v578
    %v1895 = vunpack.c.h.b16 %v578
    %v1896 = vunpack.c.l.b16 %v579
    %v1897 = vunpack.c.h.b16 %v579
    %v1898 = vunpack.c.l.b16 %v580
    %v1899 = vunpack.c.h.b16 %v580
    %v1900 = vunpack.c.l.b16 %v581
    %v1901 = vunpack.c.h.b16 %v581
    %v1902 = vunpack.c.l.b16 %v582
    %v1903 = vunpack.c.h.b16 %v582
    %v1904 = vunpack.c.l.b16 %v583
    %v1905 = vunpack.c.h.b16 %v583
    %v1906 = vunpack.c.l.b16 %v584
    %v1907 = vunpack.c.h.b16 %v584
    %v1908 = vunpack.c.l.b16 %v585
    %v1909 = vunpack.c.h.b16 %v585
    %v1910 = vunpack.c.l.b16 %v586
    %v1911 = vunpack.c.h.b16 %v586
    %v1912 = vunpack.c.l.b16 %v587
    %v1913 = vunpack.c.h.b16 %v587
    %v1914 = vunpack.c.l.b16 %v588
    %v1915 = vunpack.c.h.b16 %v588
    %v1916 = vunpack.c.l.b16 %v589
    %v1917 = vunpack.c.h.b16 %v589
    %v1918 = vunpack.c.l.b16 %v590
    %v1919 = vunpack.c.h.b16 %v590
    %v1920 = vunpack.c.l.b16 %v591
    %v1921 = vunpack.c.h.b16 %v591
    %v1922 = vunpack.c.l.b16 %v592
    %v1923 = vunpack.c.h.b16 %v592
    %v1924 = vunpack.c.l.b16 %v593
    %v1925 = vunpack.c.h.b16 %v593
    %v1926 = vunpack.c.l.b16 %v594
    %v1927 = vunpack.c.h.b16 %v594
    %v1928 = vunpack.c.l.b16 %v595
    %v1929 = vunpack.c.h.b16 %v595
    %v1930 = vunpack.c.l.b16 %v596
    %v1931 = vunpack.c.h.b16 %v596
    %v1932 = vunpack.c.l.b16 %v597
    %v1933 = vunpack.c.h.b16 %v597
    %v1934 = vunpack.c.l.b16 %v598
    %v1935 = vunpack.c.h.b16 %v598
    %v1936 = vunpack.c.l.b16 %v599
    %v1937 = vunpack.c.h.b16 %v599
    %v1938 = vunpack.c.l.b16 %v600
    %v1939 = vunpack.c.h.b16 %v600
    %v1940 = vunpack.c.l.b16 %v601
    %v1941 = vunpack.c.h.b16 %v601
    %v1942 = vunpack.c.l.b16 %v602
    %v1943 = vunpack.c.h.b16 %v602
    %v1944 = vunpack.c.l.b16 %v603
    %v1945 = vunpack.c.h.b16 %v603
    %v1946 = vunpack.c.l.b16 %v604
    %v1947 = vunpack.c.h.b16 %v604
    %v1948 = vunpack.c.l.b16 %v605
    %v1949 = vunpack.c.h.b16 %v605
    %v1950 = vunpack.c.l.b16 %v606
    %v1951 = vunpack.c.h.b16 %v606
    %v1952 = vunpack.c.l.b16 %v607
    %v1953 = vunpack.c.h.b16 %v607
    %v1954 = vunpack.c.l.b16 %v608
    %v1955 = vunpack.c.h.b16 %v608
    %v1956 = vunpack.c.l.b16 %v609
    %v1957 = vunpack.c.h.b16 %v609
    %v1958 = vunpack.c.l.b16 %v610
    %v1959 = vunpack.c.h.b16 %v610
    %v1960 = vunpack.c.l.b16 %v611
    %v1961 = vunpack.c.h.b16 %v611
    %v1962 = vunpack.c.l.b16 %v612
    %v1963 = vunpack.c.h.b16 %v612
    %v1964 = vunpack.c.l.b16 %v613
    %v1965 = vunpack.c.h.b16 %v613
    %v1966 = vunpack.c.l.b16 %v614
    %v1967 = vunpack.c.h.b16 %v614
    %v1968 = vunpack.c.l.b16 %v615
    %v1969 = vunpack.c.h.b16 %v615
    %v1970 = vunpack.c.l.b16 %v616
    %v1971 = vunpack.c.h.b16 %v616
    %v1972 = vunpack.c.l.b16 %v617
    %v1973 = vunpack.c.h.b16 %v617
    %v1974 = vunpack.c.l.b16 %v618
    %v1975 = vunpack.c.h.b16 %v618
    %v1976 = vunpack.c.l.b16 %v619
    %v1977 = vunpack.c.h.b16 %v619
    %v1978 = vunpack.c.l.b16 %v620
    %v1979 = vunpack.c.h.b16 %v620
    %v1980 = vunpack.c.l.b16 %v621
    %v1981 = vunpack.c.h.b16 %v621
    %v1982 = vunpack.c.l.b16 %v622
    %v1983 = vunpack.c.h.b16 %v622
    %v1984 = vunpack.c.l.b16 %v623
    %v1985 = vunpack.c.h.b16 %v623
    %v1986 = vunpack.c.l.b16 %v624
    %v1987 = vunpack.c.h.b16 %v624
    %v1988 = vunpack.c.l.b16 %v625
    %v1989 = vunpack.c.h.b16 %v625
    %v1990 = vunpack.c.l.b16 %v626
    %v1991 = vunpack.c.h.b16 %v626
    %v1992 = vunpack.c.l.b16 %v627
    %v1993 = vunpack.c.h.b16 %v627
    %v1994 = vunpack.c.l.b16 %v628
    %v1995 = vunpack.c.h.b16 %v628
    %v1996 = vunpack.c.l.b16 %v629
    %v1997 = vunpack.c.h.b16 %v629
    %v1998 = vpack.c.b16 %v1746, %v1742
    %v1999 = vpack.c.b16 %v1747, %v1743
    %v2000 = vpack.c.b16 %v1748, %v1744
    %v2001 = vpack.c.b16 %v1749, %v1745
    %v2002 = vpack.c.b16 %v1754, %v1750
    %v2003 = vpack.c.b16 %v1755, %v1751
    %v2004 = vpack.c.b16 %v1756, %v1752
    %v2005 = vpack.c.b16 %v1757, %v1753
    %v2006 = vpack.c.b16 %v1762, %v1758
    %v2007 = vpack.c.b16 %v1763, %v1759
    %v2008 = vpack.c.b16 %v1764, %v1760
    %v2009 = vpack.c.b16 %v1765, %v1761
    %v2010 = vpack.c.b16 %v1770, %v1766
    %v2011 = vpack.c.b16 %v1771, %v1767
    %v2012 = vpack.c.b16 %v1772, %v1768
    %v2013 = vpack.c.b16 %v1773, %v1769
    %v2014 = vpack.c.b16 %v1778, %v1774
    %v2015 = vpack.c.b16 %v1779, %v1775
    %v2016 = vpack.c.b16 %v1780, %v1776
    %v2017 = vpack.c.b16 %v1781, %v1777
    %v2018 = vpack.c.b16 %v1786, %v1782
    %v2019 = vpack.c.b16 %v1787, %v1783
    %v2020 = vpack.c.b16 %v1788, %v1784
    %v2021 = vpack.c.b16 %v1789, %v1785
    %v2022 = vpack.c.b16 %v1794, %v1790
    %v2023 = vpack.c.b16 %v1795, %v1791
    %v2024 = vpack.c.b16 %v1796, %v1792
    %v2025 = vpack.c.b16 %v1797, %v1793
    %v2026 = vpack.c.b16 %v1802, %v1798
    %v2027 = vpack.c.b16 %v1803, %v1799
    %v2028 = vpack.c.b16 %v1804, %v1800
    %v2029 = vpack.c.b16 %v1805, %v1801
    %v2030 = vpack.c.b16 %v1810, %v1806
    %v2031 = vpack.c.b16 %v1811, %v1807
    %v2032 = vpack.c.b16 %v1812, %v1808
    %v2033 = vpack.c.b16 %v1813, %v1809
    %v2034 = vpack.c.b16 %v1818, %v1814
    %v2035 = vpack.c.b16 %v1819, %v1815
    %v2036 = vpack.c.b16 %v1820, %v1816
    %v2037 = vpack.c.b16 %v1821, %v1817
    %v2038 = vpack.c.b16 %v1826, %v1822
    %v2039 = vpack.c.b16 %v1827, %v1823
    %v2040 = vpack.c.b16 %v1828, %v1824
    %v2041 = vpack.c.b16 %v1829, %v1825
    %v2042 = vpack.c.b16 %v1834, %v1830
    %v2043 = vpack.c.b16 %v1835, %v1831
    %v2044 = vpack.c.b16 %v1836, %v1832
    %v2045 = vpack.c.b16 %v1837, %v1833
    %v2046 = vpack.c.b16 %v1842, %v1838
    %v2047 = vpack.c.b16 %v1843, %v1839
    %v2048 = vpack.c.b16 %v1844, %v1840
    %v2049 = vpack.c.b16 %v1845, %v1841
    %v2050 = vpack.c.b16 %v1850, %v1846
    %v2051 = vpack.c.b16 %v1851, %v1847
    %v2052 = vpack.c.b16 %v1852, %v1848
    %v2053 = vpack.c.b16 %v1853, %v1849
    %v2054 = vpack.c.b16 %v1858, %v1854
    %v2055 = vpack.c.b16 %v1859, %v1855
    %v2056 = vpack.c.b16 %v1860, %v1856
    %v2057 = vpack.c.b16 %v1861, %v1857
    %v2058 = vpack.c.b16 %v1866, %v1862
    %v2059 = vpack.c.b16 %v1867, %v1863
    %v2060 = vpack.c.b16 %v1868, %v1864
    %v2061 = vpack.c.b16 %v1869, %v1865
    %v2062 = vpack.c.b16 %v1874, %v1870
    %v2063 = vpack.c.b16 %v1875, %v1871
    %v2064 = vpack.c.b16 %v1876, %v1872
    %v2065 = vpack.c.b16 %v1877, %v1873
    %v2066 = vpack.c.b16 %v1882, %v1878
    %v2067 = vpack.c.b16 %v1883, %v1879
    %v2068 = vpack.c.b16 %v1884, %v1880
    %v2069 = vpack.c.b16 %v1885, %v1881
    %v2070 = vpack.c.b16 %v1890, %v1886
    %v2071 = vpack.c.b16 %v1891, %v1887
    %v2072 = vpack.c.b16 %v1892, %v1888
    %v2073 = vpack.c.b16 %v1893, %v1889
    %v2074 = vpack.c.b16 %v1898, %v1894
    %v2075 = vpack.c.b16 %v1899, %v1895
    %v2076 = vpack.c.b16 %v1900, %v1896
    %v2077 = vpack.c.b16 %v1901, %v1897
    %v2078 = vpack.c.b16 %v1906, %v1902
    %v2079 = vpack.c.b16 %v1907, %v1903
    %v2080 = vpack.c.b16 %v1908, %v1904
    %v2081 = vpack.c.b16 %v1909, %v1905
    %v2082 = vpack.c.b16 %v1914, %v1910
    %v2083 = vpack.c.b16 %v1915, %v1911
    %v2084 = vpack.c.b16 %v1916, %v1912
    %v2085 = vpack.c.b16 %v1917, %v1913
    %v2086 = vpack.c.b16 %v1922, %v1918
    %v2087 = vpack.c.b16 %v1923, %v1919
    %v2088 = vpack.c.b16 %v1924, %v1920
    %v2089 = vpack.c.b16 %v1925, %v1921
    %v2090 = vpack.c.b16 %v1930, %v1926
    %v2091 = vpack.c.b16 %v1931, %v1927
    %v2092 = vpack.c.b16 %v1932, %v1928
    %v2093 = vpack.c.b16 %v1933, %v1929
    %v2094 = vpack.c.b16 %v1938, %v1934
    %v2095 = vpack.c.b16 %v1939, %v1935
    %v2096 = vpack.c.b16 %v1940, %v1936
    %v2097 = vpack.c.b16 %v1941, %v1937
    %v2098 = vpack.c.b16 %v1946, %v1942
    %v2099 = vpack.c.b16 %v1947, %v1943
    %v2100 = vpack.c.b16 %v1948, %v1944
    %v2101 = vpack.c.b16 %v1949, %v1945
    %v2102 = vpack.c.b16 %v1954, %v1950
    %v2103 = vpack.c.b16 %v1955, %v1951
    %v2104 = vpack.c.b16 %v1956, %v1952
    %v2105 = vpack.c.b16 %v1957, %v1953
    %v2106 = vpack.c.b16 %v1962, %v1958
    %v2107 = vpack.c.b16 %v1963, %v1959
    %v2108 = vpack.c.b16 %v1964, %v1960
    %v2109 = vpack.c.b16 %v1965, %v1961
    %v2110 = vpack.c.b16 %v1970, %v1966
    %v2111 = vpack.c.b16 %v1971, %v1967
    %v2112 = vpack.c.b16 %v1972, %v1968
    %v2113 = vpack.c.b16 %v1973, %v1969
    %v2114 = vpack.c.b16 %v1978, %v1974
    %v2115 = vpack.c.b16 %v1979, %v1975
    %v2116 = vpack.c.b16 %v1980, %v1976
    %v2117 = vpack.c.b16 %v1981, %v1977
    %v2118 = vpack.c.b16 %v1986, %v1982
    %v2119 = vpack.c.b16 %v1987, %v1983
    %v2120 = vpack.c.b16 %v1988, %v1984
    %v2121 = vpack.c.b16 %v1989, %v1985
    %v2122 = vpack.c.b16 %v1994, %v1990
    %v2123 = vpack.c.b16 %v1995, %v1991
    %v2124 = vpack.c.b16 %v1996, %v1992
    %v2125 = vpack.c.b16 %v1997, %v1993
    %2254 = vmatprep.subr.bf16.mxu0 %v1999
    %2255 = vmatpush1.bf16.msra.mxu0 %v1998
    %2256 = vmatprep.subr.bf16.mxu0 %v2003
    %2257 = vmatpush1.bf16.msra.mxu0 %v2002
    %2258 = vmatprep.subr.bf16.mxu0 %v2007
    %2259 = vmatpush1.bf16.msra.mxu0 %v2006
    %2260 = vmatprep.subr.bf16.mxu0 %v2011
    %2261 = vmatpush1.bf16.msra.mxu0 %v2010
    %2262 = vmatprep.subr.bf16.mxu0 %v2015
    %2263 = vmatpush1.bf16.msra.mxu0 %v2014
    %2264 = vmatprep.subr.bf16.mxu0 %v2019
    %2265 = vmatpush1.bf16.msra.mxu0 %v2018
    %2266 = vmatprep.subr.bf16.mxu0 %v2023
    %2267 = vmatpush1.bf16.msra.mxu0 %v2022
    %2268 = vmatprep.subr.bf16.mxu0 %v2027
    %2269 = vmatpush1.bf16.msra.mxu0 %v2026
    %2270 = vmatprep.subr.bf16.mxu0 %v2031
    %2271 = vmatpush1.bf16.msra.mxu0 %v2030
    %2272 = vmatprep.subr.bf16.mxu0 %v2035
    %2273 = vmatpush1.bf16.msra.mxu0 %v2034
    %2274 = vmatprep.subr.bf16.mxu0 %v2039
    %2275 = vmatpush1.bf16.msra.mxu0 %v2038
    %2276 = vmatprep.subr.bf16.mxu0 %v2043
    %2277 = vmatpush1.bf16.msra.mxu0 %v2042
    %2278 = vmatprep.subr.bf16.mxu0 %v2047
    %2279 = vmatpush1.bf16.msra.mxu0 %v2046
    %2280 = vmatprep.subr.bf16.mxu0 %v2051
    %2281 = vmatpush1.bf16.msra.mxu0 %v2050
    %2282 = vmatprep.subr.bf16.mxu0 %v2055
    %2283 = vmatpush1.bf16.msra.mxu0 %v2054
    %2284 = vmatprep.subr.bf16.mxu0 %v2059
    %2285 = vmatpush1.bf16.msra.mxu0 %v2058
    %2286 = vmatprep.mubr.bf16.mxu0 %v499
    %2287 = vmatmul.mubr.bf16.gmra.mrb[0].mxu0 %v498
    %v2288 = vpop.f32.mrb[0].mxu0
    %v2289 = vadd.f32 %v1520, %v2288
    %v2290 = vpop.f32.mrb[0].mxu0
    %v2291 = vadd.f32 %v1522, %v2290
    %v2292 = vpop.f32.mrb[0].mxu0
    %v2293 = vadd.f32 %v1524, %v2292
    %v2294 = vpop.f32.mrb[0].mxu0
    %v2295 = vadd.f32 %v1526, %v2294
    %2296 = vdwg.mxu0
    %2297 = vmatprep.subr.bf16.mxu0 %v2063
    %2298 = vmatpush1.bf16.msra.mxu0 %v2062
    %2299 = vmatprep.subr.bf16.mxu0 %v2067
    %2300 = vmatpush1.bf16.msra.mxu0 %v2066
    %2301 = vmatprep.subr.bf16.mxu0 %v2071
    %2302 = vmatpush1.bf16.msra.mxu0 %v2070
    %2303 = vmatprep.subr.bf16.mxu0 %v2075
    %2304 = vmatpush1.bf16.msra.mxu0 %v2074
    %2305 = vmatprep.subr.bf16.mxu0 %v2079
    %2306 = vmatpush1.bf16.msra.mxu0 %v2078
    %2307 = vmatprep.subr.bf16.mxu0 %v2083
    %2308 = vmatpush1.bf16.msra.mxu0 %v2082
    %2309 = vmatprep.subr.bf16.mxu0 %v2087
    %2310 = vmatpush1.bf16.msra.mxu0 %v2086
    %2311 = vmatprep.subr.bf16.mxu0 %v2091
    %2312 = vmatpush1.bf16.msra.mxu0 %v2090
    %2313 = vmatprep.subr.bf16.mxu0 %v2095
    %2314 = vmatpush1.bf16.msra.mxu0 %v2094
    %2315 = vmatprep.subr.bf16.mxu0 %v2099
    %2316 = vmatpush1.bf16.msra.mxu0 %v2098
    %2317 = vmatprep.subr.bf16.mxu0 %v2103
    %2318 = vmatpush1.bf16.msra.mxu0 %v2102
    %2319 = vmatprep.subr.bf16.mxu0 %v2107
    %2320 = vmatpush1.bf16.msra.mxu0 %v2106
    %2321 = vmatprep.subr.bf16.mxu0 %v2111
    %2322 = vmatpush1.bf16.msra.mxu0 %v2110
    %2323 = vmatprep.subr.bf16.mxu0 %v2115
    %2324 = vmatpush1.bf16.msra.mxu0 %v2114
    %2325 = vmatprep.subr.bf16.mxu0 %v2119
    %2326 = vmatpush1.bf16.msra.mxu0 %v2118
    %2327 = vmatprep.subr.bf16.mxu0 %v2123
    %2328 = vmatpush1.bf16.msra.mxu0 %v2122
    %2329 = vmatprep.mubr.bf16.mxu0 %v501
    %2330 = vmatmul.mubr.bf16.gmra.mrb[0].mxu0 %v500
    %v2331 = vpop.f32.mrb[0].mxu0
    %v2332 = vadd.f32 %v2289, %v2331
    %v2333 = vpop.f32.mrb[0].mxu0
    %v2334 = vadd.f32 %v2291, %v2333
    %v2335 = vpop.f32.mrb[0].mxu0
    %v2336 = vadd.f32 %v2293, %v2335
    %v2337 = vpop.f32.mrb[0].mxu0
    %v2338 = vadd.f32 %v2295, %v2337
    %2339 = vdwg.mxu0
    %2340 = vmatprep.subr.bf16.mxu0 %v2001
    %2341 = vmatpush1.bf16.msra.mxu0 %v2000
    %2342 = vmatprep.subr.bf16.mxu0 %v2005
    %2343 = vmatpush1.bf16.msra.mxu0 %v2004
    %2344 = vmatprep.subr.bf16.mxu0 %v2009
    %2345 = vmatpush1.bf16.msra.mxu0 %v2008
    %2346 = vmatprep.subr.bf16.mxu0 %v2013
    %2347 = vmatpush1.bf16.msra.mxu0 %v2012
    %2348 = vmatprep.subr.bf16.mxu0 %v2017
    %2349 = vmatpush1.bf16.msra.mxu0 %v2016
    %2350 = vmatprep.subr.bf16.mxu0 %v2021
    %2351 = vmatpush1.bf16.msra.mxu0 %v2020
    %2352 = vmatprep.subr.bf16.mxu0 %v2025
    %2353 = vmatpush1.bf16.msra.mxu0 %v2024
    %2354 = vmatprep.subr.bf16.mxu0 %v2029
    %2355 = vmatpush1.bf16.msra.mxu0 %v2028
    %2356 = vmatprep.subr.bf16.mxu0 %v2033
    %2357 = vmatpush1.bf16.msra.mxu0 %v2032
    %2358 = vmatprep.subr.bf16.mxu0 %v2037
    %2359 = vmatpush1.bf16.msra.mxu0 %v2036
    %2360 = vmatprep.subr.bf16.mxu0 %v2041
    %2361 = vmatpush1.bf16.msra.mxu0 %v2040
    %2362 = vmatprep.subr.bf16.mxu0 %v2045
    %2363 = vmatpush1.bf16.msra.mxu0 %v2044
    %2364 = vmatprep.subr.bf16.mxu0 %v2049
    %2365 = vmatpush1.bf16.msra.mxu0 %v2048
    %2366 = vmatprep.subr.bf16.mxu0 %v2053
    %2367 = vmatpush1.bf16.msra.mxu0 %v2052
    %2368 = vmatprep.subr.bf16.mxu0 %v2057
    %2369 = vmatpush1.bf16.msra.mxu0 %v2056
    %2370 = vmatprep.subr.bf16.mxu0 %v2061
    %2371 = vmatpush1.bf16.msra.mxu0 %v2060
    %2372 = vmatprep.mubr.bf16.mxu0 %v499
    %2373 = vmatmul.mubr.bf16.gmra.mrb[0].mxu0 %v498
    %v2374 = vpop.f32.mrb[0].mxu0
    %v2375 = vadd.f32 %v1606, %v2374
    %v2376 = vpop.f32.mrb[0].mxu0
    %v2377 = vadd.f32 %v1608, %v2376
    %v2378 = vpop.f32.mrb[0].mxu0
    %v2379 = vadd.f32 %v1610, %v2378
    %v2380 = vpop.f32.mrb[0].mxu0
    %v2381 = vadd.f32 %v1612, %v2380
    %2382 = vdwg.mxu0
    %2383 = vmatprep.subr.bf16.mxu0 %v2065
    %2384 = vmatpush1.bf16.msra.mxu0 %v2064
    %2385 = vmatprep.subr.bf16.mxu0 %v2069
    %2386 = vmatpush1.bf16.msra.mxu0 %v2068
    %2387 = vmatprep.subr.bf16.mxu0 %v2073
    %2388 = vmatpush1.bf16.msra.mxu0 %v2072
    %2389 = vmatprep.subr.bf16.mxu0 %v2077
    %2390 = vmatpush1.bf16.msra.mxu0 %v2076
    %2391 = vmatprep.subr.bf16.mxu0 %v2081
    %2392 = vmatpush1.bf16.msra.mxu0 %v2080
    %2393 = vmatprep.subr.bf16.mxu0 %v2085
    %2394 = vmatpush1.bf16.msra.mxu0 %v2084
    %2395 = vmatprep.subr.bf16.mxu0 %v2089
    %2396 = vmatpush1.bf16.msra.mxu0 %v2088
    %2397 = vmatprep.subr.bf16.mxu0 %v2093
    %2398 = vmatpush1.bf16.msra.mxu0 %v2092
    %2399 = vmatprep.subr.bf16.mxu0 %v2097
    %2400 = vmatpush1.bf16.msra.mxu0 %v2096
    %2401 = vmatprep.subr.bf16.mxu0 %v2101
    %2402 = vmatpush1.bf16.msra.mxu0 %v2100
    %2403 = vmatprep.subr.bf16.mxu0 %v2105
    %2404 = vmatpush1.bf16.msra.mxu0 %v2104
    %2405 = vmatprep.subr.bf16.mxu0 %v2109
    %2406 = vmatpush1.bf16.msra.mxu0 %v2108
    %2407 = vmatprep.subr.bf16.mxu0 %v2113
    %2408 = vmatpush1.bf16.msra.mxu0 %v2112
    %2409 = vmatprep.subr.bf16.mxu0 %v2117
    %2410 = vmatpush1.bf16.msra.mxu0 %v2116
    %2411 = vmatprep.subr.bf16.mxu0 %v2121
    %2412 = vmatpush1.bf16.msra.mxu0 %v2120
    %2413 = vmatprep.subr.bf16.mxu0 %v2125
    %2414 = vmatpush1.bf16.msra.mxu0 %v2124
    %2415 = vmatprep.mubr.bf16.mxu0 %v501
    %2416 = vmatmul.mubr.bf16.gmra.mrb[0].mxu0 %v500
    %v2417 = vpop.f32.mrb[0].mxu0
    %v2418 = vadd.f32 %v2375, %v2417
    %v2419 = vpop.f32.mrb[0].mxu0
    %v2420 = vadd.f32 %v2377, %v2419
    %v2421 = vpop.f32.mrb[0].mxu0
    %v2422 = vadd.f32 %v2379, %v2421
    %v2423 = vpop.f32.mrb[0].mxu0
    %v2424 = vadd.f32 %v2381, %v2423
    %2425 = vdwg.mxu0
    %v2426 = vld [vmem:[%s8] sm:$0xf]
    %v2428 = vlaneseq
    %v2429 = vshrl.u32 %v2428, 7
    %v2430 = vsub.s32 0, %v2429
    %v2431 = vrot.slane %v2426, %v2430
    %v2432 = vlaneseq
    %v2433 = vshrl.u32 %v2432, 7
    %v2434 = vsub.s32 1, %v2433
    %v2435 = vrot.slane %v2426, %v2434
    %v2436 = vlaneseq
    %v2437 = vshrl.u32 %v2436, 7
    %v2438 = vsub.s32 2, %v2437
    %v2439 = vrot.slane %v2426, %v2438
    %v2440 = vlaneseq
    %v2441 = vshrl.u32 %v2440, 7
    %v2442 = vsub.s32 3, %v2441
    %v2443 = vrot.slane %v2426, %v2442
    %v2448 = vadd.f32 %v2332, %v2431
    %v2449 = vadd.f32 %v2334, %v2435
    %v2450 = vadd.f32 %v2418, %v2439
    %v2451 = vadd.f32 %v2420, %v2443
    %v2452 = vadd.f32 %v2336, %v2431
    %v2453 = vadd.f32 %v2338, %v2435
    %v2454 = vadd.f32 %v2422, %v2439
    %v2455 = vadd.f32 %v2424, %v2443
    %2456 = vst [vmem:[#allocation16] sm:$0xff] %v2448
    %2457 = vst [vmem:[#allocation16 + $0x8] sm:$0xff] %v2449
    %2458 = vst [vmem:[#allocation16 + $0x10] sm:$0xff] %v2450
    %2459 = vst [vmem:[#allocation16 + $0x18] sm:$0xff] %v2451
    %2460 = vst [vmem:[#allocation16 + $0x20] sm:$0xff] %v2452
    %2461 = vst [vmem:[#allocation16 + $0x28] sm:$0xff] %v2453
    %2462 = vst [vmem:[#allocation16 + $0x30] sm:$0xff] %v2454
    %2463 = vst [vmem:[#allocation16 + $0x38] sm:$0xff] %v2455
    %vm2464 = vcmp.gt.f32.partialorder %v2448, 0.0
    %vm2465 = vcmp.gt.f32.partialorder %v2449, 0.0
    %vm2466 = vcmp.gt.f32.partialorder %v2450, 0.0
    %vm2467 = vcmp.gt.f32.partialorder %v2451, 0.0
    %vm2468 = vcmp.gt.f32.partialorder %v2452, 0.0
    %vm2469 = vcmp.gt.f32.partialorder %v2453, 0.0
    %vm2470 = vcmp.gt.f32.partialorder %v2454, 0.0
    %vm2471 = vcmp.gt.f32.partialorder %v2455, 0.0
    %v2472 = vmul.f32 %v2448, 1.442695
    %v2473 = vpow.pop %v2472
    %v2474 = vmul.f32 %v2449, 1.442695
    %v2475 = vpow.pop %v2474
    %v2476 = vmul.f32 %v2450, 1.442695
    %v2477 = vpow.pop %v2476
    %v2478 = vmul.f32 %v2451, 1.442695
    %v2479 = vpow.pop %v2478
    %v2480 = vmul.f32 %v2452, 1.442695
    %v2481 = vpow.pop %v2480
    %v2482 = vmul.f32 %v2453, 1.442695
    %v2483 = vpow.pop %v2482
    %v2484 = vmul.f32 %v2454, 1.442695
    %v2485 = vpow.pop %v2484
    %v2486 = vmul.f32 %v2455, 1.442695
    %v2487 = vpow.pop %v2486
    %v2488 = vsub.f32 %v2473, 1.0
    %v2489 = vsub.f32 %v2475, 1.0
    %v2490 = vsub.f32 %v2477, 1.0
    %v2491 = vsub.f32 %v2479, 1.0
    %v2492 = vsub.f32 %v2481, 1.0
    %v2493 = vsub.f32 %v2483, 1.0
    %v2494 = vsub.f32 %v2485, 1.0
    %v2495 = vsub.f32 %v2487, 1.0
    %v2496 = vsel %vm2464, %v2448, %v2488
    %v2497 = vsel %vm2465, %v2449, %v2489
    %v2498 = vsel %vm2466, %v2450, %v2490
    %v2499 = vsel %vm2467, %v2451, %v2491
    %v2500 = vsel %vm2468, %v2452, %v2492
    %v2501 = vsel %vm2469, %v2453, %v2493
    %v2502 = vsel %vm2470, %v2454, %v2494
    %v2503 = vsel %vm2471, %v2455, %v2495
    %v2504 = vpack.c.bf16 %v2500, %v2496
    %v2505 = vpack.c.bf16 %v2501, %v2497
    %v2506 = vpack.c.bf16 %v2502, %v2498
    %v2507 = vpack.c.bf16 %v2503, %v2499
    %v2508 = vld [vmem:[#allocation13] sm:$0xff]
    %v2509 = vld [vmem:[#allocation13 + $0x8] sm:$0xff]
    %v2510 = vld [vmem:[#allocation13 + $0x10] sm:$0xff]
    %v2511 = vld [vmem:[#allocation13 + $0x18] sm:$0xff]
    %v2512 = vld [vmem:[#allocation13 + $0x20] sm:$0xff]
    %v2513 = vld [vmem:[#allocation13 + $0x28] sm:$0xff]
    %v2514 = vld [vmem:[#allocation13 + $0x30] sm:$0xff]
    %v2515 = vld [vmem:[#allocation13 + $0x38] sm:$0xff]
    %v2516 = vld [vmem:[#allocation13 + $0x40] sm:$0xff]
    %v2517 = vld [vmem:[#allocation13 + $0x48] sm:$0xff]
    %v2518 = vld [vmem:[#allocation13 + $0x50] sm:$0xff]
    %v2519 = vld [vmem:[#allocation13 + $0x58] sm:$0xff]
    %v2520 = vld [vmem:[#allocation13 + $0x60] sm:$0xff]
    %v2521 = vld [vmem:[#allocation13 + $0x68] sm:$0xff]
    %v2522 = vld [vmem:[#allocation13 + $0x70] sm:$0xff]
    %v2523 = vld [vmem:[#allocation13 + $0x78] sm:$0xff]
    %v2524 = vld [vmem:[#allocation13 + $0x80] sm:$0xff]
    %v2525 = vld [vmem:[#allocation13 + $0x88] sm:$0xff]
    %v2526 = vld [vmem:[#allocation13 + $0x90] sm:$0xff]
    %v2527 = vld [vmem:[#allocation13 + $0x98] sm:$0xff]
    %v2528 = vld [vmem:[#allocation13 + $0xa0] sm:$0xff]
    %v2529 = vld [vmem:[#allocation13 + $0xa8] sm:$0xff]
    %v2530 = vld [vmem:[#allocation13 + $0xb0] sm:$0xff]
    %v2531 = vld [vmem:[#allocation13 + $0xb8] sm:$0xff]
    %v2532 = vld [vmem:[#allocation13 + $0xc0] sm:$0xff]
    %v2533 = vld [vmem:[#allocation13 + $0xc8] sm:$0xff]
    %v2534 = vld [vmem:[#allocation13 + $0xd0] sm:$0xff]
    %v2535 = vld [vmem:[#allocation13 + $0xd8] sm:$0xff]
    %v2536 = vld [vmem:[#allocation13 + $0xe0] sm:$0xff]
    %v2537 = vld [vmem:[#allocation13 + $0xe8] sm:$0xff]
    %v2538 = vld [vmem:[#allocation13 + $0xf0] sm:$0xff]
    %v2539 = vld [vmem:[#allocation13 + $0xf8] sm:$0xff]
    %v2540 = vld [vmem:[#allocation13 + $0x100] sm:$0xff]
    %v2541 = vld [vmem:[#allocation13 + $0x108] sm:$0xff]
    %v2542 = vld [vmem:[#allocation13 + $0x110] sm:$0xff]
    %v2543 = vld [vmem:[#allocation13 + $0x118] sm:$0xff]
    %v2544 = vld [vmem:[#allocation13 + $0x120] sm:$0xff]
    %v2545 = vld [vmem:[#allocation13 + $0x128] sm:$0xff]
    %v2546 = vld [vmem:[#allocation13 + $0x130] sm:$0xff]
    %v2547 = vld [vmem:[#allocation13 + $0x138] sm:$0xff]
    %v2548 = vld [vmem:[#allocation13 + $0x140] sm:$0xff]
    %v2549 = vld [vmem:[#allocation13 + $0x148] sm:$0xff]
    %v2550 = vld [vmem:[#allocation13 + $0x150] sm:$0xff]
    %v2551 = vld [vmem:[#allocation13 + $0x158] sm:$0xff]
    %v2552 = vld [vmem:[#allocation13 + $0x160] sm:$0xff]
    %v2553 = vld [vmem:[#allocation13 + $0x168] sm:$0xff]
    %v2554 = vld [vmem:[#allocation13 + $0x170] sm:$0xff]
    %v2555 = vld [vmem:[#allocation13 + $0x178] sm:$0xff]
    %v2556 = vld [vmem:[#allocation13 + $0x180] sm:$0xff]
    %v2557 = vld [vmem:[#allocation13 + $0x188] sm:$0xff]
    %v2558 = vld [vmem:[#allocation13 + $0x190] sm:$0xff]
    %v2559 = vld [vmem:[#allocation13 + $0x198] sm:$0xff]
    %v2560 = vld [vmem:[#allocation13 + $0x1a0] sm:$0xff]
    %v2561 = vld [vmem:[#allocation13 + $0x1a8] sm:$0xff]
    %v2562 = vld [vmem:[#allocation13 + $0x1b0] sm:$0xff]
    %v2563 = vld [vmem:[#allocation13 + $0x1b8] sm:$0xff]
    %v2564 = vld [vmem:[#allocation13 + $0x1c0] sm:$0xff]
    %v2565 = vld [vmem:[#allocation13 + $0x1c8] sm:$0xff]
    %v2566 = vld [vmem:[#allocation13 + $0x1d0] sm:$0xff]
    %v2567 = vld [vmem:[#allocation13 + $0x1d8] sm:$0xff]
    %v2568 = vld [vmem:[#allocation13 + $0x1e0] sm:$0xff]
    %v2569 = vld [vmem:[#allocation13 + $0x1e8] sm:$0xff]
    %v2570 = vld [vmem:[#allocation13 + $0x1f0] sm:$0xff]
    %v2571 = vld [vmem:[#allocation13 + $0x1f8] sm:$0xff]
    %v2572 = vld [vmem:[#allocation13 + $0x200] sm:$0xff]
    %v2573 = vld [vmem:[#allocation13 + $0x208] sm:$0xff]
    %v2574 = vld [vmem:[#allocation13 + $0x210] sm:$0xff]
    %v2575 = vld [vmem:[#allocation13 + $0x218] sm:$0xff]
    %v2576 = vld [vmem:[#allocation13 + $0x220] sm:$0xff]
    %v2577 = vld [vmem:[#allocation13 + $0x228] sm:$0xff]
    %v2578 = vld [vmem:[#allocation13 + $0x230] sm:$0xff]
    %v2579 = vld [vmem:[#allocation13 + $0x238] sm:$0xff]
    %v2580 = vld [vmem:[#allocation13 + $0x240] sm:$0xff]
    %v2581 = vld [vmem:[#allocation13 + $0x248] sm:$0xff]
    %v2582 = vld [vmem:[#allocation13 + $0x250] sm:$0xff]
    %v2583 = vld [vmem:[#allocation13 + $0x258] sm:$0xff]
    %v2584 = vld [vmem:[#allocation13 + $0x260] sm:$0xff]
    %v2585 = vld [vmem:[#allocation13 + $0x268] sm:$0xff]
    %v2586 = vld [vmem:[#allocation13 + $0x270] sm:$0xff]
    %v2587 = vld [vmem:[#allocation13 + $0x278] sm:$0xff]
    %v2588 = vld [vmem:[#allocation13 + $0x280] sm:$0xff]
    %v2589 = vld [vmem:[#allocation13 + $0x288] sm:$0xff]
    %v2590 = vld [vmem:[#allocation13 + $0x290] sm:$0xff]
    %v2591 = vld [vmem:[#allocation13 + $0x298] sm:$0xff]
    %v2592 = vld [vmem:[#allocation13 + $0x2a0] sm:$0xff]
    %v2593 = vld [vmem:[#allocation13 + $0x2a8] sm:$0xff]
    %v2594 = vld [vmem:[#allocation13 + $0x2b0] sm:$0xff]
    %v2595 = vld [vmem:[#allocation13 + $0x2b8] sm:$0xff]
    %v2596 = vld [vmem:[#allocation13 + $0x2c0] sm:$0xff]
    %v2597 = vld [vmem:[#allocation13 + $0x2c8] sm:$0xff]
    %v2598 = vld [vmem:[#allocation13 + $0x2d0] sm:$0xff]
    %v2599 = vld [vmem:[#allocation13 + $0x2d8] sm:$0xff]
    %v2600 = vld [vmem:[#allocation13 + $0x2e0] sm:$0xff]
    %v2601 = vld [vmem:[#allocation13 + $0x2e8] sm:$0xff]
    %v2602 = vld [vmem:[#allocation13 + $0x2f0] sm:$0xff]
    %v2603 = vld [vmem:[#allocation13 + $0x2f8] sm:$0xff]
    %v2604 = vld [vmem:[#allocation13 + $0x300] sm:$0xff]
    %v2605 = vld [vmem:[#allocation13 + $0x308] sm:$0xff]
    %v2606 = vld [vmem:[#allocation13 + $0x310] sm:$0xff]
    %v2607 = vld [vmem:[#allocation13 + $0x318] sm:$0xff]
    %v2608 = vld [vmem:[#allocation13 + $0x320] sm:$0xff]
    %v2609 = vld [vmem:[#allocation13 + $0x328] sm:$0xff]
    %v2610 = vld [vmem:[#allocation13 + $0x330] sm:$0xff]
    %v2611 = vld [vmem:[#allocation13 + $0x338] sm:$0xff]
    %v2612 = vld [vmem:[#allocation13 + $0x340] sm:$0xff]
    %v2613 = vld [vmem:[#allocation13 + $0x348] sm:$0xff]
    %v2614 = vld [vmem:[#allocation13 + $0x350] sm:$0xff]
    %v2615 = vld [vmem:[#allocation13 + $0x358] sm:$0xff]
    %v2616 = vld [vmem:[#allocation13 + $0x360] sm:$0xff]
    %v2617 = vld [vmem:[#allocation13 + $0x368] sm:$0xff]
    %v2618 = vld [vmem:[#allocation13 + $0x370] sm:$0xff]
    %v2619 = vld [vmem:[#allocation13 + $0x378] sm:$0xff]
    %v2620 = vld [vmem:[#allocation13 + $0x380] sm:$0xff]
    %v2621 = vld [vmem:[#allocation13 + $0x388] sm:$0xff]
    %v2622 = vld [vmem:[#allocation13 + $0x390] sm:$0xff]
    %v2623 = vld [vmem:[#allocation13 + $0x398] sm:$0xff]
    %v2624 = vld [vmem:[#allocation13 + $0x3a0] sm:$0xff]
    %v2625 = vld [vmem:[#allocation13 + $0x3a8] sm:$0xff]
    %v2626 = vld [vmem:[#allocation13 + $0x3b0] sm:$0xff]
    %v2627 = vld [vmem:[#allocation13 + $0x3b8] sm:$0xff]
    %v2628 = vld [vmem:[#allocation13 + $0x3c0] sm:$0xff]
    %v2629 = vld [vmem:[#allocation13 + $0x3c8] sm:$0xff]
    %v2630 = vld [vmem:[#allocation13 + $0x3d0] sm:$0xff]
    %v2631 = vld [vmem:[#allocation13 + $0x3d8] sm:$0xff]
    %v2632 = vld [vmem:[#allocation13 + $0x3e0] sm:$0xff]
    %v2633 = vld [vmem:[#allocation13 + $0x3e8] sm:$0xff]
    %v2634 = vld [vmem:[#allocation13 + $0x3f0] sm:$0xff]
    %v2635 = vld [vmem:[#allocation13 + $0x3f8] sm:$0xff]
    %v2636 = vld [vmem:[%s10] sm:$0xf]
    %v2638 = vlaneseq
    %v2639 = vshrl.u32 %v2638, 7
    %v2640 = vsub.s32 0, %v2639
    %v2641 = vrot.slane %v2636, %v2640
    %v2642 = vlaneseq
    %v2643 = vshrl.u32 %v2642, 7
    %v2644 = vsub.s32 1, %v2643
    %v2645 = vrot.slane %v2636, %v2644
    %v2646 = vlaneseq
    %v2647 = vshrl.u32 %v2646, 7
    %v2648 = vsub.s32 2, %v2647
    %v2649 = vrot.slane %v2636, %v2648
    %v2650 = vlaneseq
    %v2651 = vshrl.u32 %v2650, 7
    %v2652 = vsub.s32 3, %v2651
    %v2653 = vrot.slane %v2636, %v2652
    %v2786 = vunpack.c.l.b16 %v2508
    %v2787 = vunpack.c.h.b16 %v2508
    %v2788 = vunpack.c.l.b16 %v2509
    %v2789 = vunpack.c.h.b16 %v2509
    %v2790 = vunpack.c.l.b16 %v2510
    %v2791 = vunpack.c.h.b16 %v2510
    %v2792 = vunpack.c.l.b16 %v2511
    %v2793 = vunpack.c.h.b16 %v2511
    %v2794 = vunpack.c.l.b16 %v2512
    %v2795 = vunpack.c.h.b16 %v2512
    %v2796 = vunpack.c.l.b16 %v2513
    %v2797 = vunpack.c.h.b16 %v2513
    %v2798 = vunpack.c.l.b16 %v2514
    %v2799 = vunpack.c.h.b16 %v2514
    %v2800 = vunpack.c.l.b16 %v2515
    %v2801 = vunpack.c.h.b16 %v2515
    %v2802 = vunpack.c.l.b16 %v2516
    %v2803 = vunpack.c.h.b16 %v2516
    %v2804 = vunpack.c.l.b16 %v2517
    %v2805 = vunpack.c.h.b16 %v2517
    %v2806 = vunpack.c.l.b16 %v2518
    %v2807 = vunpack.c.h.b16 %v2518
    %v2808 = vunpack.c.l.b16 %v2519
    %v2809 = vunpack.c.h.b16 %v2519
    %v2810 = vunpack.c.l.b16 %v2520
    %v2811 = vunpack.c.h.b16 %v2520
    %v2812 = vunpack.c.l.b16 %v2521
    %v2813 = vunpack.c.h.b16 %v2521
    %v2814 = vunpack.c.l.b16 %v2522
    %v2815 = vunpack.c.h.b16 %v2522
    %v2816 = vunpack.c.l.b16 %v2523
    %v2817 = vunpack.c.h.b16 %v2523
    %v2818 = vunpack.c.l.b16 %v2524
    %v2819 = vunpack.c.h.b16 %v2524
    %v2820 = vunpack.c.l.b16 %v2525
    %v2821 = vunpack.c.h.b16 %v2525
    %v2822 = vunpack.c.l.b16 %v2526
    %v2823 = vunpack.c.h.b16 %v2526
    %v2824 = vunpack.c.l.b16 %v2527
    %v2825 = vunpack.c.h.b16 %v2527
    %v2826 = vunpack.c.l.b16 %v2528
    %v2827 = vunpack.c.h.b16 %v2528
    %v2828 = vunpack.c.l.b16 %v2529
    %v2829 = vunpack.c.h.b16 %v2529
    %v2830 = vunpack.c.l.b16 %v2530
    %v2831 = vunpack.c.h.b16 %v2530
    %v2832 = vunpack.c.l.b16 %v2531
    %v2833 = vunpack.c.h.b16 %v2531
    %v2834 = vunpack.c.l.b16 %v2532
    %v2835 = vunpack.c.h.b16 %v2532
    %v2836 = vunpack.c.l.b16 %v2533
    %v2837 = vunpack.c.h.b16 %v2533
    %v2838 = vunpack.c.l.b16 %v2534
    %v2839 = vunpack.c.h.b16 %v2534
    %v2840 = vunpack.c.l.b16 %v2535
    %v2841 = vunpack.c.h.b16 %v2535
    %v2842 = vunpack.c.l.b16 %v2536
    %v2843 = vunpack.c.h.b16 %v2536
    %v2844 = vunpack.c.l.b16 %v2537
    %v2845 = vunpack.c.h.b16 %v2537
    %v2846 = vunpack.c.l.b16 %v2538
    %v2847 = vunpack.c.h.b16 %v2538
    %v2848 = vunpack.c.l.b16 %v2539
    %v2849 = vunpack.c.h.b16 %v2539
    %v2850 = vunpack.c.l.b16 %v2540
    %v2851 = vunpack.c.h.b16 %v2540
    %v2852 = vunpack.c.l.b16 %v2541
    %v2853 = vunpack.c.h.b16 %v2541
    %v2854 = vunpack.c.l.b16 %v2542
    %v2855 = vunpack.c.h.b16 %v2542
    %v2856 = vunpack.c.l.b16 %v2543
    %v2857 = vunpack.c.h.b16 %v2543
    %v2858 = vunpack.c.l.b16 %v2544
    %v2859 = vunpack.c.h.b16 %v2544
    %v2860 = vunpack.c.l.b16 %v2545
    %v2861 = vunpack.c.h.b16 %v2545
    %v2862 = vunpack.c.l.b16 %v2546
    %v2863 = vunpack.c.h.b16 %v2546
    %v2864 = vunpack.c.l.b16 %v2547
    %v2865 = vunpack.c.h.b16 %v2547
    %v2866 = vunpack.c.l.b16 %v2548
    %v2867 = vunpack.c.h.b16 %v2548
    %v2868 = vunpack.c.l.b16 %v2549
    %v2869 = vunpack.c.h.b16 %v2549
    %v2870 = vunpack.c.l.b16 %v2550
    %v2871 = vunpack.c.h.b16 %v2550
    %v2872 = vunpack.c.l.b16 %v2551
    %v2873 = vunpack.c.h.b16 %v2551
    %v2874 = vunpack.c.l.b16 %v2552
    %v2875 = vunpack.c.h.b16 %v2552
    %v2876 = vunpack.c.l.b16 %v2553
    %v2877 = vunpack.c.h.b16 %v2553
    %v2878 = vunpack.c.l.b16 %v2554
    %v2879 = vunpack.c.h.b16 %v2554
    %v2880 = vunpack.c.l.b16 %v2555
    %v2881 = vunpack.c.h.b16 %v2555
    %v2882 = vunpack.c.l.b16 %v2556
    %v2883 = vunpack.c.h.b16 %v2556
    %v2884 = vunpack.c.l.b16 %v2557
    %v2885 = vunpack.c.h.b16 %v2557
    %v2886 = vunpack.c.l.b16 %v2558
    %v2887 = vunpack.c.h.b16 %v2558
    %v2888 = vunpack.c.l.b16 %v2559
    %v2889 = vunpack.c.h.b16 %v2559
    %v2890 = vunpack.c.l.b16 %v2560
    %v2891 = vunpack.c.h.b16 %v2560
    %v2892 = vunpack.c.l.b16 %v2561
    %v2893 = vunpack.c.h.b16 %v2561
    %v2894 = vunpack.c.l.b16 %v2562
    %v2895 = vunpack.c.h.b16 %v2562
    %v2896 = vunpack.c.l.b16 %v2563
    %v2897 = vunpack.c.h.b16 %v2563
    %v2898 = vunpack.c.l.b16 %v2564
    %v2899 = vunpack.c.h.b16 %v2564
    %v2900 = vunpack.c.l.b16 %v2565
    %v2901 = vunpack.c.h.b16 %v2565
    %v2902 = vunpack.c.l.b16 %v2566
    %v2903 = vunpack.c.h.b16 %v2566
    %v2904 = vunpack.c.l.b16 %v2567
    %v2905 = vunpack.c.h.b16 %v2567
    %v2906 = vunpack.c.l.b16 %v2568
    %v2907 = vunpack.c.h.b16 %v2568
    %v2908 = vunpack.c.l.b16 %v2569
    %v2909 = vunpack.c.h.b16 %v2569
    %v2910 = vunpack.c.l.b16 %v2570
    %v2911 = vunpack.c.h.b16 %v2570
    %v2912 = vunpack.c.l.b16 %v2571
    %v2913 = vunpack.c.h.b16 %v2571
    %v2914 = vunpack.c.l.b16 %v2572
    %v2915 = vunpack.c.h.b16 %v2572
    %v2916 = vunpack.c.l.b16 %v2573
    %v2917 = vunpack.c.h.b16 %v2573
    %v2918 = vunpack.c.l.b16 %v2574
    %v2919 = vunpack.c.h.b16 %v2574
    %v2920 = vunpack.c.l.b16 %v2575
    %v2921 = vunpack.c.h.b16 %v2575
    %v2922 = vunpack.c.l.b16 %v2576
    %v2923 = vunpack.c.h.b16 %v2576
    %v2924 = vunpack.c.l.b16 %v2577
    %v2925 = vunpack.c.h.b16 %v2577
    %v2926 = vunpack.c.l.b16 %v2578
    %v2927 = vunpack.c.h.b16 %v2578
    %v2928 = vunpack.c.l.b16 %v2579
    %v2929 = vunpack.c.h.b16 %v2579
    %v2930 = vunpack.c.l.b16 %v2580
    %v2931 = vunpack.c.h.b16 %v2580
    %v2932 = vunpack.c.l.b16 %v2581
    %v2933 = vunpack.c.h.b16 %v2581
    %v2934 = vunpack.c.l.b16 %v2582
    %v2935 = vunpack.c.h.b16 %v2582
    %v2936 = vunpack.c.l.b16 %v2583
    %v2937 = vunpack.c.h.b16 %v2583
    %v2938 = vunpack.c.l.b16 %v2584
    %v2939 = vunpack.c.h.b16 %v2584
    %v2940 = vunpack.c.l.b16 %v2585
    %v2941 = vunpack.c.h.b16 %v2585
    %v2942 = vunpack.c.l.b16 %v2586
    %v2943 = vunpack.c.h.b16 %v2586
    %v2944 = vunpack.c.l.b16 %v2587
    %v2945 = vunpack.c.h.b16 %v2587
    %v2946 = vunpack.c.l.b16 %v2588
    %v2947 = vunpack.c.h.b16 %v2588
    %v2948 = vunpack.c.l.b16 %v2589
    %v2949 = vunpack.c.h.b16 %v2589
    %v2950 = vunpack.c.l.b16 %v2590
    %v2951 = vunpack.c.h.b16 %v2590
    %v2952 = vunpack.c.l.b16 %v2591
    %v2953 = vunpack.c.h.b16 %v2591
    %v2954 = vunpack.c.l.b16 %v2592
    %v2955 = vunpack.c.h.b16 %v2592
    %v2956 = vunpack.c.l.b16 %v2593
    %v2957 = vunpack.c.h.b16 %v2593
    %v2958 = vunpack.c.l.b16 %v2594
    %v2959 = vunpack.c.h.b16 %v2594
    %v2960 = vunpack.c.l.b16 %v2595
    %v2961 = vunpack.c.h.b16 %v2595
    %v2962 = vunpack.c.l.b16 %v2596
    %v2963 = vunpack.c.h.b16 %v2596
    %v2964 = vunpack.c.l.b16 %v2597
    %v2965 = vunpack.c.h.b16 %v2597
    %v2966 = vunpack.c.l.b16 %v2598
    %v2967 = vunpack.c.h.b16 %v2598
    %v2968 = vunpack.c.l.b16 %v2599
    %v2969 = vunpack.c.h.b16 %v2599
    %v2970 = vunpack.c.l.b16 %v2600
    %v2971 = vunpack.c.h.b16 %v2600
    %v2972 = vunpack.c.l.b16 %v2601
    %v2973 = vunpack.c.h.b16 %v2601
    %v2974 = vunpack.c.l.b16 %v2602
    %v2975 = vunpack.c.h.b16 %v2602
    %v2976 = vunpack.c.l.b16 %v2603
    %v2977 = vunpack.c.h.b16 %v2603
    %v2978 = vunpack.c.l.b16 %v2604
    %v2979 = vunpack.c.h.b16 %v2604
    %v2980 = vunpack.c.l.b16 %v2605
    %v2981 = vunpack.c.h.b16 %v2605
    %v2982 = vunpack.c.l.b16 %v2606
    %v2983 = vunpack.c.h.b16 %v2606
    %v2984 = vunpack.c.l.b16 %v2607
    %v2985 = vunpack.c.h.b16 %v2607
    %v2986 = vunpack.c.l.b16 %v2608
    %v2987 = vunpack.c.h.b16 %v2608
    %v2988 = vunpack.c.l.b16 %v2609
    %v2989 = vunpack.c.h.b16 %v2609
    %v2990 = vunpack.c.l.b16 %v2610
    %v2991 = vunpack.c.h.b16 %v2610
    %v2992 = vunpack.c.l.b16 %v2611
    %v2993 = vunpack.c.h.b16 %v2611
    %v2994 = vunpack.c.l.b16 %v2612
    %v2995 = vunpack.c.h.b16 %v2612
    %v2996 = vunpack.c.l.b16 %v2613
    %v2997 = vunpack.c.h.b16 %v2613
    %v2998 = vunpack.c.l.b16 %v2614
    %v2999 = vunpack.c.h.b16 %v2614
    %v3000 = vunpack.c.l.b16 %v2615
    %v3001 = vunpack.c.h.b16 %v2615
    %v3002 = vunpack.c.l.b16 %v2616
    %v3003 = vunpack.c.h.b16 %v2616
    %v3004 = vunpack.c.l.b16 %v2617
    %v3005 = vunpack.c.h.b16 %v2617
    %v3006 = vunpack.c.l.b16 %v2618
    %v3007 = vunpack.c.h.b16 %v2618
    %v3008 = vunpack.c.l.b16 %v2619
    %v3009 = vunpack.c.h.b16 %v2619
    %v3010 = vunpack.c.l.b16 %v2620
    %v3011 = vunpack.c.h.b16 %v2620
    %v3012 = vunpack.c.l.b16 %v2621
    %v3013 = vunpack.c.h.b16 %v2621
    %v3014 = vunpack.c.l.b16 %v2622
    %v3015 = vunpack.c.h.b16 %v2622
    %v3016 = vunpack.c.l.b16 %v2623
    %v3017 = vunpack.c.h.b16 %v2623
    %v3018 = vunpack.c.l.b16 %v2624
    %v3019 = vunpack.c.h.b16 %v2624
    %v3020 = vunpack.c.l.b16 %v2625
    %v3021 = vunpack.c.h.b16 %v2625
    %v3022 = vunpack.c.l.b16 %v2626
    %v3023 = vunpack.c.h.b16 %v2626
    %v3024 = vunpack.c.l.b16 %v2627
    %v3025 = vunpack.c.h.b16 %v2627
    %v3026 = vunpack.c.l.b16 %v2628
    %v3027 = vunpack.c.h.b16 %v2628
    %v3028 = vunpack.c.l.b16 %v2629
    %v3029 = vunpack.c.h.b16 %v2629
    %v3030 = vunpack.c.l.b16 %v2630
    %v3031 = vunpack.c.h.b16 %v2630
    %v3032 = vunpack.c.l.b16 %v2631
    %v3033 = vunpack.c.h.b16 %v2631
    %v3034 = vunpack.c.l.b16 %v2632
    %v3035 = vunpack.c.h.b16 %v2632
    %v3036 = vunpack.c.l.b16 %v2633
    %v3037 = vunpack.c.h.b16 %v2633
    %v3038 = vunpack.c.l.b16 %v2634
    %v3039 = vunpack.c.h.b16 %v2634
    %v3040 = vunpack.c.l.b16 %v2635
    %v3041 = vunpack.c.h.b16 %v2635
    %v3042 = vpack.c.b16 %v2790, %v2786
    %v3043 = vpack.c.b16 %v2791, %v2787
    %v3044 = vpack.c.b16 %v2792, %v2788
    %v3045 = vpack.c.b16 %v2793, %v2789
    %v3046 = vpack.c.b16 %v2798, %v2794
    %v3047 = vpack.c.b16 %v2799, %v2795
    %v3048 = vpack.c.b16 %v2800, %v2796
    %v3049 = vpack.c.b16 %v2801, %v2797
    %v3050 = vpack.c.b16 %v2806, %v2802
    %v3051 = vpack.c.b16 %v2807, %v2803
    %v3052 = vpack.c.b16 %v2808, %v2804
    %v3053 = vpack.c.b16 %v2809, %v2805
    %v3054 = vpack.c.b16 %v2814, %v2810
    %v3055 = vpack.c.b16 %v2815, %v2811
    %v3056 = vpack.c.b16 %v2816, %v2812
    %v3057 = vpack.c.b16 %v2817, %v2813
    %v3058 = vpack.c.b16 %v2822, %v2818
    %v3059 = vpack.c.b16 %v2823, %v2819
    %v3060 = vpack.c.b16 %v2824, %v2820
    %v3061 = vpack.c.b16 %v2825, %v2821
    %v3062 = vpack.c.b16 %v2830, %v2826
    %v3063 = vpack.c.b16 %v2831, %v2827
    %v3064 = vpack.c.b16 %v2832, %v2828
    %v3065 = vpack.c.b16 %v2833, %v2829
    %v3066 = vpack.c.b16 %v2838, %v2834
    %v3067 = vpack.c.b16 %v2839, %v2835
    %v3068 = vpack.c.b16 %v2840, %v2836
    %v3069 = vpack.c.b16 %v2841, %v2837
    %v3070 = vpack.c.b16 %v2846, %v2842
    %v3071 = vpack.c.b16 %v2847, %v2843
    %v3072 = vpack.c.b16 %v2848, %v2844
    %v3073 = vpack.c.b16 %v2849, %v2845
    %v3074 = vpack.c.b16 %v2854, %v2850
    %v3075 = vpack.c.b16 %v2855, %v2851
    %v3076 = vpack.c.b16 %v2856, %v2852
    %v3077 = vpack.c.b16 %v2857, %v2853
    %v3078 = vpack.c.b16 %v2862, %v2858
    %v3079 = vpack.c.b16 %v2863, %v2859
    %v3080 = vpack.c.b16 %v2864, %v2860
    %v3081 = vpack.c.b16 %v2865, %v2861
    %v3082 = vpack.c.b16 %v2870, %v2866
    %v3083 = vpack.c.b16 %v2871, %v2867
    %v3084 = vpack.c.b16 %v2872, %v2868
    %v3085 = vpack.c.b16 %v2873, %v2869
    %v3086 = vpack.c.b16 %v2878, %v2874
    %v3087 = vpack.c.b16 %v2879, %v2875
    %v3088 = vpack.c.b16 %v2880, %v2876
    %v3089 = vpack.c.b16 %v2881, %v2877
    %v3090 = vpack.c.b16 %v2886, %v2882
    %v3091 = vpack.c.b16 %v2887, %v2883
    %v3092 = vpack.c.b16 %v2888, %v2884
    %v3093 = vpack.c.b16 %v2889, %v2885
    %v3094 = vpack.c.b16 %v2894, %v2890
    %v3095 = vpack.c.b16 %v2895, %v2891
    %v3096 = vpack.c.b16 %v2896, %v2892
    %v3097 = vpack.c.b16 %v2897, %v2893
    %v3098 = vpack.c.b16 %v2902, %v2898
    %v3099 = vpack.c.b16 %v2903, %v2899
    %v3100 = vpack.c.b16 %v2904, %v2900
    %v3101 = vpack.c.b16 %v2905, %v2901
    %v3102 = vpack.c.b16 %v2910, %v2906
    %v3103 = vpack.c.b16 %v2911, %v2907
    %v3104 = vpack.c.b16 %v2912, %v2908
    %v3105 = vpack.c.b16 %v2913, %v2909
    %v3106 = vpack.c.b16 %v2918, %v2914
    %v3107 = vpack.c.b16 %v2919, %v2915
    %v3108 = vpack.c.b16 %v2920, %v2916
    %v3109 = vpack.c.b16 %v2921, %v2917
    %v3110 = vpack.c.b16 %v2926, %v2922
    %v3111 = vpack.c.b16 %v2927, %v2923
    %v3112 = vpack.c.b16 %v2928, %v2924
    %v3113 = vpack.c.b16 %v2929, %v2925
    %v3114 = vpack.c.b16 %v2934, %v2930
    %v3115 = vpack.c.b16 %v2935, %v2931
    %v3116 = vpack.c.b16 %v2936, %v2932
    %v3117 = vpack.c.b16 %v2937, %v2933
    %v3118 = vpack.c.b16 %v2942, %v2938
    %v3119 = vpack.c.b16 %v2943, %v2939
    %v3120 = vpack.c.b16 %v2944, %v2940
    %v3121 = vpack.c.b16 %v2945, %v2941
    %v3122 = vpack.c.b16 %v2950, %v2946
    %v3123 = vpack.c.b16 %v2951, %v2947
    %v3124 = vpack.c.b16 %v2952, %v2948
    %v3125 = vpack.c.b16 %v2953, %v2949
    %v3126 = vpack.c.b16 %v2958, %v2954
    %v3127 = vpack.c.b16 %v2959, %v2955
    %v3128 = vpack.c.b16 %v2960, %v2956
    %v3129 = vpack.c.b16 %v2961, %v2957
    %v3130 = vpack.c.b16 %v2966, %v2962
    %v3131 = vpack.c.b16 %v2967, %v2963
    %v3132 = vpack.c.b16 %v2968, %v2964
    %v3133 = vpack.c.b16 %v2969, %v2965
    %v3134 = vpack.c.b16 %v2974, %v2970
    %v3135 = vpack.c.b16 %v2975, %v2971
    %v3136 = vpack.c.b16 %v2976, %v2972
    %v3137 = vpack.c.b16 %v2977, %v2973
    %v3138 = vpack.c.b16 %v2982, %v2978
    %v3139 = vpack.c.b16 %v2983, %v2979
    %v3140 = vpack.c.b16 %v2984, %v2980
    %v3141 = vpack.c.b16 %v2985, %v2981
    %v3142 = vpack.c.b16 %v2990, %v2986
    %v3143 = vpack.c.b16 %v2991, %v2987
    %v3144 = vpack.c.b16 %v2992, %v2988
    %v3145 = vpack.c.b16 %v2993, %v2989
    %v3146 = vpack.c.b16 %v2998, %v2994
    %v3147 = vpack.c.b16 %v2999, %v2995
    %v3148 = vpack.c.b16 %v3000, %v2996
    %v3149 = vpack.c.b16 %v3001, %v2997
    %v3150 = vpack.c.b16 %v3006, %v3002
    %v3151 = vpack.c.b16 %v3007, %v3003
    %v3152 = vpack.c.b16 %v3008, %v3004
    %v3153 = vpack.c.b16 %v3009, %v3005
    %v3154 = vpack.c.b16 %v3014, %v3010
    %v3155 = vpack.c.b16 %v3015, %v3011
    %v3156 = vpack.c.b16 %v3016, %v3012
    %v3157 = vpack.c.b16 %v3017, %v3013
    %v3158 = vpack.c.b16 %v3022, %v3018
    %v3159 = vpack.c.b16 %v3023, %v3019
    %v3160 = vpack.c.b16 %v3024, %v3020
    %v3161 = vpack.c.b16 %v3025, %v3021
    %v3162 = vpack.c.b16 %v3030, %v3026
    %v3163 = vpack.c.b16 %v3031, %v3027
    %v3164 = vpack.c.b16 %v3032, %v3028
    %v3165 = vpack.c.b16 %v3033, %v3029
    %v3166 = vpack.c.b16 %v3038, %v3034
    %v3167 = vpack.c.b16 %v3039, %v3035
    %v3168 = vpack.c.b16 %v3040, %v3036
    %v3169 = vpack.c.b16 %v3041, %v3037
    %3298 = vmatprep.subr.bf16.mxu0 %v3043
    %3299 = vmatpush1.bf16.msra.mxu0 %v3042
    %3300 = vmatprep.subr.bf16.mxu0 %v3047
    %3301 = vmatpush1.bf16.msra.mxu0 %v3046
    %3302 = vmatprep.subr.bf16.mxu0 %v3051
    %3303 = vmatpush1.bf16.msra.mxu0 %v3050
    %3304 = vmatprep.subr.bf16.mxu0 %v3055
    %3305 = vmatpush1.bf16.msra.mxu0 %v3054
    %3306 = vmatprep.subr.bf16.mxu0 %v3059
    %3307 = vmatpush1.bf16.msra.mxu0 %v3058
    %3308 = vmatprep.subr.bf16.mxu0 %v3063
    %3309 = vmatpush1.bf16.msra.mxu0 %v3062
    %3310 = vmatprep.subr.bf16.mxu0 %v3067
    %3311 = vmatpush1.bf16.msra.mxu0 %v3066
    %3312 = vmatprep.subr.bf16.mxu0 %v3071
    %3313 = vmatpush1.bf16.msra.mxu0 %v3070
    %3314 = vmatprep.subr.bf16.mxu0 %v3075
    %3315 = vmatpush1.bf16.msra.mxu0 %v3074
    %3316 = vmatprep.subr.bf16.mxu0 %v3079
    %3317 = vmatpush1.bf16.msra.mxu0 %v3078
    %3318 = vmatprep.subr.bf16.mxu0 %v3083
    %3319 = vmatpush1.bf16.msra.mxu0 %v3082
    %3320 = vmatprep.subr.bf16.mxu0 %v3087
    %3321 = vmatpush1.bf16.msra.mxu0 %v3086
    %3322 = vmatprep.subr.bf16.mxu0 %v3091
    %3323 = vmatpush1.bf16.msra.mxu0 %v3090
    %3324 = vmatprep.subr.bf16.mxu0 %v3095
    %3325 = vmatpush1.bf16.msra.mxu0 %v3094
    %3326 = vmatprep.subr.bf16.mxu0 %v3099
    %3327 = vmatpush1.bf16.msra.mxu0 %v3098
    %3328 = vmatprep.subr.bf16.mxu0 %v3103
    %3329 = vmatpush1.bf16.msra.mxu0 %v3102
    %3330 = vmatprep.mubr.bf16.mxu0 %v2505
    %3331 = vmatmul.mubr.bf16.gmra.mrb[0].mxu0 %v2504
    %v3332 = vpop.f32.mrb[0].mxu0
    %v3333 = vadd.f32 %v2641, %v3332
    %v3334 = vpop.f32.mrb[0].mxu0
    %v3335 = vadd.f32 %v2645, %v3334
    %v3336 = vpop.f32.mrb[0].mxu0
    %v3337 = vadd.f32 %v2641, %v3336
    %v3338 = vpop.f32.mrb[0].mxu0
    %v3339 = vadd.f32 %v2645, %v3338
    %3340 = vdwg.mxu0
    %3341 = vmatprep.subr.bf16.mxu0 %v3107
    %3342 = vmatpush1.bf16.msra.mxu0 %v3106
    %3343 = vmatprep.subr.bf16.mxu0 %v3111
    %3344 = vmatpush1.bf16.msra.mxu0 %v3110
    %3345 = vmatprep.subr.bf16.mxu0 %v3115
    %3346 = vmatpush1.bf16.msra.mxu0 %v3114
    %3347 = vmatprep.subr.bf16.mxu0 %v3119
    %3348 = vmatpush1.bf16.msra.mxu0 %v3118
    %3349 = vmatprep.subr.bf16.mxu0 %v3123
    %3350 = vmatpush1.bf16.msra.mxu0 %v3122
    %3351 = vmatprep.subr.bf16.mxu0 %v3127
    %3352 = vmatpush1.bf16.msra.mxu0 %v3126
    %3353 = vmatprep.subr.bf16.mxu0 %v3131
    %3354 = vmatpush1.bf16.msra.mxu0 %v3130
    %3355 = vmatprep.subr.bf16.mxu0 %v3135
    %3356 = vmatpush1.bf16.msra.mxu0 %v3134
    %3357 = vmatprep.subr.bf16.mxu0 %v3139
    %3358 = vmatpush1.bf16.msra.mxu0 %v3138
    %3359 = vmatprep.subr.bf16.mxu0 %v3143
    %3360 = vmatpush1.bf16.msra.mxu0 %v3142
    %3361 = vmatprep.subr.bf16.mxu0 %v3147
    %3362 = vmatpush1.bf16.msra.mxu0 %v3146
    %3363 = vmatprep.subr.bf16.mxu0 %v3151
    %3364 = vmatpush1.bf16.msra.mxu0 %v3150
    %3365 = vmatprep.subr.bf16.mxu0 %v3155
    %3366 = vmatpush1.bf16.msra.mxu0 %v3154
    %3367 = vmatprep.subr.bf16.mxu0 %v3159
    %3368 = vmatpush1.bf16.msra.mxu0 %v3158
    %3369 = vmatprep.subr.bf16.mxu0 %v3163
    %3370 = vmatpush1.bf16.msra.mxu0 %v3162
    %3371 = vmatprep.subr.bf16.mxu0 %v3167
    %3372 = vmatpush1.bf16.msra.mxu0 %v3166
    %3373 = vmatprep.mubr.bf16.mxu0 %v2507
    %3374 = vmatmul.mubr.bf16.gmra.mrb[0].mxu0 %v2506
    %v3375 = vpop.f32.mrb[0].mxu0
    %v3376 = vadd.f32 %v3333, %v3375
    %v3377 = vpop.f32.mrb[0].mxu0
    %v3378 = vadd.f32 %v3335, %v3377
    %v3379 = vpop.f32.mrb[0].mxu0
    %v3380 = vadd.f32 %v3337, %v3379
    %v3381 = vpop.f32.mrb[0].mxu0
    %v3382 = vadd.f32 %v3339, %v3381
    %3383 = vdwg.mxu0
    %3384 = vmatprep.subr.bf16.mxu0 %v3045
    %3385 = vmatpush1.bf16.msra.mxu0 %v3044
    %3386 = vmatprep.subr.bf16.mxu0 %v3049
    %3387 = vmatpush1.bf16.msra.mxu0 %v3048
    %3388 = vmatprep.subr.bf16.mxu0 %v3053
    %3389 = vmatpush1.bf16.msra.mxu0 %v3052
    %3390 = vmatprep.subr.bf16.mxu0 %v3057
    %3391 = vmatpush1.bf16.msra.mxu0 %v3056
    %3392 = vmatprep.subr.bf16.mxu0 %v3061
    %3393 = vmatpush1.bf16.msra.mxu0 %v3060
    %3394 = vmatprep.subr.bf16.mxu0 %v3065
    %3395 = vmatpush1.bf16.msra.mxu0 %v3064
    %3396 = vmatprep.subr.bf16.mxu0 %v3069
    %3397 = vmatpush1.bf16.msra.mxu0 %v3068
    %3398 = vmatprep.subr.bf16.mxu0 %v3073
    %3399 = vmatpush1.bf16.msra.mxu0 %v3072
    %3400 = vmatprep.subr.bf16.mxu0 %v3077
    %3401 = vmatpush1.bf16.msra.mxu0 %v3076
    %3402 = vmatprep.subr.bf16.mxu0 %v3081
    %3403 = vmatpush1.bf16.msra.mxu0 %v3080
    %3404 = vmatprep.subr.bf16.mxu0 %v3085
    %3405 = vmatpush1.bf16.msra.mxu0 %v3084
    %3406 = vmatprep.subr.bf16.mxu0 %v3089
    %3407 = vmatpush1.bf16.msra.mxu0 %v3088
    %3408 = vmatprep.subr.bf16.mxu0 %v3093
    %3409 = vmatpush1.bf16.msra.mxu0 %v3092
    %3410 = vmatprep.subr.bf16.mxu0 %v3097
    %3411 = vmatpush1.bf16.msra.mxu0 %v3096
    %3412 = vmatprep.subr.bf16.mxu0 %v3101
    %3413 = vmatpush1.bf16.msra.mxu0 %v3100
    %3414 = vmatprep.subr.bf16.mxu0 %v3105
    %3415 = vmatpush1.bf16.msra.mxu0 %v3104
    %3416 = vmatprep.mubr.bf16.mxu0 %v2505
    %3417 = vmatmul.mubr.bf16.gmra.mrb[0].mxu0 %v2504
    %v3418 = vpop.f32.mrb[0].mxu0
    %v3419 = vadd.f32 %v2649, %v3418
    %v3420 = vpop.f32.mrb[0].mxu0
    %v3421 = vadd.f32 %v2653, %v3420
    %v3422 = vpop.f32.mrb[0].mxu0
    %v3423 = vadd.f32 %v2649, %v3422
    %v3424 = vpop.f32.mrb[0].mxu0
    %v3425 = vadd.f32 %v2653, %v3424
    %3426 = vdwg.mxu0
    %3427 = vmatprep.subr.bf16.mxu0 %v3109
    %3428 = vmatpush1.bf16.msra.mxu0 %v3108
    %3429 = vmatprep.subr.bf16.mxu0 %v3113
    %3430 = vmatpush1.bf16.msra.mxu0 %v3112
    %3431 = vmatprep.subr.bf16.mxu0 %v3117
    %3432 = vmatpush1.bf16.msra.mxu0 %v3116
    %3433 = vmatprep.subr.bf16.mxu0 %v3121
    %3434 = vmatpush1.bf16.msra.mxu0 %v3120
    %3435 = vmatprep.subr.bf16.mxu0 %v3125
    %3436 = vmatpush1.bf16.msra.mxu0 %v3124
    %3437 = vmatprep.subr.bf16.mxu0 %v3129
    %3438 = vmatpush1.bf16.msra.mxu0 %v3128
    %3439 = vmatprep.subr.bf16.mxu0 %v3133
    %3440 = vmatpush1.bf16.msra.mxu0 %v3132
    %3441 = vmatprep.subr.bf16.mxu0 %v3137
    %3442 = vmatpush1.bf16.msra.mxu0 %v3136
    %3443 = vmatprep.subr.bf16.mxu0 %v3141
    %3444 = vmatpush1.bf16.msra.mxu0 %v3140
    %3445 = vmatprep.subr.bf16.mxu0 %v3145
    %3446 = vmatpush1.bf16.msra.mxu0 %v3144
    %3447 = vmatprep.subr.bf16.mxu0 %v3149
    %3448 = vmatpush1.bf16.msra.mxu0 %v3148
    %3449 = vmatprep.subr.bf16.mxu0 %v3153
    %3450 = vmatpush1.bf16.msra.mxu0 %v3152
    %3451 = vmatprep.subr.bf16.mxu0 %v3157
    %3452 = vmatpush1.bf16.msra.mxu0 %v3156
    %3453 = vmatprep.subr.bf16.mxu0 %v3161
    %3454 = vmatpush1.bf16.msra.mxu0 %v3160
    %3455 = vmatprep.subr.bf16.mxu0 %v3165
    %3456 = vmatpush1.bf16.msra.mxu0 %v3164
    %3457 = vmatprep.subr.bf16.mxu0 %v3169
    %3458 = vmatpush1.bf16.msra.mxu0 %v3168
    %3459 = vmatprep.mubr.bf16.mxu0 %v2507
    %3460 = vmatmul.mubr.bf16.gmra.mrb[0].mxu0 %v2506
    %v3461 = vpop.f32.mrb[0].mxu0
    %v3462 = vadd.f32 %v3419, %v3461
    %v3463 = vpop.f32.mrb[0].mxu0
    %v3464 = vadd.f32 %v3421, %v3463
    %v3465 = vpop.f32.mrb[0].mxu0
    %v3466 = vadd.f32 %v3423, %v3465
    %v3467 = vpop.f32.mrb[0].mxu0
    %v3468 = vadd.f32 %v3425, %v3467
    %3469 = vdwg.mxu0
    %v3470 = vtanh.pop %v3376
    %v3471 = vtanh.pop %v3378
    %v3472 = vtanh.pop %v3462
    %v3473 = vtanh.pop %v3464
    %v3474 = vtanh.pop %v3380
    %v3475 = vtanh.pop %v3382
    %v3476 = vtanh.pop %v3466
    %v3477 = vtanh.pop %v3468
    %v3478 = vmul.f32 %v3470, %v3470
    %v3479 = vmul.f32 %v3471, %v3471
    %v3480 = vmul.f32 %v3472, %v3472
    %v3481 = vmul.f32 %v3473, %v3473
    %v3482 = vmul.f32 %v3474, %v3474
    %v3483 = vmul.f32 %v3475, %v3475
    %v3484 = vmul.f32 %v3476, %v3476
    %v3485 = vmul.f32 %v3477, %v3477
    %v3486 = vadd.f32 %v3478, %v3479
    %v3487 = vadd.f32 %v3486, %v3480
    %v3488 = vadd.f32 %v3487, %v3481
    %3489 = vadd.xlane.f32.xlu0 %v3488
    %v3490 = vpop.xlane.xlu0 %3489
    %v3491 = vadd.f32 %v3482, %v3483
    %v3492 = vadd.f32 %v3491, %v3484
    %v3493 = vadd.f32 %v3492, %v3485
    %3494 = vadd.xlane.f32.xlu0 %v3493
    %v3495 = vpop.xlane.xlu0 %3494
    %v3496 = vrsqrt.pop %v3490
    %v3497 = vrsqrt.pop %v3495
    %v3498 = vmul.f32 %v3470, %v3496
    %v3499 = vmul.f32 %v3471, %v3496
    %v3500 = vmul.f32 %v3472, %v3496
    %v3501 = vmul.f32 %v3473, %v3496
    %v3502 = vmul.f32 %v3474, %v3497
    %v3503 = vmul.f32 %v3475, %v3497
    %v3504 = vmul.f32 %v3476, %v3497
    %v3505 = vmul.f32 %v3477, %v3497
    %v3506 = vpack.c.bf16 %v3502, %v3498
    %v3507 = vpack.c.bf16 %v3503, %v3499
    %v3508 = vpack.c.bf16 %v3504, %v3500
    %v3509 = vpack.c.bf16 %v3505, %v3501
    %v3514 = vunpack.c.l.b16 %v3506
    %v3515 = vunpack.c.l.b16 %v3507
    %v3516 = vunpack.c.l.b16 %v3508
    %v3517 = vunpack.c.l.b16 %v3509
    %v3518 = vunpack.c.h.b16 %v3506
    %v3519 = vunpack.c.h.b16 %v3507
    %v3520 = vunpack.c.h.b16 %v3508
    %v3521 = vunpack.c.h.b16 %v3509
    %v3522 = vpack.c.b16 %v3515, %v3514
    %v3523 = vpack.c.b16 %v3517, %v3516
    %v3524 = vpack.c.b16 %v3519, %v3518
    %v3525 = vpack.c.b16 %v3521, %v3520
    %3530 = vst [vmem:[#allocation17] sm:$0xff] %v3522
    %3531 = vst [vmem:[#allocation17 + $0x8] sm:$0xff] %v3523
    %3532 = vst [vmem:[#allocation17 + $0x10] sm:$0xff] %v3524
    %3533 = vst [vmem:[#allocation17 + $0x18] sm:$0xff] %v3525
    %v3534 = vld [vmem:[#allocation14] sm:$0xff]
    %v3535 = vld [vmem:[#allocation14 + $0x8] sm:$0xff]
    %v3536 = vld [vmem:[#allocation14 + $0x10] sm:$0xff]
    %v3537 = vld [vmem:[#allocation14 + $0x18] sm:$0xff]
    %v3538 = vld [vmem:[#allocation14 + $0x20] sm:$0xff]
    %v3539 = vld [vmem:[#allocation14 + $0x28] sm:$0xff]
    %v3540 = vld [vmem:[#allocation14 + $0x30] sm:$0xff]
    %v3541 = vld [vmem:[#allocation14 + $0x38] sm:$0xff]
    %v3542 = vld [vmem:[#allocation14 + $0x40] sm:$0xff]
    %v3543 = vld [vmem:[#allocation14 + $0x48] sm:$0xff]
    %v3544 = vld [vmem:[#allocation14 + $0x50] sm:$0xff]
    %v3545 = vld [vmem:[#allocation14 + $0x58] sm:$0xff]
    %v3546 = vld [vmem:[#allocation14 + $0x60] sm:$0xff]
    %v3547 = vld [vmem:[#allocation14 + $0x68] sm:$0xff]
    %v3548 = vld [vmem:[#allocation14 + $0x70] sm:$0xff]
    %v3549 = vld [vmem:[#allocation14 + $0x78] sm:$0xff]
    %v3550 = vld [vmem:[#allocation14 + $0x80] sm:$0xff]
    %v3551 = vld [vmem:[#allocation14 + $0x88] sm:$0xff]
    %v3552 = vld [vmem:[#allocation14 + $0x90] sm:$0xff]
    %v3553 = vld [vmem:[#allocation14 + $0x98] sm:$0xff]
    %v3554 = vld [vmem:[#allocation14 + $0xa0] sm:$0xff]
    %v3555 = vld [vmem:[#allocation14 + $0xa8] sm:$0xff]
    %v3556 = vld [vmem:[#allocation14 + $0xb0] sm:$0xff]
    %v3557 = vld [vmem:[#allocation14 + $0xb8] sm:$0xff]
    %v3558 = vld [vmem:[#allocation14 + $0xc0] sm:$0xff]
    %v3559 = vld [vmem:[#allocation14 + $0xc8] sm:$0xff]
    %v3560 = vld [vmem:[#allocation14 + $0xd0] sm:$0xff]
    %v3561 = vld [vmem:[#allocation14 + $0xd8] sm:$0xff]
    %v3562 = vld [vmem:[#allocation14 + $0xe0] sm:$0xff]
    %v3563 = vld [vmem:[#allocation14 + $0xe8] sm:$0xff]
    %v3564 = vld [vmem:[#allocation14 + $0xf0] sm:$0xff]
    %v3565 = vld [vmem:[#allocation14 + $0xf8] sm:$0xff]
    %v3566 = vld [vmem:[#allocation14 + $0x100] sm:$0xff]
    %v3567 = vld [vmem:[#allocation14 + $0x108] sm:$0xff]
    %v3568 = vld [vmem:[#allocation14 + $0x110] sm:$0xff]
    %v3569 = vld [vmem:[#allocation14 + $0x118] sm:$0xff]
    %v3570 = vld [vmem:[#allocation14 + $0x120] sm:$0xff]
    %v3571 = vld [vmem:[#allocation14 + $0x128] sm:$0xff]
    %v3572 = vld [vmem:[#allocation14 + $0x130] sm:$0xff]
    %v3573 = vld [vmem:[#allocation14 + $0x138] sm:$0xff]
    %v3574 = vld [vmem:[#allocation14 + $0x140] sm:$0xff]
    %v3575 = vld [vmem:[#allocation14 + $0x148] sm:$0xff]
    %v3576 = vld [vmem:[#allocation14 + $0x150] sm:$0xff]
    %v3577 = vld [vmem:[#allocation14 + $0x158] sm:$0xff]
    %v3578 = vld [vmem:[#allocation14 + $0x160] sm:$0xff]
    %v3579 = vld [vmem:[#allocation14 + $0x168] sm:$0xff]
    %v3580 = vld [vmem:[#allocation14 + $0x170] sm:$0xff]
    %v3581 = vld [vmem:[#allocation14 + $0x178] sm:$0xff]
    %v3582 = vld [vmem:[#allocation14 + $0x180] sm:$0xff]
    %v3583 = vld [vmem:[#allocation14 + $0x188] sm:$0xff]
    %v3584 = vld [vmem:[#allocation14 + $0x190] sm:$0xff]
    %v3585 = vld [vmem:[#allocation14 + $0x198] sm:$0xff]
    %v3586 = vld [vmem:[#allocation14 + $0x1a0] sm:$0xff]
    %v3587 = vld [vmem:[#allocation14 + $0x1a8] sm:$0xff]
    %v3588 = vld [vmem:[#allocation14 + $0x1b0] sm:$0xff]
    %v3589 = vld [vmem:[#allocation14 + $0x1b8] sm:$0xff]
    %v3590 = vld [vmem:[#allocation14 + $0x1c0] sm:$0xff]
    %v3591 = vld [vmem:[#allocation14 + $0x1c8] sm:$0xff]
    %v3592 = vld [vmem:[#allocation14 + $0x1d0] sm:$0xff]
    %v3593 = vld [vmem:[#allocation14 + $0x1d8] sm:$0xff]
    %v3594 = vld [vmem:[#allocation14 + $0x1e0] sm:$0xff]
    %v3595 = vld [vmem:[#allocation14 + $0x1e8] sm:$0xff]
    %v3596 = vld [vmem:[#allocation14 + $0x1f0] sm:$0xff]
    %v3597 = vld [vmem:[#allocation14 + $0x1f8] sm:$0xff]
    %v3598 = vld [vmem:[#allocation14 + $0x200] sm:$0xff]
    %v3599 = vld [vmem:[#allocation14 + $0x208] sm:$0xff]
    %v3600 = vld [vmem:[#allocation14 + $0x210] sm:$0xff]
    %v3601 = vld [vmem:[#allocation14 + $0x218] sm:$0xff]
    %v3602 = vld [vmem:[#allocation14 + $0x220] sm:$0xff]
    %v3603 = vld [vmem:[#allocation14 + $0x228] sm:$0xff]
    %v3604 = vld [vmem:[#allocation14 + $0x230] sm:$0xff]
    %v3605 = vld [vmem:[#allocation14 + $0x238] sm:$0xff]
    %v3606 = vld [vmem:[#allocation14 + $0x240] sm:$0xff]
    %v3607 = vld [vmem:[#allocation14 + $0x248] sm:$0xff]
    %v3608 = vld [vmem:[#allocation14 + $0x250] sm:$0xff]
    %v3609 = vld [vmem:[#allocation14 + $0x258] sm:$0xff]
    %v3610 = vld [vmem:[#allocation14 + $0x260] sm:$0xff]
    %v3611 = vld [vmem:[#allocation14 + $0x268] sm:$0xff]
    %v3612 = vld [vmem:[#allocation14 + $0x270] sm:$0xff]
    %v3613 = vld [vmem:[#allocation14 + $0x278] sm:$0xff]
    %v3614 = vld [vmem:[#allocation14 + $0x280] sm:$0xff]
    %v3615 = vld [vmem:[#allocation14 + $0x288] sm:$0xff]
    %v3616 = vld [vmem:[#allocation14 + $0x290] sm:$0xff]
    %v3617 = vld [vmem:[#allocation14 + $0x298] sm:$0xff]
    %v3618 = vld [vmem:[#allocation14 + $0x2a0] sm:$0xff]
    %v3619 = vld [vmem:[#allocation14 + $0x2a8] sm:$0xff]
    %v3620 = vld [vmem:[#allocation14 + $0x2b0] sm:$0xff]
    %v3621 = vld [vmem:[#allocation14 + $0x2b8] sm:$0xff]
    %v3622 = vld [vmem:[#allocation14 + $0x2c0] sm:$0xff]
    %v3623 = vld [vmem:[#allocation14 + $0x2c8] sm:$0xff]
    %v3624 = vld [vmem:[#allocation14 + $0x2d0] sm:$0xff]
    %v3625 = vld [vmem:[#allocation14 + $0x2d8] sm:$0xff]
    %v3626 = vld [vmem:[#allocation14 + $0x2e0] sm:$0xff]
    %v3627 = vld [vmem:[#allocation14 + $0x2e8] sm:$0xff]
    %v3628 = vld [vmem:[#allocation14 + $0x2f0] sm:$0xff]
    %v3629 = vld [vmem:[#allocation14 + $0x2f8] sm:$0xff]
    %v3630 = vld [vmem:[#allocation14 + $0x300] sm:$0xff]
    %v3631 = vld [vmem:[#allocation14 + $0x308] sm:$0xff]
    %v3632 = vld [vmem:[#allocation14 + $0x310] sm:$0xff]
    %v3633 = vld [vmem:[#allocation14 + $0x318] sm:$0xff]
    %v3634 = vld [vmem:[#allocation14 + $0x320] sm:$0xff]
    %v3635 = vld [vmem:[#allocation14 + $0x328] sm:$0xff]
    %v3636 = vld [vmem:[#allocation14 + $0x330] sm:$0xff]
    %v3637 = vld [vmem:[#allocation14 + $0x338] sm:$0xff]
    %v3638 = vld [vmem:[#allocation14 + $0x340] sm:$0xff]
    %v3639 = vld [vmem:[#allocation14 + $0x348] sm:$0xff]
    %v3640 = vld [vmem:[#allocation14 + $0x350] sm:$0xff]
    %v3641 = vld [vmem:[#allocation14 + $0x358] sm:$0xff]
    %v3642 = vld [vmem:[#allocation14 + $0x360] sm:$0xff]
    %v3643 = vld [vmem:[#allocation14 + $0x368] sm:$0xff]
    %v3644 = vld [vmem:[#allocation14 + $0x370] sm:$0xff]
    %v3645 = vld [vmem:[#allocation14 + $0x378] sm:$0xff]
    %v3646 = vld [vmem:[#allocation14 + $0x380] sm:$0xff]
    %v3647 = vld [vmem:[#allocation14 + $0x388] sm:$0xff]
    %v3648 = vld [vmem:[#allocation14 + $0x390] sm:$0xff]
    %v3649 = vld [vmem:[#allocation14 + $0x398] sm:$0xff]
    %v3650 = vld [vmem:[#allocation14 + $0x3a0] sm:$0xff]
    %v3651 = vld [vmem:[#allocation14 + $0x3a8] sm:$0xff]
    %v3652 = vld [vmem:[#allocation14 + $0x3b0] sm:$0xff]
    %v3653 = vld [vmem:[#allocation14 + $0x3b8] sm:$0xff]
    %v3654 = vld [vmem:[#allocation14 + $0x3c0] sm:$0xff]
    %v3655 = vld [vmem:[#allocation14 + $0x3c8] sm:$0xff]
    %v3656 = vld [vmem:[#allocation14 + $0x3d0] sm:$0xff]
    %v3657 = vld [vmem:[#allocation14 + $0x3d8] sm:$0xff]
    %v3658 = vld [vmem:[#allocation14 + $0x3e0] sm:$0xff]
    %v3659 = vld [vmem:[#allocation14 + $0x3e8] sm:$0xff]
    %v3660 = vld [vmem:[#allocation14 + $0x3f0] sm:$0xff]
    %v3661 = vld [vmem:[#allocation14 + $0x3f8] sm:$0xff]
    %v3790 = vunpack.c.l.b16 %v3534
    %v3791 = vunpack.c.h.b16 %v3534
    %v3792 = vunpack.c.l.b16 %v3535
    %v3793 = vunpack.c.h.b16 %v3535
    %v3794 = vunpack.c.l.b16 %v3536
    %v3795 = vunpack.c.h.b16 %v3536
    %v3796 = vunpack.c.l.b16 %v3537
    %v3797 = vunpack.c.h.b16 %v3537
    %v3798 = vunpack.c.l.b16 %v3538
    %v3799 = vunpack.c.h.b16 %v3538
    %v3800 = vunpack.c.l.b16 %v3539
    %v3801 = vunpack.c.h.b16 %v3539
    %v3802 = vunpack.c.l.b16 %v3540
    %v3803 = vunpack.c.h.b16 %v3540
    %v3804 = vunpack.c.l.b16 %v3541
    %v3805 = vunpack.c.h.b16 %v3541
    %v3806 = vunpack.c.l.b16 %v3542
    %v3807 = vunpack.c.h.b16 %v3542
    %v3808 = vunpack.c.l.b16 %v3543
    %v3809 = vunpack.c.h.b16 %v3543
    %v3810 = vunpack.c.l.b16 %v3544
    %v3811 = vunpack.c.h.b16 %v3544
    %v3812 = vunpack.c.l.b16 %v3545
    %v3813 = vunpack.c.h.b16 %v3545
    %v3814 = vunpack.c.l.b16 %v3546
    %v3815 = vunpack.c.h.b16 %v3546
    %v3816 = vunpack.c.l.b16 %v3547
    %v3817 = vunpack.c.h.b16 %v3547
    %v3818 = vunpack.c.l.b16 %v3548
    %v3819 = vunpack.c.h.b16 %v3548
    %v3820 = vunpack.c.l.b16 %v3549
    %v3821 = vunpack.c.h.b16 %v3549
    %v3822 = vunpack.c.l.b16 %v3550
    %v3823 = vunpack.c.h.b16 %v3550
    %v3824 = vunpack.c.l.b16 %v3551
    %v3825 = vunpack.c.h.b16 %v3551
    %v3826 = vunpack.c.l.b16 %v3552
    %v3827 = vunpack.c.h.b16 %v3552
    %v3828 = vunpack.c.l.b16 %v3553
    %v3829 = vunpack.c.h.b16 %v3553
    %v3830 = vunpack.c.l.b16 %v3554
    %v3831 = vunpack.c.h.b16 %v3554
    %v3832 = vunpack.c.l.b16 %v3555
    %v3833 = vunpack.c.h.b16 %v3555
    %v3834 = vunpack.c.l.b16 %v3556
    %v3835 = vunpack.c.h.b16 %v3556
    %v3836 = vunpack.c.l.b16 %v3557
    %v3837 = vunpack.c.h.b16 %v3557
    %v3838 = vunpack.c.l.b16 %v3558
    %v3839 = vunpack.c.h.b16 %v3558
    %v3840 = vunpack.c.l.b16 %v3559
    %v3841 = vunpack.c.h.b16 %v3559
    %v3842 = vunpack.c.l.b16 %v3560
    %v3843 = vunpack.c.h.b16 %v3560
    %v3844 = vunpack.c.l.b16 %v3561
    %v3845 = vunpack.c.h.b16 %v3561
    %v3846 = vunpack.c.l.b16 %v3562
    %v3847 = vunpack.c.h.b16 %v3562
    %v3848 = vunpack.c.l.b16 %v3563
    %v3849 = vunpack.c.h.b16 %v3563
    %v3850 = vunpack.c.l.b16 %v3564
    %v3851 = vunpack.c.h.b16 %v3564
    %v3852 = vunpack.c.l.b16 %v3565
    %v3853 = vunpack.c.h.b16 %v3565
    %v3854 = vunpack.c.l.b16 %v3566
    %v3855 = vunpack.c.h.b16 %v3566
    %v3856 = vunpack.c.l.b16 %v3567
    %v3857 = vunpack.c.h.b16 %v3567
    %v3858 = vunpack.c.l.b16 %v3568
    %v3859 = vunpack.c.h.b16 %v3568
    %v3860 = vunpack.c.l.b16 %v3569
    %v3861 = vunpack.c.h.b16 %v3569
    %v3862 = vunpack.c.l.b16 %v3570
    %v3863 = vunpack.c.h.b16 %v3570
    %v3864 = vunpack.c.l.b16 %v3571
    %v3865 = vunpack.c.h.b16 %v3571
    %v3866 = vunpack.c.l.b16 %v3572
    %v3867 = vunpack.c.h.b16 %v3572
    %v3868 = vunpack.c.l.b16 %v3573
    %v3869 = vunpack.c.h.b16 %v3573
    %v3870 = vunpack.c.l.b16 %v3574
    %v3871 = vunpack.c.h.b16 %v3574
    %v3872 = vunpack.c.l.b16 %v3575
    %v3873 = vunpack.c.h.b16 %v3575
    %v3874 = vunpack.c.l.b16 %v3576
    %v3875 = vunpack.c.h.b16 %v3576
    %v3876 = vunpack.c.l.b16 %v3577
    %v3877 = vunpack.c.h.b16 %v3577
    %v3878 = vunpack.c.l.b16 %v3578
    %v3879 = vunpack.c.h.b16 %v3578
    %v3880 = vunpack.c.l.b16 %v3579
    %v3881 = vunpack.c.h.b16 %v3579
    %v3882 = vunpack.c.l.b16 %v3580
    %v3883 = vunpack.c.h.b16 %v3580
    %v3884 = vunpack.c.l.b16 %v3581
    %v3885 = vunpack.c.h.b16 %v3581
    %v3886 = vunpack.c.l.b16 %v3582
    %v3887 = vunpack.c.h.b16 %v3582
    %v3888 = vunpack.c.l.b16 %v3583
    %v3889 = vunpack.c.h.b16 %v3583
    %v3890 = vunpack.c.l.b16 %v3584
    %v3891 = vunpack.c.h.b16 %v3584
    %v3892 = vunpack.c.l.b16 %v3585
    %v3893 = vunpack.c.h.b16 %v3585
    %v3894 = vunpack.c.l.b16 %v3586
    %v3895 = vunpack.c.h.b16 %v3586
    %v3896 = vunpack.c.l.b16 %v3587
    %v3897 = vunpack.c.h.b16 %v3587
    %v3898 = vunpack.c.l.b16 %v3588
    %v3899 = vunpack.c.h.b16 %v3588
    %v3900 = vunpack.c.l.b16 %v3589
    %v3901 = vunpack.c.h.b16 %v3589
    %v3902 = vunpack.c.l.b16 %v3590
    %v3903 = vunpack.c.h.b16 %v3590
    %v3904 = vunpack.c.l.b16 %v3591
    %v3905 = vunpack.c.h.b16 %v3591
    %v3906 = vunpack.c.l.b16 %v3592
    %v3907 = vunpack.c.h.b16 %v3592
    %v3908 = vunpack.c.l.b16 %v3593
    %v3909 = vunpack.c.h.b16 %v3593
    %v3910 = vunpack.c.l.b16 %v3594
    %v3911 = vunpack.c.h.b16 %v3594
    %v3912 = vunpack.c.l.b16 %v3595
    %v3913 = vunpack.c.h.b16 %v3595
    %v3914 = vunpack.c.l.b16 %v3596
    %v3915 = vunpack.c.h.b16 %v3596
    %v3916 = vunpack.c.l.b16 %v3597
    %v3917 = vunpack.c.h.b16 %v3597
    %v3918 = vunpack.c.l.b16 %v3598
    %v3919 = vunpack.c.h.b16 %v3598
    %v3920 = vunpack.c.l.b16 %v3599
    %v3921 = vunpack.c.h.b16 %v3599
    %v3922 = vunpack.c.l.b16 %v3600
    %v3923 = vunpack.c.h.b16 %v3600
    %v3924 = vunpack.c.l.b16 %v3601
    %v3925 = vunpack.c.h.b16 %v3601
    %v3926 = vunpack.c.l.b16 %v3602
    %v3927 = vunpack.c.h.b16 %v3602
    %v3928 = vunpack.c.l.b16 %v3603
    %v3929 = vunpack.c.h.b16 %v3603
    %v3930 = vunpack.c.l.b16 %v3604
    %v3931 = vunpack.c.h.b16 %v3604
    %v3932 = vunpack.c.l.b16 %v3605
    %v3933 = vunpack.c.h.b16 %v3605
    %v3934 = vunpack.c.l.b16 %v3606
    %v3935 = vunpack.c.h.b16 %v3606
    %v3936 = vunpack.c.l.b16 %v3607
    %v3937 = vunpack.c.h.b16 %v3607
    %v3938 = vunpack.c.l.b16 %v3608
    %v3939 = vunpack.c.h.b16 %v3608
    %v3940 = vunpack.c.l.b16 %v3609
    %v3941 = vunpack.c.h.b16 %v3609
    %v3942 = vunpack.c.l.b16 %v3610
    %v3943 = vunpack.c.h.b16 %v3610
    %v3944 = vunpack.c.l.b16 %v3611
    %v3945 = vunpack.c.h.b16 %v3611
    %v3946 = vunpack.c.l.b16 %v3612
    %v3947 = vunpack.c.h.b16 %v3612
    %v3948 = vunpack.c.l.b16 %v3613
    %v3949 = vunpack.c.h.b16 %v3613
    %v3950 = vunpack.c.l.b16 %v3614
    %v3951 = vunpack.c.h.b16 %v3614
    %v3952 = vunpack.c.l.b16 %v3615
    %v3953 = vunpack.c.h.b16 %v3615
    %v3954 = vunpack.c.l.b16 %v3616
    %v3955 = vunpack.c.h.b16 %v3616
    %v3956 = vunpack.c.l.b16 %v3617
    %v3957 = vunpack.c.h.b16 %v3617
    %v3958 = vunpack.c.l.b16 %v3618
    %v3959 = vunpack.c.h.b16 %v3618
    %v3960 = vunpack.c.l.b16 %v3619
    %v3961 = vunpack.c.h.b16 %v3619
    %v3962 = vunpack.c.l.b16 %v3620
    %v3963 = vunpack.c.h.b16 %v3620
    %v3964 = vunpack.c.l.b16 %v3621
    %v3965 = vunpack.c.h.b16 %v3621
    %v3966 = vunpack.c.l.b16 %v3622
    %v3967 = vunpack.c.h.b16 %v3622
    %v3968 = vunpack.c.l.b16 %v3623
    %v3969 = vunpack.c.h.b16 %v3623
    %v3970 = vunpack.c.l.b16 %v3624
    %v3971 = vunpack.c.h.b16 %v3624
    %v3972 = vunpack.c.l.b16 %v3625
    %v3973 = vunpack.c.h.b16 %v3625
    %v3974 = vunpack.c.l.b16 %v3626
    %v3975 = vunpack.c.h.b16 %v3626
    %v3976 = vunpack.c.l.b16 %v3627
    %v3977 = vunpack.c.h.b16 %v3627
    %v3978 = vunpack.c.l.b16 %v3628
    %v3979 = vunpack.c.h.b16 %v3628
    %v3980 = vunpack.c.l.b16 %v3629
    %v3981 = vunpack.c.h.b16 %v3629
    %v3982 = vunpack.c.l.b16 %v3630
    %v3983 = vunpack.c.h.b16 %v3630
    %v3984 = vunpack.c.l.b16 %v3631
    %v3985 = vunpack.c.h.b16 %v3631
    %v3986 = vunpack.c.l.b16 %v3632
    %v3987 = vunpack.c.h.b16 %v3632
    %v3988 = vunpack.c.l.b16 %v3633
    %v3989 = vunpack.c.h.b16 %v3633
    %v3990 = vunpack.c.l.b16 %v3634
    %v3991 = vunpack.c.h.b16 %v3634
    %v3992 = vunpack.c.l.b16 %v3635
    %v3993 = vunpack.c.h.b16 %v3635
    %v3994 = vunpack.c.l.b16 %v3636
    %v3995 = vunpack.c.h.b16 %v3636
    %v3996 = vunpack.c.l.b16 %v3637
    %v3997 = vunpack.c.h.b16 %v3637
    %v3998 = vunpack.c.l.b16 %v3638
    %v3999 = vunpack.c.h.b16 %v3638
    %v4000 = vunpack.c.l.b16 %v3639
    %v4001 = vunpack.c.h.b16 %v3639
    %v4002 = vunpack.c.l.b16 %v3640
    %v4003 = vunpack.c.h.b16 %v3640
    %v4004 = vunpack.c.l.b16 %v3641
    %v4005 = vunpack.c.h.b16 %v3641
    %v4006 = vunpack.c.l.b16 %v3642
    %v4007 = vunpack.c.h.b16 %v3642
    %v4008 = vunpack.c.l.b16 %v3643
    %v4009 = vunpack.c.h.b16 %v3643
    %v4010 = vunpack.c.l.b16 %v3644
    %v4011 = vunpack.c.h.b16 %v3644
    %v4012 = vunpack.c.l.b16 %v3645
    %v4013 = vunpack.c.h.b16 %v3645
    %v4014 = vunpack.c.l.b16 %v3646
    %v4015 = vunpack.c.h.b16 %v3646
    %v4016 = vunpack.c.l.b16 %v3647
    %v4017 = vunpack.c.h.b16 %v3647
    %v4018 = vunpack.c.l.b16 %v3648
    %v4019 = vunpack.c.h.b16 %v3648
    %v4020 = vunpack.c.l.b16 %v3649
    %v4021 = vunpack.c.h.b16 %v3649
    %v4022 = vunpack.c.l.b16 %v3650
    %v4023 = vunpack.c.h.b16 %v3650
    %v4024 = vunpack.c.l.b16 %v3651
    %v4025 = vunpack.c.h.b16 %v3651
    %v4026 = vunpack.c.l.b16 %v3652
    %v4027 = vunpack.c.h.b16 %v3652
    %v4028 = vunpack.c.l.b16 %v3653
    %v4029 = vunpack.c.h.b16 %v3653
    %v4030 = vunpack.c.l.b16 %v3654
    %v4031 = vunpack.c.h.b16 %v3654
    %v4032 = vunpack.c.l.b16 %v3655
    %v4033 = vunpack.c.h.b16 %v3655
    %v4034 = vunpack.c.l.b16 %v3656
    %v4035 = vunpack.c.h.b16 %v3656
    %v4036 = vunpack.c.l.b16 %v3657
    %v4037 = vunpack.c.h.b16 %v3657
    %v4038 = vunpack.c.l.b16 %v3658
    %v4039 = vunpack.c.h.b16 %v3658
    %v4040 = vunpack.c.l.b16 %v3659
    %v4041 = vunpack.c.h.b16 %v3659
    %v4042 = vunpack.c.l.b16 %v3660
    %v4043 = vunpack.c.h.b16 %v3660
    %v4044 = vunpack.c.l.b16 %v3661
    %v4045 = vunpack.c.h.b16 %v3661
    %v4046 = vpack.c.b16 %v3794, %v3790
    %v4047 = vpack.c.b16 %v3795, %v3791
    %v4048 = vpack.c.b16 %v3796, %v3792
    %v4049 = vpack.c.b16 %v3797, %v3793
    %v4050 = vpack.c.b16 %v3802, %v3798
    %v4051 = vpack.c.b16 %v3803, %v3799
    %v4052 = vpack.c.b16 %v3804, %v3800
    %v4053 = vpack.c.b16 %v3805, %v3801
    %v4054 = vpack.c.b16 %v3810, %v3806
    %v4055 = vpack.c.b16 %v3811, %v3807
    %v4056 = vpack.c.b16 %v3812, %v3808
    %v4057 = vpack.c.b16 %v3813, %v3809
    %v4058 = vpack.c.b16 %v3818, %v3814
    %v4059 = vpack.c.b16 %v3819, %v3815
    %v4060 = vpack.c.b16 %v3820, %v3816
    %v4061 = vpack.c.b16 %v3821, %v3817
    %v4062 = vpack.c.b16 %v3826, %v3822
    %v4063 = vpack.c.b16 %v3827, %v3823
    %v4064 = vpack.c.b16 %v3828, %v3824
    %v4065 = vpack.c.b16 %v3829, %v3825
    %v4066 = vpack.c.b16 %v3834, %v3830
    %v4067 = vpack.c.b16 %v3835, %v3831
    %v4068 = vpack.c.b16 %v3836, %v3832
    %v4069 = vpack.c.b16 %v3837, %v3833
    %v4070 = vpack.c.b16 %v3842, %v3838
    %v4071 = vpack.c.b16 %v3843, %v3839
    %v4072 = vpack.c.b16 %v3844, %v3840
    %v4073 = vpack.c.b16 %v3845, %v3841
    %v4074 = vpack.c.b16 %v3850, %v3846
    %v4075 = vpack.c.b16 %v3851, %v3847
    %v4076 = vpack.c.b16 %v3852, %v3848
    %v4077 = vpack.c.b16 %v3853, %v3849
    %v4078 = vpack.c.b16 %v3858, %v3854
    %v4079 = vpack.c.b16 %v3859, %v3855
    %v4080 = vpack.c.b16 %v3860, %v3856
    %v4081 = vpack.c.b16 %v3861, %v3857
    %v4082 = vpack.c.b16 %v3866, %v3862
    %v4083 = vpack.c.b16 %v3867, %v3863
    %v4084 = vpack.c.b16 %v3868, %v3864
    %v4085 = vpack.c.b16 %v3869, %v3865
    %v4086 = vpack.c.b16 %v3874, %v3870
    %v4087 = vpack.c.b16 %v3875, %v3871
    %v4088 = vpack.c.b16 %v3876, %v3872
    %v4089 = vpack.c.b16 %v3877, %v3873
    %v4090 = vpack.c.b16 %v3882, %v3878
    %v4091 = vpack.c.b16 %v3883, %v3879
    %v4092 = vpack.c.b16 %v3884, %v3880
    %v4093 = vpack.c.b16 %v3885, %v3881
    %v4094 = vpack.c.b16 %v3890, %v3886
    %v4095 = vpack.c.b16 %v3891, %v3887
    %v4096 = vpack.c.b16 %v3892, %v3888
    %v4097 = vpack.c.b16 %v3893, %v3889
    %v4098 = vpack.c.b16 %v3898, %v3894
    %v4099 = vpack.c.b16 %v3899, %v3895
    %v4100 = vpack.c.b16 %v3900, %v3896
    %v4101 = vpack.c.b16 %v3901, %v3897
    %v4102 = vpack.c.b16 %v3906, %v3902
    %v4103 = vpack.c.b16 %v3907, %v3903
    %v4104 = vpack.c.b16 %v3908, %v3904
    %v4105 = vpack.c.b16 %v3909, %v3905
    %v4106 = vpack.c.b16 %v3914, %v3910
    %v4107 = vpack.c.b16 %v3915, %v3911
    %v4108 = vpack.c.b16 %v3916, %v3912
    %v4109 = vpack.c.b16 %v3917, %v3913
    %v4110 = vpack.c.b16 %v3922, %v3918
    %v4111 = vpack.c.b16 %v3923, %v3919
    %v4112 = vpack.c.b16 %v3924, %v3920
    %v4113 = vpack.c.b16 %v3925, %v3921
    %v4114 = vpack.c.b16 %v3930, %v3926
    %v4115 = vpack.c.b16 %v3931, %v3927
    %v4116 = vpack.c.b16 %v3932, %v3928
    %v4117 = vpack.c.b16 %v3933, %v3929
    %v4118 = vpack.c.b16 %v3938, %v3934
    %v4119 = vpack.c.b16 %v3939, %v3935
    %v4120 = vpack.c.b16 %v3940, %v3936
    %v4121 = vpack.c.b16 %v3941, %v3937
    %v4122 = vpack.c.b16 %v3946, %v3942
    %v4123 = vpack.c.b16 %v3947, %v3943
    %v4124 = vpack.c.b16 %v3948, %v3944
    %v4125 = vpack.c.b16 %v3949, %v3945
    %v4126 = vpack.c.b16 %v3954, %v3950
    %v4127 = vpack.c.b16 %v3955, %v3951
    %v4128 = vpack.c.b16 %v3956, %v3952
    %v4129 = vpack.c.b16 %v3957, %v3953
    %v4130 = vpack.c.b16 %v3962, %v3958
    %v4131 = vpack.c.b16 %v3963, %v3959
    %v4132 = vpack.c.b16 %v3964, %v3960
    %v4133 = vpack.c.b16 %v3965, %v3961
    %v4134 = vpack.c.b16 %v3970, %v3966
    %v4135 = vpack.c.b16 %v3971, %v3967
    %v4136 = vpack.c.b16 %v3972, %v3968
    %v4137 = vpack.c.b16 %v3973, %v3969
    %v4138 = vpack.c.b16 %v3978, %v3974
    %v4139 = vpack.c.b16 %v3979, %v3975
    %v4140 = vpack.c.b16 %v3980, %v3976
    %v4141 = vpack.c.b16 %v3981, %v3977
    %v4142 = vpack.c.b16 %v3986, %v3982
    %v4143 = vpack.c.b16 %v3987, %v3983
    %v4144 = vpack.c.b16 %v3988, %v3984
    %v4145 = vpack.c.b16 %v3989, %v3985
    %v4146 = vpack.c.b16 %v3994, %v3990
    %v4147 = vpack.c.b16 %v3995, %v3991
    %v4148 = vpack.c.b16 %v3996, %v3992
    %v4149 = vpack.c.b16 %v3997, %v3993
    %v4150 = vpack.c.b16 %v4002, %v3998
    %v4151 = vpack.c.b16 %v4003, %v3999
    %v4152 = vpack.c.b16 %v4004, %v4000
    %v4153 = vpack.c.b16 %v4005, %v4001
    %v4154 = vpack.c.b16 %v4010, %v4006
    %v4155 = vpack.c.b16 %v4011, %v4007
    %v4156 = vpack.c.b16 %v4012, %v4008
    %v4157 = vpack.c.b16 %v4013, %v4009
    %v4158 = vpack.c.b16 %v4018, %v4014
    %v4159 = vpack.c.b16 %v4019, %v4015
    %v4160 = vpack.c.b16 %v4020, %v4016
    %v4161 = vpack.c.b16 %v4021, %v4017
    %v4162 = vpack.c.b16 %v4026, %v4022
    %v4163 = vpack.c.b16 %v4027, %v4023
    %v4164 = vpack.c.b16 %v4028, %v4024
    %v4165 = vpack.c.b16 %v4029, %v4025
    %v4166 = vpack.c.b16 %v4034, %v4030
    %v4167 = vpack.c.b16 %v4035, %v4031
    %v4168 = vpack.c.b16 %v4036, %v4032
    %v4169 = vpack.c.b16 %v4037, %v4033
    %v4170 = vpack.c.b16 %v4042, %v4038
    %v4171 = vpack.c.b16 %v4043, %v4039
    %v4172 = vpack.c.b16 %v4044, %v4040
    %v4173 = vpack.c.b16 %v4045, %v4041
    %4302 = vmatprep.subr.bf16.mxu0 %v4047
    %4303 = vmatpush1.bf16.msra.mxu0 %v4046
    %4304 = vmatprep.subr.bf16.mxu0 %v4051
    %4305 = vmatpush1.bf16.msra.mxu0 %v4050
    %4306 = vmatprep.subr.bf16.mxu0 %v4055
    %4307 = vmatpush1.bf16.msra.mxu0 %v4054
    %4308 = vmatprep.subr.bf16.mxu0 %v4059
    %4309 = vmatpush1.bf16.msra.mxu0 %v4058
    %4310 = vmatprep.subr.bf16.mxu0 %v4063
    %4311 = vmatpush1.bf16.msra.mxu0 %v4062
    %4312 = vmatprep.subr.bf16.mxu0 %v4067
    %4313 = vmatpush1.bf16.msra.mxu0 %v4066
    %4314 = vmatprep.subr.bf16.mxu0 %v4071
    %4315 = vmatpush1.bf16.msra.mxu0 %v4070
    %4316 = vmatprep.subr.bf16.mxu0 %v4075
    %4317 = vmatpush1.bf16.msra.mxu0 %v4074
    %4318 = vmatprep.subr.bf16.mxu0 %v4079
    %4319 = vmatpush1.bf16.msra.mxu0 %v4078
    %4320 = vmatprep.subr.bf16.mxu0 %v4083
    %4321 = vmatpush1.bf16.msra.mxu0 %v4082
    %4322 = vmatprep.subr.bf16.mxu0 %v4087
    %4323 = vmatpush1.bf16.msra.mxu0 %v4086
    %4324 = vmatprep.subr.bf16.mxu0 %v4091
    %4325 = vmatpush1.bf16.msra.mxu0 %v4090
    %4326 = vmatprep.subr.bf16.mxu0 %v4095
    %4327 = vmatpush1.bf16.msra.mxu0 %v4094
    %4328 = vmatprep.subr.bf16.mxu0 %v4099
    %4329 = vmatpush1.bf16.msra.mxu0 %v4098
    %4330 = vmatprep.subr.bf16.mxu0 %v4103
    %4331 = vmatpush1.bf16.msra.mxu0 %v4102
    %4332 = vmatprep.subr.bf16.mxu0 %v4107
    %4333 = vmatpush1.bf16.msra.mxu0 %v4106
    %4334 = vmatprep.mubr.bf16.mxu0 %v2505
    %4335 = vmatmul.mubr.bf16.gmra.mrb[0].mxu0 %v2504
    %v4336 = vpop.f32.mrb[0].mxu0
    %v4337 = vadd.f32 0.0, %v4336
    %v4338 = vpop.f32.mrb[0].mxu0
    %v4339 = vadd.f32 0.0, %v4338
    %v4340 = vpop.f32.mrb[0].mxu0
    %v4341 = vadd.f32 0.0, %v4340
    %v4342 = vpop.f32.mrb[0].mxu0
    %v4343 = vadd.f32 0.0, %v4342
    %4344 = vdwg.mxu0
    %4345 = vmatprep.subr.bf16.mxu0 %v4111
    %4346 = vmatpush1.bf16.msra.mxu0 %v4110
    %4347 = vmatprep.subr.bf16.mxu0 %v4115
    %4348 = vmatpush1.bf16.msra.mxu0 %v4114
    %4349 = vmatprep.subr.bf16.mxu0 %v4119
    %4350 = vmatpush1.bf16.msra.mxu0 %v4118
    %4351 = vmatprep.subr.bf16.mxu0 %v4123
    %4352 = vmatpush1.bf16.msra.mxu0 %v4122
    %4353 = vmatprep.subr.bf16.mxu0 %v4127
    %4354 = vmatpush1.bf16.msra.mxu0 %v4126
    %4355 = vmatprep.subr.bf16.mxu0 %v4131
    %4356 = vmatpush1.bf16.msra.mxu0 %v4130
    %4357 = vmatprep.subr.bf16.mxu0 %v4135
    %4358 = vmatpush1.bf16.msra.mxu0 %v4134
    %4359 = vmatprep.subr.bf16.mxu0 %v4139
    %4360 = vmatpush1.bf16.msra.mxu0 %v4138
    %4361 = vmatprep.subr.bf16.mxu0 %v4143
    %4362 = vmatpush1.bf16.msra.mxu0 %v4142
    %4363 = vmatprep.subr.bf16.mxu0 %v4147
    %4364 = vmatpush1.bf16.msra.mxu0 %v4146
    %4365 = vmatprep.subr.bf16.mxu0 %v4151
    %4366 = vmatpush1.bf16.msra.mxu0 %v4150
    %4367 = vmatprep.subr.bf16.mxu0 %v4155
    %4368 = vmatpush1.bf16.msra.mxu0 %v4154
    %4369 = vmatprep.subr.bf16.mxu0 %v4159
    %4370 = vmatpush1.bf16.msra.mxu0 %v4158
    %4371 = vmatprep.subr.bf16.mxu0 %v4163
    %4372 = vmatpush1.bf16.msra.mxu0 %v4162
    %4373 = vmatprep.subr.bf16.mxu0 %v4167
    %4374 = vmatpush1.bf16.msra.mxu0 %v4166
    %4375 = vmatprep.subr.bf16.mxu0 %v4171
    %4376 = vmatpush1.bf16.msra.mxu0 %v4170
    %4377 = vmatprep.mubr.bf16.mxu0 %v2507
    %4378 = vmatmul.mubr.bf16.gmra.mrb[0].mxu0 %v2506
    %v4379 = vpop.f32.mrb[0].mxu0
    %v4380 = vadd.f32 %v4337, %v4379
    %v4381 = vpop.f32.mrb[0].mxu0
    %v4382 = vadd.f32 %v4339, %v4381
    %v4383 = vpop.f32.mrb[0].mxu0
    %v4384 = vadd.f32 %v4341, %v4383
    %v4385 = vpop.f32.mrb[0].mxu0
    %v4386 = vadd.f32 %v4343, %v4385
    %4387 = vdwg.mxu0
    %4388 = vmatprep.subr.bf16.mxu0 %v4049
    %4389 = vmatpush1.bf16.msra.mxu0 %v4048
    %4390 = vmatprep.subr.bf16.mxu0 %v4053
    %4391 = vmatpush1.bf16.msra.mxu0 %v4052
    %4392 = vmatprep.subr.bf16.mxu0 %v4057
    %4393 = vmatpush1.bf16.msra.mxu0 %v4056
    %4394 = vmatprep.subr.bf16.mxu0 %v4061
    %4395 = vmatpush1.bf16.msra.mxu0 %v4060
    %4396 = vmatprep.subr.bf16.mxu0 %v4065
    %4397 = vmatpush1.bf16.msra.mxu0 %v4064
    %4398 = vmatprep.subr.bf16.mxu0 %v4069
    %4399 = vmatpush1.bf16.msra.mxu0 %v4068
    %4400 = vmatprep.subr.bf16.mxu0 %v4073
    %4401 = vmatpush1.bf16.msra.mxu0 %v4072
    %4402 = vmatprep.subr.bf16.mxu0 %v4077
    %4403 = vmatpush1.bf16.msra.mxu0 %v4076
    %4404 = vmatprep.subr.bf16.mxu0 %v4081
    %4405 = vmatpush1.bf16.msra.mxu0 %v4080
    %4406 = vmatprep.subr.bf16.mxu0 %v4085
    %4407 = vmatpush1.bf16.msra.mxu0 %v4084
    %4408 = vmatprep.subr.bf16.mxu0 %v4089
    %4409 = vmatpush1.bf16.msra.mxu0 %v4088
    %4410 = vmatprep.subr.bf16.mxu0 %v4093
    %4411 = vmatpush1.bf16.msra.mxu0 %v4092
    %4412 = vmatprep.subr.bf16.mxu0 %v4097
    %4413 = vmatpush1.bf16.msra.mxu0 %v4096
    %4414 = vmatprep.subr.bf16.mxu0 %v4101
    %4415 = vmatpush1.bf16.msra.mxu0 %v4100
    %4416 = vmatprep.subr.bf16.mxu0 %v4105
    %4417 = vmatpush1.bf16.msra.mxu0 %v4104
    %4418 = vmatprep.subr.bf16.mxu0 %v4109
    %4419 = vmatpush1.bf16.msra.mxu0 %v4108
    %4420 = vmatprep.mubr.bf16.mxu0 %v2505
    %4421 = vmatmul.mubr.bf16.gmra.mrb[0].mxu0 %v2504
    %v4422 = vpop.f32.mrb[0].mxu0
    %v4423 = vadd.f32 0.0, %v4422
    %v4424 = vpop.f32.mrb[0].mxu0
    %v4425 = vadd.f32 0.0, %v4424
    %v4426 = vpop.f32.mrb[0].mxu0
    %v4427 = vadd.f32 0.0, %v4426
    %v4428 = vpop.f32.mrb[0].mxu0
    %v4429 = vadd.f32 0.0, %v4428
    %4430 = vdwg.mxu0
    %4431 = vmatprep.subr.bf16.mxu0 %v4113
    %4432 = vmatpush1.bf16.msra.mxu0 %v4112
    %4433 = vmatprep.subr.bf16.mxu0 %v4117
    %4434 = vmatpush1.bf16.msra.mxu0 %v4116
    %4435 = vmatprep.subr.bf16.mxu0 %v4121
    %4436 = vmatpush1.bf16.msra.mxu0 %v4120
    %4437 = vmatprep.subr.bf16.mxu0 %v4125
    %4438 = vmatpush1.bf16.msra.mxu0 %v4124
    %4439 = vmatprep.subr.bf16.mxu0 %v4129
    %4440 = vmatpush1.bf16.msra.mxu0 %v4128
    %4441 = vmatprep.subr.bf16.mxu0 %v4133
    %4442 = vmatpush1.bf16.msra.mxu0 %v4132
    %4443 = vmatprep.subr.bf16.mxu0 %v4137
    %4444 = vmatpush1.bf16.msra.mxu0 %v4136
    %4445 = vmatprep.subr.bf16.mxu0 %v4141
    %4446 = vmatpush1.bf16.msra.mxu0 %v4140
    %4447 = vmatprep.subr.bf16.mxu0 %v4145
    %4448 = vmatpush1.bf16.msra.mxu0 %v4144
    %4449 = vmatprep.subr.bf16.mxu0 %v4149
    %4450 = vmatpush1.bf16.msra.mxu0 %v4148
    %4451 = vmatprep.subr.bf16.mxu0 %v4153
    %4452 = vmatpush1.bf16.msra.mxu0 %v4152
    %4453 = vmatprep.subr.bf16.mxu0 %v4157
    %4454 = vmatpush1.bf16.msra.mxu0 %v4156
    %4455 = vmatprep.subr.bf16.mxu0 %v4161
    %4456 = vmatpush1.bf16.msra.mxu0 %v4160
    %4457 = vmatprep.subr.bf16.mxu0 %v4165
    %4458 = vmatpush1.bf16.msra.mxu0 %v4164
    %4459 = vmatprep.subr.bf16.mxu0 %v4169
    %4460 = vmatpush1.bf16.msra.mxu0 %v4168
    %4461 = vmatprep.subr.bf16.mxu0 %v4173
    %4462 = vmatpush1.bf16.msra.mxu0 %v4172
    %4463 = vmatprep.mubr.bf16.mxu0 %v2507
    %4464 = vmatmul.mubr.bf16.gmra.mrb[0].mxu0 %v2506
    %v4465 = vpop.f32.mrb[0].mxu0
    %v4466 = vadd.f32 %v4423, %v4465
    %v4467 = vpop.f32.mrb[0].mxu0
    %v4468 = vadd.f32 %v4425, %v4467
    %v4469 = vpop.f32.mrb[0].mxu0
    %v4470 = vadd.f32 %v4427, %v4469
    %v4471 = vpop.f32.mrb[0].mxu0
    %v4472 = vadd.f32 %v4429, %v4471
    %4473 = vdwg.mxu0
    %v4474 = vpack.c.bf16 %v4384, %v4380
    %v4475 = vpack.c.bf16 %v4386, %v4382
    %v4476 = vpack.c.bf16 %v4470, %v4466
    %v4477 = vpack.c.bf16 %v4472, %v4468
    %v4482 = vunpack.c.l.b16 %v4474
    %v4483 = vunpack.c.l.b16 %v4475
    %v4484 = vunpack.c.l.b16 %v4476
    %v4485 = vunpack.c.l.b16 %v4477
    %v4486 = vunpack.c.h.b16 %v4474
    %v4487 = vunpack.c.h.b16 %v4475
    %v4488 = vunpack.c.h.b16 %v4476
    %v4489 = vunpack.c.h.b16 %v4477
    %v4490 = vpack.c.b16 %v4483, %v4482
    %v4491 = vpack.c.b16 %v4485, %v4484
    %v4492 = vpack.c.b16 %v4487, %v4486
    %v4493 = vpack.c.b16 %v4489, %v4488
    %4498 = vst [vmem:[#allocation19] sm:$0xff] %v4490
    %4499 = vst [vmem:[#allocation19 + $0x8] sm:$0xff] %v4491
    %4500 = vst [vmem:[#allocation19 + $0x10] sm:$0xff] %v4492
    %4501 = vst [vmem:[#allocation19 + $0x18] sm:$0xff] %v4493
    // Predicated region
    $region82: #{tpu_custom_call.1} parent=1 // pred_check
      _
    $region83: #{tpu_custom_call.1} parent=1 // pred_check_branch
      %4503 = sbr.rel (0) target = $region85
    $region84: #{tpu_custom_call.1} parent=1 // pred_region
      %s4505 = ssub.s32 1024, 1024
      %4506 = vsyncadd [#allocation4], %s4505
      %s4507 = sshll.u32 [#allocation16], 4
      %s4508 = int_to_ptr.vmem [resolvable:$true] %s4507
      %4513 = dma.vmem_to_hbm [thread:$0]  %s4508, 1024, %s12, [#allocation4], 512, 512, 32
    $region85: #{tpu_custom_call.1} parent=1 // pred_fallthru
      _
    // Predicated region
    $region86: #{tpu_custom_call.1} parent=1 // pred_check
      _
    $region87: #{tpu_custom_call.1} parent=1 // pred_check_branch
      %4515 = sbr.rel (0) target = $region89
    $region88: #{tpu_custom_call.1} parent=1 // pred_region
      %s4517 = ssub.s32 512, 512
      %4518 = vsyncadd [#allocation18], %s4517
      %s4519 = sshll.u32 [#allocation17], 4
      %s4520 = int_to_ptr.vmem [resolvable:$true] %s4519
      %4525 = dma.vmem_to_hbm [thread:$0]  %s4520, 512, %s13, [#allocation18], 256, 256, 16
    $region89: #{tpu_custom_call.1} parent=1 // pred_fallthru
      _
    // Predicated region
    $region90: #{tpu_custom_call.1} parent=1 // pred_check
      _
    $region91: #{tpu_custom_call.1} parent=1 // pred_check_branch
      %4527 = sbr.rel (0) target = $region93
    $region92: #{tpu_custom_call.1} parent=1 // pred_region
      %s4529 = ssub.s32 512, 512
      %4530 = vsyncadd [#allocation18], %s4529
      %s4531 = sshll.u32 [#allocation19], 4
      %s4532 = int_to_ptr.vmem [resolvable:$true] %s4531
      %4537 = dma.vmem_to_hbm [thread:$0]  %s4532, 512, %s14, [#allocation18], 256, 256, 16
    $region93: #{tpu_custom_call.1} parent=1 // pred_fallthru
      _
    // Predicated region
    $region94: #{tpu_custom_call.1} parent=1 // pred_check
      _
    $region95: #{tpu_custom_call.1} parent=1 // pred_check_branch
      %4539 = sbr.rel (0) target = $region97
    $region96: #{tpu_custom_call.1} parent=1 // pred_region
      %4540 = dma.done [#allocation4], 1024
    $region97: #{tpu_custom_call.1} parent=1 // pred_fallthru
      _
    // Predicated region
    $region98: #{tpu_custom_call.1} parent=1 // pred_check
      _
    $region99: #{tpu_custom_call.1} parent=1 // pred_check_branch
      %4542 = sbr.rel (0) target = $region101
    $region100: #{tpu_custom_call.1} parent=1 // pred_region
      %4543 = dma.done [#allocation18], 512
    $region101: #{tpu_custom_call.1} parent=1 // pred_fallthru
      _
    // Predicated region
    $region102: #{tpu_custom_call.1} parent=1 // pred_check
      _
    $region103: #{tpu_custom_call.1} parent=1 // pred_check_branch
      %4545 = sbr.rel (0) target = $region105
    $region104: #{tpu_custom_call.1} parent=1 // pred_region
      %4546 = dma.done [#allocation18], 512
    $region105: #{tpu_custom_call.1} parent=1 // pred_fallthru
      _
    %4547 = vsyncpa [#allocation3], 1
    %4548 = vsyncpa [#allocation6], 1
    %4549 = vsyncpa [#allocation9], 1
    %4550 = vsyncpa [#allocation12], 1
    %4551 = vsyncpa [#allocation15], 1
    %4552 = vsyncpa [#allocation4], 1
    %4553 = vsyncpa [#allocation18], 1

</llo_original>
